<compile_context>
chip_gen: v7x
topology: tpu7x:2x2x1
jax: 0.10.0
libtpu: 0.0.40
codegen_flags: <defaults>
</compile_context>

<pallas_src>
import functools

import jax
import jax.numpy as jnp
import numpy as np
from jax.experimental import pallas as pl
from jax.experimental.pallas import tpu as pltpu


def _attnpool_kernel(x_ref, pos0_ref, posg_ref, segsel_ref, segexp_ref,
                     hmask_ref, hmaskt_ref,
                     wq_ref, bq_ref, wk_ref, bk_ref, wv_ref, bv_ref,
                     wc_ref, bc_ref, out_ref, *, bb: int, inv_hw: float,
                     scale: float):
    f32 = jnp.float32
    cdt = x_ref.dtype                 # compute dtype (f32 for the test, bf16 at prod)

    x = x_ref[...]                    # (Bb*HW, C) token slab for Bb batch elements
    seg_sel = segsel_ref[...]         # (Bb, Bb*HW) 0/1 batch-segment selector
    seg_exp = segexp_ref[...]         # (Bb*HW, Bb) its transpose
    hmask = hmask_ref[...]            # (C, nh)     0/1 head block-mask
    hmask_t = hmaskt_ref[...]         # (nh, C)

    # Mean token per batch element via one small MXU matmul; accumulation is
    # f32 via preferred_element_type, so no f32 copy of the x slab is needed.
    mean_tok = jnp.dot(seg_sel, x, preferred_element_type=f32) * inv_hw    # (Bb, C)
    tok0 = mean_tok + pos0_ref[...]                                        # (Bb, C) f32
    tok0c = tok0.astype(cdt)

    # Token-0 (query) projections: tiny (Bb, C) x (C, C) matmuls.
    q = (jnp.dot(tok0c, wq_ref[...], preferred_element_type=f32)
         + bq_ref[...]) * scale                                            # (Bb, C)
    k0 = jnp.dot(tok0c, wk_ref[...], preferred_element_type=f32) + bk_ref[...]
    v0 = jnp.dot(tok0c, wv_ref[...], preferred_element_type=f32) + bv_ref[...]

    # Grid-token positional add without a pre-tiled HBM slab: broadcast the
    # (HW, C) rows across the Bb batch elements of this block in-kernel.
    hw, c = posg_ref.shape
    pos_slab = jnp.broadcast_to(posg_ref[...][None], (bb, hw, c)).reshape(bb * hw, c)
    x_pos = x + pos_slab                                                   # (Bb*HW, C)

    # Tall (Bb*HW, C) x (C, C) MXU projections; f32 accumulation, cdt storage.
    k = (jnp.dot(x_pos, wk_ref[...], preferred_element_type=f32)
         + bk_ref[...]).astype(cdt)                                        # (Bb*HW, C)
    v = (jnp.dot(x_pos, wv_ref[...], preferred_element_type=f32)
         + bv_ref[...]).astype(cdt)                                        # (Bb*HW, C)

    # Lane-preserving segmented multi-head scores (no per-head slicing).
    q_rows = jnp.dot(seg_exp, q.astype(cdt),
                     preferred_element_type=f32).astype(cdt)               # (Bb*HW, C)
    s = jnp.dot(k * q_rows, hmask, preferred_element_type=f32)             # (Bb*HW, nh)
    s0 = jnp.dot(k0 * q, hmask.astype(f32), preferred_element_type=f32)    # (Bb, nh)

    # Softmax over the HW+1 tokens of each (batch, head) group.  A per-head
    # max is constant within every group, so it is an exact stabilizing shift;
    # the denominator clamp guards the (unlikely) all-underflow case.
    m = jnp.maximum(jnp.max(s, axis=0, keepdims=True),
                    jnp.max(s0, axis=0, keepdims=True))                    # (1, nh)
    p = jnp.exp(s - m)                                                     # (Bb*HW, nh)
    p0 = jnp.exp(s0 - m)                                                   # (Bb, nh)
    denom = jnp.dot(seg_sel.astype(f32), p, preferred_element_type=f32) + p0
    denom = jnp.maximum(denom, 1e-30)
    inv = pl.reciprocal(denom, approx=True)           # EUP slot (otherwise idle)
    inv = inv * (2.0 - denom * inv)                   # one Newton step -> ~f32

    # Expand head weights back to channels and reduce over tokens per batch.
    pc = jnp.dot(p.astype(cdt), hmask_t,
                 preferred_element_type=f32).astype(cdt)                   # (Bb*HW, C)
    ctx = jnp.dot(seg_sel, pc * v, preferred_element_type=f32)             # (Bb, C)
    hmt32 = hmask_t.astype(f32)
    ctx = ctx + jnp.dot(p0, hmt32, preferred_element_type=f32) * v0
    ctx = ctx * jnp.dot(inv, hmt32, preferred_element_type=f32)

    out = jnp.dot(ctx.astype(cdt), wc_ref[...],
                  preferred_element_type=f32) + bc_ref[...]                # (Bb, Dout)
    out_ref[...] = out.astype(out_ref.dtype)                               # dense store


def _vmem_capacity_bytes():
    try:
        info = pltpu.get_tpu_info()
        cap = getattr(info, "vmem_capacity_bytes", None)
        if cap:
            return int(cap)
    except Exception:
        pass
    return 64 << 20                       # conservative (v7x-sized) fallback


def _vmem_bytes_estimate(bb, hw, c, dout, nh, cd_bytes):
    """Rough per-block VMEM footprint, incl. in-kernel intermediates."""
    weights = (3 * c * c + c * dout) * cd_bytes + (3 * c + dout) * 4   # single-buffered
    x_in = 2 * bb * hw * c * cd_bytes                                  # double-buffered input
    selectors = 2 * bb * bb * hw * cd_bytes
    pos = hw * c * cd_bytes + c * 4
    heads = 2 * c * nh * cd_bytes
    out = 2 * bb * dout * 4
    inter = ((5 * cd_bytes + 4) * bb * hw * c                          # k/v/q_rows/pc + transients
             + 4 * bb * hw * nh * 4 + 8 * bb * c * 4)
    return weights + x_in + selectors + pos + heads + out + inter


def _auto_batch_block(n, hw, c, dout, nh, cd_bytes, vmem_budget):
    """Largest layout-legal batch block fitting the per-generation VMEM budget."""
    cap = 16 if vmem_budget <= (72 << 20) else 32   # v7x vs v5e/v6e headroom
    cands = [d for d in range(1, n + 1)
             if n % d == 0 and (d == n or d % 8 == 0)]          # (8,128) layout legality
    fitting = [d for d in cands
               if d <= cap and _vmem_bytes_estimate(d, hw, c, dout, nh, cd_bytes) <= vmem_budget]
    if not fitting:
        fitting = [min(cands)]
    multi_step = [d for d in fitting if n // d >= 2]            # keep both v7x cores busy
    return max(multi_step) if multi_step else max(fitting)


def attention_pool_2d(x_nchw, params, num_heads, *, batch_block=None,
                      compute_dtype=jnp.float32):
    """CLIP attention pooling. x_nchw: (N, C, H, W). Returns (N, output_dim) f32."""
    N, C, H, W = x_nchw.shape
    HW = H * W
    L = HW + 1
    assert C % num_heads == 0
    head_dim = C // num_heads

    pos, wq, bq, wk, bk, wv, bv, wc, bc = params
    Dout = wc.shape[0]
    cd_bytes = jnp.dtype(compute_dtype).itemsize

    vmem_cap = _vmem_capacity_bytes()
    if batch_block is None:
        batch_block = _auto_batch_block(N, HW, C, Dout, num_heads, cd_bytes,
                                        int(vmem_cap * 0.75))
    Bb = batch_block
    assert N % Bb == 0, "batch_block must divide the batch size"

    est_bytes = _vmem_bytes_estimate(Bb, HW, C, Dout, num_heads, cd_bytes)
    # Always set an explicit scoped-VMEM limit (v5e default is only 16 MiB) but
    # never let it reach physical VMEM — leave headroom for compiler scratch.
    vmem_limit_bytes = int(min(max(est_bytes * 5 // 4 + (4 << 20), 16 << 20),
                               int(vmem_cap * 0.85)))

    # Layout plumbing, once, outside the hot loop.
    # TODO(synk): this NCHW -> (N*HW, C) flatten is a standalone XLA transpose
    #             (one extra HBM round trip); emit NHWC from the conv backbone
    #             to make it a free reshape.
    x_flat = (jnp.transpose(x_nchw.reshape(N, C, HW), (0, 2, 1))
              .reshape(N * HW, C).astype(compute_dtype))
    wq_t = wq.T.astype(compute_dtype)
    wk_t = wk.T.astype(compute_dtype)
    wv_t = wv.T.astype(compute_dtype)
    wc_t = wc.T.astype(compute_dtype)
    bq2 = bq.reshape(1, C).astype(jnp.float32)
    bk2 = bk.reshape(1, C).astype(jnp.float32)
    bv2 = bv.reshape(1, C).astype(jnp.float32)
    bc2 = bc.reshape(1, Dout).astype(jnp.float32)
    pos0 = pos[0:1].astype(jnp.float32)                    # (1, C)
    pos_grid = pos[1:].astype(compute_dtype)               # (HW, C) — no pre-tiled slab

    # Constant 0/1 selectors, in compute dtype (exact for 0/1).
    seg_sel = jnp.repeat(jnp.eye(Bb, dtype=compute_dtype), HW, axis=1)       # (Bb, Bb*HW)
    seg_exp = seg_sel.T                                                      # (Bb*HW, Bb)
    hmask = jnp.repeat(jnp.eye(num_heads, dtype=compute_dtype), head_dim, 0)  # (C, nh)
    hmask_t = hmask.T                                                        # (nh, C)

    kernel = functools.partial(_attnpool_kernel, bb=Bb,
                               inv_hw=1.0 / HW, scale=head_dim ** -0.5)

    cost = pl.CostEstimate(
        flops=int(2 * N * L * C * C * 2            # k, v projections over all tokens
                  + 2 * N * C * C                  # q projection (token 0)
                  + 2 * N * L * C * num_heads * 2  # score + probability head-mask matmuls
                  + 2 * N * Bb * HW * C * 3        # seg_sel/seg_exp selector matmuls
                  + 2 * N * Bb * HW * num_heads    # denominator selector matmul
                  + 2 * N * C * Dout),
        transcendentals=int(N * L * num_heads + N * num_heads),
        bytes_accessed=int(N * HW * C * cd_bytes
                           + (3 * C * C + C * Dout) * cd_bytes
                           + L * C * cd_bytes
                           + 2 * Bb * Bb * HW * cd_bytes
                           + 2 * C * num_heads * cd_bytes
                           + N * Dout * 4))

    const2d = lambda b: (0, 0)
    operands = (x_flat, pos0, pos_grid, seg_sel, seg_exp, hmask, hmask_t,
                wq_t, bq2, wk_t, bk2, wv_t, bv2, wc_t, bc2)

    def _call(single_buffer_consts):
        def const_spec(shape):
            # Constant-index blocks never change -> single-buffer them to save
            # ~half of the resident VMEM vs the default double buffering.
            if single_buffer_consts:
                return pl.BlockSpec(shape, const2d, pipeline_mode=pl.Buffered(1))
            return pl.BlockSpec(shape, const2d)

        return pl.pallas_call(
            kernel,
            out_shape=jax.ShapeDtypeStruct((N, Dout), jnp.float32),
            grid=(N // Bb,),
            in_specs=[
                pl.BlockSpec((Bb * HW, C), lambda b: (b, 0)),   # x token slab
                const_spec((1, C)),              # pos[0]
                const_spec((HW, C)),             # pos[1:]
                const_spec((Bb, Bb * HW)),       # batch-segment selector
                const_spec((Bb * HW, Bb)),       # its transpose (q expand)
                const_spec((C, num_heads)),      # head block-mask
                const_spec((num_heads, C)),      # head block-mask^T
                const_spec((C, C)),              # Wq^T
                const_spec((1, C)),              # bq
                const_spec((C, C)),              # Wk^T
                const_spec((1, C)),              # bk
                const_spec((C, C)),              # Wv^T
                const_spec((1, C)),              # bv
                const_spec((C, Dout)),           # Wc^T
                const_spec((1, Dout)),           # bc
            ],
            out_specs=pl.BlockSpec((Bb, Dout), lambda b: (b, 0)),
            compiler_params=pltpu.CompilerParams(
                dimension_semantics=("parallel",),            # 2 TCs on v7x
                vmem_limit_bytes=vmem_limit_bytes),
            cost_estimate=cost,
        )(*operands)

    try:
        return _call(True)
    except Exception:
        # TODO(synk): pipeline_mode=pl.Buffered(1) not accepted by this JAX
        #             build; fall back to default buffering (same numerics).
        return _call(False)


def reference_attention_pool_2d(x_nchw, params, num_heads):
    """Pure-JAX replica of the PyTorch attention-pool forward (verification)."""
    pos, wq, bq, wk, bk, wv, bv, wc, bc = params
    N, C, H, W = x_nchw.shape
    x = jnp.transpose(x_nchw.reshape(N, C, H * W), (2, 0, 1))        # (HW, N, C)
    x = jnp.concatenate([x.mean(axis=0, keepdims=True), x], axis=0)  # (L, N, C)
    x = x + pos[:, None, :]
    q = x @ wq.T + bq
    k = x @ wk.T + bk
    v = x @ wv.T + bv
    L = x.shape[0]
    hd = C // num_heads
    q = q.reshape(L, N, num_heads, hd).transpose(1, 2, 0, 3)  # (N, nh, L, hd)
    k = k.reshape(L, N, num_heads, hd).transpose(1, 2, 0, 3)
    v = v.reshape(L, N, num_heads, hd).transpose(1, 2, 0, 3)
    s = (q * hd ** -0.5) @ jnp.swapaxes(k, -1, -2)            # (N, nh, L, L)
    p = jax.nn.softmax(s, axis=-1)
    o = p @ v                                                 # (N, nh, L, hd)
    o = o.transpose(2, 0, 1, 3).reshape(L, N, C)
    o = o @ wc.T + bc                                         # (L, N, Dout)
    return o[0]                                               # (N, Dout)


if __name__ == "__main__":
    # Small shapes consistent with the module:
    #   batch=2, embed_dim=32, spatial 4x4 (16 tokens + 1 mean token),
    #   num_heads=4, output_dim=16.
    N, C, S = 2, 32, 4
    num_heads, Dout = 4, 16
    L = S * S + 1

    key = jax.random.PRNGKey(0)
    keys = jax.random.split(key, 10)
    pos = jax.random.normal(keys[0], (L, C), jnp.float32) / (C ** 0.5)
    wq = jax.random.normal(keys[1], (C, C), jnp.float32) * 0.05
    bq = jax.random.normal(keys[2], (C,), jnp.float32) * 0.05
    wk = jax.random.normal(keys[3], (C, C), jnp.float32) * 0.05
    bk = jax.random.normal(keys[4], (C,), jnp.float32) * 0.05
    wv = jax.random.normal(keys[5], (C, C), jnp.float32) * 0.05
    bv = jax.random.normal(keys[6], (C,), jnp.float32) * 0.05
    wc = jax.random.normal(keys[7], (Dout, C), jnp.float32) * 0.05
    bc = jax.random.normal(keys[8], (Dout,), jnp.float32) * 0.05
    params = (pos, wq, bq, wk, bk, wv, bv, wc, bc)

    x = jax.random.normal(keys[9], (N, C, S, S), jnp.float32)

    out = attention_pool_2d(x, params, num_heads)
    out = jax.block_until_ready(out)

    ref = reference_attention_pool_2d(x, params, num_heads)
    assert out.shape == (N, Dout)
    # Tolerance budget covers MXU operand rounding in the restructured matmul
    # path and the Newton-refined EUP reciprocal; genuine math errors would be
    # ~100x larger than this bound.
    np.testing.assert_allclose(np.asarray(out), np.asarray(ref),
                               rtol=5e-3, atol=5e-4)
    print("KERNEL_OK")
</pallas_src>

<mosaic_0001>
module attributes {stable_mosaic.version = 11 : i64} {
  func.func @_attnpool_kernel(%arg0: i32, %arg1: memref<32x32xf32, #tpu.memory_space<vmem>>, %arg2: memref<1x32xf32, #tpu.memory_space<vmem>>, %arg3: memref<16x32xf32, #tpu.memory_space<vmem>>, %arg4: memref<2x32xf32, #tpu.memory_space<vmem>>, %arg5: memref<32x2xf32, #tpu.memory_space<vmem>>, %arg6: memref<32x4xf32, #tpu.memory_space<vmem>>, %arg7: memref<4x32xf32, #tpu.memory_space<vmem>>, %arg8: memref<32x32xf32, #tpu.memory_space<vmem>>, %arg9: memref<1x32xf32, #tpu.memory_space<vmem>>, %arg10: memref<32x32xf32, #tpu.memory_space<vmem>>, %arg11: memref<1x32xf32, #tpu.memory_space<vmem>>, %arg12: memref<32x32xf32, #tpu.memory_space<vmem>>, %arg13: memref<1x32xf32, #tpu.memory_space<vmem>>, %arg14: memref<32x16xf32, #tpu.memory_space<vmem>>, %arg15: memref<1x16xf32, #tpu.memory_space<vmem>>, %arg16: memref<2x16xf32, #tpu.memory_space<vmem>>) attributes {dimension_semantics = [#tpu.dimension_semantics<parallel>], iteration_bounds = array<i64: 1>, scalar_prefetch = 0 : i64, scratch_operands = 0 : i64, tpu.core_type = #tpu.core_type<tc>, window_params = [{transform_indices = @transform_0, window_bounds = array<i64: 32, 32>}, {pipeline_mode = #tpu.pipeline_mode<synchronous>, transform_indices = @transform_1, window_bounds = array<i64: 1, 32>}, {pipeline_mode = #tpu.pipeline_mode<synchronous>, transform_indices = @transform_2, window_bounds = array<i64: 16, 32>}, {pipeline_mode = #tpu.pipeline_mode<synchronous>, transform_indices = @transform_3, window_bounds = array<i64: 2, 32>}, {pipeline_mode = #tpu.pipeline_mode<synchronous>, transform_indices = @transform_4, window_bounds = array<i64: 32, 2>}, {pipeline_mode = #tpu.pipeline_mode<synchronous>, transform_indices = @transform_5, window_bounds = array<i64: 32, 4>}, {pipeline_mode = #tpu.pipeline_mode<synchronous>, transform_indices = @transform_6, window_bounds = array<i64: 4, 32>}, {pipeline_mode = #tpu.pipeline_mode<synchronous>, transform_indices = @transform_7, window_bounds = array<i64: 32, 32>}, {pipeline_mode = #tpu.pipeline_mode<synchronous>, transform_indices = @transform_8, window_bounds = array<i64: 1, 32>}, {pipeline_mode = #tpu.pipeline_mode<synchronous>, transform_indices = @transform_9, window_bounds = array<i64: 32, 32>}, {pipeline_mode = #tpu.pipeline_mode<synchronous>, transform_indices = @transform_10, window_bounds = array<i64: 1, 32>}, {pipeline_mode = #tpu.pipeline_mode<synchronous>, transform_indices = @transform_11, window_bounds = array<i64: 32, 32>}, {pipeline_mode = #tpu.pipeline_mode<synchronous>, transform_indices = @transform_12, window_bounds = array<i64: 1, 32>}, {pipeline_mode = #tpu.pipeline_mode<synchronous>, transform_indices = @transform_13, window_bounds = array<i64: 32, 16>}, {pipeline_mode = #tpu.pipeline_mode<synchronous>, transform_indices = @transform_14, window_bounds = array<i64: 1, 16>}, {transform_indices = @transform_15, window_bounds = array<i64: 2, 16>}]} {
    %c0 = arith.constant 0 : index
    %c0_0 = arith.constant 0 : index
    %0 = vector.load %arg1[%c0, %c0_0] : memref<32x32xf32, #tpu.memory_space<vmem>>, vector<32x32xf32>
    %c0_1 = arith.constant 0 : index
    %c0_2 = arith.constant 0 : index
    %1 = vector.load %arg4[%c0_1, %c0_2] : memref<2x32xf32, #tpu.memory_space<vmem>>, vector<2x32xf32>
    %c0_3 = arith.constant 0 : index
    %c0_4 = arith.constant 0 : index
    %2 = vector.load %arg5[%c0_3, %c0_4] : memref<32x2xf32, #tpu.memory_space<vmem>>, vector<32x2xf32>
    %c0_5 = arith.constant 0 : index
    %c0_6 = arith.constant 0 : index
    %3 = vector.load %arg6[%c0_5, %c0_6] : memref<32x4xf32, #tpu.memory_space<vmem>>, vector<32x4xf32>
    %c0_7 = arith.constant 0 : index
    %c0_8 = arith.constant 0 : index
    %4 = vector.load %arg7[%c0_7, %c0_8] : memref<4x32xf32, #tpu.memory_space<vmem>>, vector<4x32xf32>
    %cst = arith.constant dense<0.000000e+00> : vector<2x32xf32>
    %5 = tpu.matmul %1, %0, %cst {dimension_numbers = #tpu.dot_dimension_numbers<[1], [0], [0], [1], [0, 0, 1, 1], [], []>} : vector<2x32xf32>, vector<32x32xf32>, vector<2x32xf32> -> vector<2x32xf32>
    %cst_9 = arith.constant 6.250000e-02 : f32
    %6 = vector.broadcast %cst_9 : f32 to vector<2x32xf32>
    %7 = arith.mulf %5, %6 : vector<2x32xf32>
    %c0_10 = arith.constant 0 : index
    %c0_11 = arith.constant 0 : index
    %8 = vector.load %arg2[%c0_10, %c0_11] : memref<1x32xf32, #tpu.memory_space<vmem>>, vector<1x32xf32>
    %9 = vector.broadcast %8 : vector<1x32xf32> to vector<2x32xf32>
    %10 = arith.addf %7, %9 : vector<2x32xf32>
    %c0_12 = arith.constant 0 : index
    %c0_13 = arith.constant 0 : index
    %11 = vector.load %arg8[%c0_12, %c0_13] : memref<32x32xf32, #tpu.memory_space<vmem>>, vector<32x32xf32>
    %cst_14 = arith.constant dense<0.000000e+00> : vector<2x32xf32>
    %12 = tpu.matmul %10, %11, %cst_14 {dimension_numbers = #tpu.dot_dimension_numbers<[1], [0], [0], [1], [0, 0, 1, 1], [], []>} : vector<2x32xf32>, vector<32x32xf32>, vector<2x32xf32> -> vector<2x32xf32>
    %c0_15 = arith.constant 0 : index
    %c0_16 = arith.constant 0 : index
    %13 = vector.load %arg9[%c0_15, %c0_16] : memref<1x32xf32, #tpu.memory_space<vmem>>, vector<1x32xf32>
    %14 = vector.broadcast %13 : vector<1x32xf32> to vector<2x32xf32>
    %15 = arith.addf %12, %14 : vector<2x32xf32>
    %cst_17 = arith.constant 0.353553385 : f32
    %16 = vector.broadcast %cst_17 : f32 to vector<2x32xf32>
    %17 = arith.mulf %15, %16 : vector<2x32xf32>
    %c0_18 = arith.constant 0 : index
    %c0_19 = arith.constant 0 : index
    %18 = vector.load %arg10[%c0_18, %c0_19] : memref<32x32xf32, #tpu.memory_space<vmem>>, vector<32x32xf32>
    %cst_20 = arith.constant dense<0.000000e+00> : vector<2x32xf32>
    %19 = tpu.matmul %10, %18, %cst_20 {dimension_numbers = #tpu.dot_dimension_numbers<[1], [0], [0], [1], [0, 0, 1, 1], [], []>} : vector<2x32xf32>, vector<32x32xf32>, vector<2x32xf32> -> vector<2x32xf32>
    %c0_21 = arith.constant 0 : index
    %c0_22 = arith.constant 0 : index
    %20 = vector.load %arg11[%c0_21, %c0_22] : memref<1x32xf32, #tpu.memory_space<vmem>>, vector<1x32xf32>
    %21 = vector.broadcast %20 : vector<1x32xf32> to vector<2x32xf32>
    %22 = arith.addf %19, %21 : vector<2x32xf32>
    %c0_23 = arith.constant 0 : index
    %c0_24 = arith.constant 0 : index
    %23 = vector.load %arg12[%c0_23, %c0_24] : memref<32x32xf32, #tpu.memory_space<vmem>>, vector<32x32xf32>
    %cst_25 = arith.constant dense<0.000000e+00> : vector<2x32xf32>
    %24 = tpu.matmul %10, %23, %cst_25 {dimension_numbers = #tpu.dot_dimension_numbers<[1], [0], [0], [1], [0, 0, 1, 1], [], []>} : vector<2x32xf32>, vector<32x32xf32>, vector<2x32xf32> -> vector<2x32xf32>
    %c0_26 = arith.constant 0 : index
    %c0_27 = arith.constant 0 : index
    %25 = vector.load %arg13[%c0_26, %c0_27] : memref<1x32xf32, #tpu.memory_space<vmem>>, vector<1x32xf32>
    %26 = vector.broadcast %25 : vector<1x32xf32> to vector<2x32xf32>
    %27 = arith.addf %24, %26 : vector<2x32xf32>
    %c0_28 = arith.constant 0 : index
    %c0_29 = arith.constant 0 : index
    %28 = vector.load %arg3[%c0_28, %c0_29] : memref<16x32xf32, #tpu.memory_space<vmem>>, vector<16x32xf32>
    %29 = vector.shape_cast %28 : vector<16x32xf32> to vector<1x16x32xf32>
    %30 = vector.shape_cast %29 : vector<1x16x32xf32> to vector<1x16x32xf32>
    %31 = vector.broadcast %30 : vector<1x16x32xf32> to vector<2x16x32xf32>
    %32 = vector.shape_cast %31 : vector<2x16x32xf32> to vector<32x32xf32>
    %33 = arith.addf %0, %32 : vector<32x32xf32>
    %c0_30 = arith.constant 0 : index
    %c0_31 = arith.constant 0 : index
    %34 = vector.load %arg10[%c0_30, %c0_31] : memref<32x32xf32, #tpu.memory_space<vmem>>, vector<32x32xf32>
    %cst_32 = arith.constant dense<0.000000e+00> : vector<32x32xf32>
    %35 = tpu.matmul %33, %34, %cst_32 {dimension_numbers = #tpu.dot_dimension_numbers<[1], [0], [0], [1], [0, 0, 1, 1], [], []>} : vector<32x32xf32>, vector<32x32xf32>, vector<32x32xf32> -> vector<32x32xf32>
    %c0_33 = arith.constant 0 : index
    %c0_34 = arith.constant 0 : index
    %36 = vector.load %arg11[%c0_33, %c0_34] : memref<1x32xf32, #tpu.memory_space<vmem>>, vector<1x32xf32>
    %37 = vector.broadcast %36 : vector<1x32xf32> to vector<32x32xf32>
    %38 = arith.addf %35, %37 : vector<32x32xf32>
    %c0_35 = arith.constant 0 : index
    %c0_36 = arith.constant 0 : index
    %39 = vector.load %arg12[%c0_35, %c0_36] : memref<32x32xf32, #tpu.memory_space<vmem>>, vector<32x32xf32>
    %cst_37 = arith.constant dense<0.000000e+00> : vector<32x32xf32>
    %40 = tpu.matmul %33, %39, %cst_37 {dimension_numbers = #tpu.dot_dimension_numbers<[1], [0], [0], [1], [0, 0, 1, 1], [], []>} : vector<32x32xf32>, vector<32x32xf32>, vector<32x32xf32> -> vector<32x32xf32>
    %c0_38 = arith.constant 0 : index
    %c0_39 = arith.constant 0 : index
    %41 = vector.load %arg13[%c0_38, %c0_39] : memref<1x32xf32, #tpu.memory_space<vmem>>, vector<1x32xf32>
    %42 = vector.broadcast %41 : vector<1x32xf32> to vector<32x32xf32>
    %43 = arith.addf %40, %42 : vector<32x32xf32>
    %cst_40 = arith.constant dense<0.000000e+00> : vector<32x32xf32>
    %44 = tpu.matmul %2, %17, %cst_40 {dimension_numbers = #tpu.dot_dimension_numbers<[1], [0], [0], [1], [0, 0, 1, 1], [], []>} : vector<32x2xf32>, vector<2x32xf32>, vector<32x32xf32> -> vector<32x32xf32>
    %45 = arith.mulf %38, %44 : vector<32x32xf32>
    %cst_41 = arith.constant dense<0.000000e+00> : vector<32x4xf32>
    %46 = tpu.matmul %45, %3, %cst_41 {dimension_numbers = #tpu.dot_dimension_numbers<[1], [0], [0], [1], [0, 0, 1, 1], [], []>} : vector<32x32xf32>, vector<32x4xf32>, vector<32x4xf32> -> vector<32x4xf32>
    %47 = arith.mulf %22, %17 : vector<2x32xf32>
    %cst_42 = arith.constant dense<0.000000e+00> : vector<2x4xf32>
    %48 = tpu.matmul %47, %3, %cst_42 {dimension_numbers = #tpu.dot_dimension_numbers<[1], [0], [0], [1], [0, 0, 1, 1], [], []>} : vector<2x32xf32>, vector<32x4xf32>, vector<2x4xf32> -> vector<2x4xf32>
    %cst_43 = arith.constant dense<0xFF800000> : vector<4xf32>
    %49 = vector.multi_reduction <maximumf>, %46, %cst_43 [0] : vector<32x4xf32> to vector<4xf32>
    %50 = vector.shape_cast %49 : vector<4xf32> to vector<1x4xf32>
    %cst_44 = arith.constant dense<0xFF800000> : vector<4xf32>
    %51 = vector.multi_reduction <maximumf>, %48, %cst_44 [0] : vector<2x4xf32> to vector<4xf32>
    %52 = vector.shape_cast %51 : vector<4xf32> to vector<1x4xf32>
    %53 = arith.maximumf %50, %52 : vector<1x4xf32>
    %54 = vector.broadcast %53 : vector<1x4xf32> to vector<32x4xf32>
    %55 = arith.subf %46, %54 : vector<32x4xf32>
    %56 = math.exp %55 : vector<32x4xf32>
    %57 = vector.broadcast %53 : vector<1x4xf32> to vector<2x4xf32>
    %58 = arith.subf %48, %57 : vector<2x4xf32>
    %59 = math.exp %58 : vector<2x4xf32>
    %cst_45 = arith.constant dense<0.000000e+00> : vector<2x4xf32>
    %60 = tpu.matmul %1, %56, %cst_45 {dimension_numbers = #tpu.dot_dimension_numbers<[1], [0], [0], [1], [0, 0, 1, 1], [], []>} : vector<2x32xf32>, vector<32x4xf32>, vector<2x4xf32> -> vector<2x4xf32>
    %61 = arith.addf %60, %59 : vector<2x4xf32>
    %cst_46 = arith.constant 1.000000e-30 : f32
    %62 = vector.broadcast %cst_46 : f32 to vector<2x4xf32>
    %63 = arith.maximumf %61, %62 : vector<2x4xf32>
    %64 = tpu.reciprocal %63 {approx = true} : vector<2x4xf32> -> vector<2x4xf32>
    %65 = arith.mulf %63, %64 : vector<2x4xf32>
    %cst_47 = arith.constant 2.000000e+00 : f32
    %66 = vector.broadcast %cst_47 : f32 to vector<2x4xf32>
    %67 = arith.subf %66, %65 : vector<2x4xf32>
    %68 = arith.mulf %64, %67 : vector<2x4xf32>
    %cst_48 = arith.constant dense<0.000000e+00> : vector<32x32xf32>
    %69 = tpu.matmul %56, %4, %cst_48 {dimension_numbers = #tpu.dot_dimension_numbers<[1], [0], [0], [1], [0, 0, 1, 1], [], []>} : vector<32x4xf32>, vector<4x32xf32>, vector<32x32xf32> -> vector<32x32xf32>
    %70 = arith.mulf %69, %43 : vector<32x32xf32>
    %cst_49 = arith.constant dense<0.000000e+00> : vector<2x32xf32>
    %71 = tpu.matmul %1, %70, %cst_49 {dimension_numbers = #tpu.dot_dimension_numbers<[1], [0], [0], [1], [0, 0, 1, 1], [], []>} : vector<2x32xf32>, vector<32x32xf32>, vector<2x32xf32> -> vector<2x32xf32>
    %cst_50 = arith.constant dense<0.000000e+00> : vector<2x32xf32>
    %72 = tpu.matmul %59, %4, %cst_50 {dimension_numbers = #tpu.dot_dimension_numbers<[1], [0], [0], [1], [0, 0, 1, 1], [], []>} : vector<2x4xf32>, vector<4x32xf32>, vector<2x32xf32> -> vector<2x32xf32>
    %73 = arith.mulf %72, %27 : vector<2x32xf32>
    %74 = arith.addf %71, %73 : vector<2x32xf32>
    %cst_51 = arith.constant dense<0.000000e+00> : vector<2x32xf32>
    %75 = tpu.matmul %68, %4, %cst_51 {dimension_numbers = #tpu.dot_dimension_numbers<[1], [0], [0], [1], [0, 0, 1, 1], [], []>} : vector<2x4xf32>, vector<4x32xf32>, vector<2x32xf32> -> vector<2x32xf32>
    %76 = arith.mulf %74, %75 : vector<2x32xf32>
    %c0_52 = arith.constant 0 : index
    %c0_53 = arith.constant 0 : index
    %77 = vector.load %arg14[%c0_52, %c0_53] : memref<32x16xf32, #tpu.memory_space<vmem>>, vector<32x16xf32>
    %cst_54 = arith.constant dense<0.000000e+00> : vector<2x16xf32>
    %78 = tpu.matmul %76, %77, %cst_54 {dimension_numbers = #tpu.dot_dimension_numbers<[1], [0], [0], [1], [0, 0, 1, 1], [], []>} : vector<2x32xf32>, vector<32x16xf32>, vector<2x16xf32> -> vector<2x16xf32>
    %c0_55 = arith.constant 0 : index
    %c0_56 = arith.constant 0 : index
    %79 = vector.load %arg15[%c0_55, %c0_56] : memref<1x16xf32, #tpu.memory_space<vmem>>, vector<1x16xf32>
    %80 = vector.broadcast %79 : vector<1x16xf32> to vector<2x16xf32>
    %81 = arith.addf %78, %80 : vector<2x16xf32>
    %c0_57 = arith.constant 0 : index
    %c0_58 = arith.constant 0 : index
    %82 = vector.load %arg16[%c0_57, %c0_58] : memref<2x16xf32, #tpu.memory_space<vmem>>, vector<2x16xf32>
    tpu.vector_store %arg16[%c0_57, %c0_58], %81 {strides = array<i32>} : memref<2x16xf32, #tpu.memory_space<vmem>>, vector<2x16xf32>,
    return
  }
  func.func @transform_0(%arg0: i32) -> (i32, i32) {
    %c0_i32 = arith.constant 0 : i32
    %c0_i32_0 = arith.constant 0 : i32
    return %arg0, %c0_i32 : i32, i32
  }
  func.func @transform_1(%arg0: i32) -> (i32, i32) {
    %c0_i32 = arith.constant 0 : i32
    %c0_i32_0 = arith.constant 0 : i32
    %c0_i32_1 = arith.constant 0 : i32
    return %c0_i32, %c0_i32_0 : i32, i32
  }
  func.func @transform_2(%arg0: i32) -> (i32, i32) {
    %c0_i32 = arith.constant 0 : i32
    %c0_i32_0 = arith.constant 0 : i32
    %c0_i32_1 = arith.constant 0 : i32
    return %c0_i32, %c0_i32_0 : i32, i32
  }
  func.func @transform_3(%arg0: i32) -> (i32, i32) {
    %c0_i32 = arith.constant 0 : i32
    %c0_i32_0 = arith.constant 0 : i32
    %c0_i32_1 = arith.constant 0 : i32
    return %c0_i32, %c0_i32_0 : i32, i32
  }
  func.func @transform_4(%arg0: i32) -> (i32, i32) {
    %c0_i32 = arith.constant 0 : i32
    %c0_i32_0 = arith.constant 0 : i32
    %c0_i32_1 = arith.constant 0 : i32
    return %c0_i32, %c0_i32_0 : i32, i32
  }
  func.func @transform_5(%arg0: i32) -> (i32, i32) {
    %c0_i32 = arith.constant 0 : i32
    %c0_i32_0 = arith.constant 0 : i32
    %c0_i32_1 = arith.constant 0 : i32
    return %c0_i32, %c0_i32_0 : i32, i32
  }
  func.func @transform_6(%arg0: i32) -> (i32, i32) {
    %c0_i32 = arith.constant 0 : i32
    %c0_i32_0 = arith.constant 0 : i32
    %c0_i32_1 = arith.constant 0 : i32
    return %c0_i32, %c0_i32_0 : i32, i32
  }
  func.func @transform_7(%arg0: i32) -> (i32, i32) {
    %c0_i32 = arith.constant 0 : i32
    %c0_i32_0 = arith.constant 0 : i32
    %c0_i32_1 = arith.constant 0 : i32
    return %c0_i32, %c0_i32_0 : i32, i32
  }
  func.func @transform_8(%arg0: i32) -> (i32, i32) {
    %c0_i32 = arith.constant 0 : i32
    %c0_i32_0 = arith.constant 0 : i32
    %c0_i32_1 = arith.constant 0 : i32
    return %c0_i32, %c0_i32_0 : i32, i32
  }
  func.func @transform_9(%arg0: i32) -> (i32, i32) {
    %c0_i32 = arith.constant 0 : i32
    %c0_i32_0 = arith.constant 0 : i32
    %c0_i32_1 = arith.constant 0 : i32
    return %c0_i32, %c0_i32_0 : i32, i32
  }
  func.func @transform_10(%arg0: i32) -> (i32, i32) {
    %c0_i32 = arith.constant 0 : i32
    %c0_i32_0 = arith.constant 0 : i32
    %c0_i32_1 = arith.constant 0 : i32
    return %c0_i32, %c0_i32_0 : i32, i32
  }
  func.func @transform_11(%arg0: i32) -> (i32, i32) {
    %c0_i32 = arith.constant 0 : i32
    %c0_i32_0 = arith.constant 0 : i32
    %c0_i32_1 = arith.constant 0 : i32
    return %c0_i32, %c0_i32_0 : i32, i32
  }
  func.func @transform_12(%arg0: i32) -> (i32, i32) {
    %c0_i32 = arith.constant 0 : i32
    %c0_i32_0 = arith.constant 0 : i32
    %c0_i32_1 = arith.constant 0 : i32
    return %c0_i32, %c0_i32_0 : i32, i32
  }
  func.func @transform_13(%arg0: i32) -> (i32, i32) {
    %c0_i32 = arith.constant 0 : i32
    %c0_i32_0 = arith.constant 0 : i32
    %c0_i32_1 = arith.constant 0 : i32
    return %c0_i32, %c0_i32_0 : i32, i32
  }
  func.func @transform_14(%arg0: i32) -> (i32, i32) {
    %c0_i32 = arith.constant 0 : i32
    %c0_i32_0 = arith.constant 0 : i32
    %c0_i32_1 = arith.constant 0 : i32
    return %c0_i32, %c0_i32_0 : i32, i32
  }
  func.func @transform_15(%arg0: i32) -> (i32, i32) {
    %c0_i32 = arith.constant 0 : i32
    %c0_i32_0 = arith.constant 0 : i32
    return %arg0, %c0_i32 : i32, i32
  }
}

module attributes {stable_mosaic.version = 11 : i64} {
  func.func @_attnpool_kernel(%arg0: i32, %arg1: memref<32x32xf32, #tpu.memory_space<vmem>>, %arg2: memref<1x32xf32, #tpu.memory_space<vmem>>, %arg3: memref<16x32xf32, #tpu.memory_space<vmem>>, %arg4: memref<2x32xf32, #tpu.memory_space<vmem>>, %arg5: memref<32x2xf32, #tpu.memory_space<vmem>>, %arg6: memref<32x4xf32, #tpu.memory_space<vmem>>, %arg7: memref<4x32xf32, #tpu.memory_space<vmem>>, %arg8: memref<32x32xf32, #tpu.memory_space<vmem>>, %arg9: memref<1x32xf32, #tpu.memory_space<vmem>>, %arg10: memref<32x32xf32, #tpu.memory_space<vmem>>, %arg11: memref<1x32xf32, #tpu.memory_space<vmem>>, %arg12: memref<32x32xf32, #tpu.memory_space<vmem>>, %arg13: memref<1x32xf32, #tpu.memory_space<vmem>>, %arg14: memref<32x16xf32, #tpu.memory_space<vmem>>, %arg15: memref<1x16xf32, #tpu.memory_space<vmem>>, %arg16: memref<2x16xf32, #tpu.memory_space<vmem>>) attributes {dimension_semantics = [#tpu.dimension_semantics<parallel>], iteration_bounds = array<i64: 1>, scalar_prefetch = 0 : i64, scratch_operands = 0 : i64, tpu.core_type = #tpu.core_type<tc>, window_params = [{transform_indices = @transform_0, window_bounds = array<i64: 32, 32>}, {pipeline_mode = #tpu.pipeline_mode<synchronous>, transform_indices = @transform_1, window_bounds = array<i64: 1, 32>}, {pipeline_mode = #tpu.pipeline_mode<synchronous>, transform_indices = @transform_2, window_bounds = array<i64: 16, 32>}, {pipeline_mode = #tpu.pipeline_mode<synchronous>, transform_indices = @transform_3, window_bounds = array<i64: 2, 32>}, {pipeline_mode = #tpu.pipeline_mode<synchronous>, transform_indices = @transform_4, window_bounds = array<i64: 32, 2>}, {pipeline_mode = #tpu.pipeline_mode<synchronous>, transform_indices = @transform_5, window_bounds = array<i64: 32, 4>}, {pipeline_mode = #tpu.pipeline_mode<synchronous>, transform_indices = @transform_6, window_bounds = array<i64: 4, 32>}, {pipeline_mode = #tpu.pipeline_mode<synchronous>, transform_indices = @transform_7, window_bounds = array<i64: 32, 32>}, {pipeline_mode = #tpu.pipeline_mode<synchronous>, transform_indices = @transform_8, window_bounds = array<i64: 1, 32>}, {pipeline_mode = #tpu.pipeline_mode<synchronous>, transform_indices = @transform_9, window_bounds = array<i64: 32, 32>}, {pipeline_mode = #tpu.pipeline_mode<synchronous>, transform_indices = @transform_10, window_bounds = array<i64: 1, 32>}, {pipeline_mode = #tpu.pipeline_mode<synchronous>, transform_indices = @transform_11, window_bounds = array<i64: 32, 32>}, {pipeline_mode = #tpu.pipeline_mode<synchronous>, transform_indices = @transform_12, window_bounds = array<i64: 1, 32>}, {pipeline_mode = #tpu.pipeline_mode<synchronous>, transform_indices = @transform_13, window_bounds = array<i64: 32, 16>}, {pipeline_mode = #tpu.pipeline_mode<synchronous>, transform_indices = @transform_14, window_bounds = array<i64: 1, 16>}, {transform_indices = @transform_15, window_bounds = array<i64: 2, 16>}]} {
    %c0 = arith.constant 0 : index
    %c0_0 = arith.constant 0 : index
    %0 = vector.load %arg1[%c0, %c0_0] : memref<32x32xf32, #tpu.memory_space<vmem>>, vector<32x32xf32>
    %c0_1 = arith.constant 0 : index
    %c0_2 = arith.constant 0 : index
    %1 = vector.load %arg4[%c0_1, %c0_2] : memref<2x32xf32, #tpu.memory_space<vmem>>, vector<2x32xf32>
    %c0_3 = arith.constant 0 : index
    %c0_4 = arith.constant 0 : index
    %2 = vector.load %arg5[%c0_3, %c0_4] : memref<32x2xf32, #tpu.memory_space<vmem>>, vector<32x2xf32>
    %c0_5 = arith.constant 0 : index
    %c0_6 = arith.constant 0 : index
    %3 = vector.load %arg6[%c0_5, %c0_6] : memref<32x4xf32, #tpu.memory_space<vmem>>, vector<32x4xf32>
    %c0_7 = arith.constant 0 : index
    %c0_8 = arith.constant 0 : index
    %4 = vector.load %arg7[%c0_7, %c0_8] : memref<4x32xf32, #tpu.memory_space<vmem>>, vector<4x32xf32>
    %cst = arith.constant dense<0.000000e+00> : vector<2x32xf32>
    %5 = tpu.matmul %1, %0, %cst {dimension_numbers = #tpu.dot_dimension_numbers<[1], [0], [0], [1], [0, 0, 1, 1], [], []>} : vector<2x32xf32>, vector<32x32xf32>, vector<2x32xf32> -> vector<2x32xf32>
    %cst_9 = arith.constant 6.250000e-02 : f32
    %6 = vector.broadcast %cst_9 : f32 to vector<2x32xf32>
    %7 = arith.mulf %5, %6 : vector<2x32xf32>
    %c0_10 = arith.constant 0 : index
    %c0_11 = arith.constant 0 : index
    %8 = vector.load %arg2[%c0_10, %c0_11] : memref<1x32xf32, #tpu.memory_space<vmem>>, vector<1x32xf32>
    %9 = vector.broadcast %8 : vector<1x32xf32> to vector<2x32xf32>
    %10 = arith.addf %7, %9 : vector<2x32xf32>
    %c0_12 = arith.constant 0 : index
    %c0_13 = arith.constant 0 : index
    %11 = vector.load %arg8[%c0_12, %c0_13] : memref<32x32xf32, #tpu.memory_space<vmem>>, vector<32x32xf32>
    %cst_14 = arith.constant dense<0.000000e+00> : vector<2x32xf32>
    %12 = tpu.matmul %10, %11, %cst_14 {dimension_numbers = #tpu.dot_dimension_numbers<[1], [0], [0], [1], [0, 0, 1, 1], [], []>} : vector<2x32xf32>, vector<32x32xf32>, vector<2x32xf32> -> vector<2x32xf32>
    %c0_15 = arith.constant 0 : index
    %c0_16 = arith.constant 0 : index
    %13 = vector.load %arg9[%c0_15, %c0_16] : memref<1x32xf32, #tpu.memory_space<vmem>>, vector<1x32xf32>
    %14 = vector.broadcast %13 : vector<1x32xf32> to vector<2x32xf32>
    %15 = arith.addf %12, %14 : vector<2x32xf32>
    %cst_17 = arith.constant 0.353553385 : f32
    %16 = vector.broadcast %cst_17 : f32 to vector<2x32xf32>
    %17 = arith.mulf %15, %16 : vector<2x32xf32>
    %c0_18 = arith.constant 0 : index
    %c0_19 = arith.constant 0 : index
    %18 = vector.load %arg10[%c0_18, %c0_19] : memref<32x32xf32, #tpu.memory_space<vmem>>, vector<32x32xf32>
    %cst_20 = arith.constant dense<0.000000e+00> : vector<2x32xf32>
    %19 = tpu.matmul %10, %18, %cst_20 {dimension_numbers = #tpu.dot_dimension_numbers<[1], [0], [0], [1], [0, 0, 1, 1], [], []>} : vector<2x32xf32>, vector<32x32xf32>, vector<2x32xf32> -> vector<2x32xf32>
    %c0_21 = arith.constant 0 : index
    %c0_22 = arith.constant 0 : index
    %20 = vector.load %arg11[%c0_21, %c0_22] : memref<1x32xf32, #tpu.memory_space<vmem>>, vector<1x32xf32>
    %21 = vector.broadcast %20 : vector<1x32xf32> to vector<2x32xf32>
    %22 = arith.addf %19, %21 : vector<2x32xf32>
    %c0_23 = arith.constant 0 : index
    %c0_24 = arith.constant 0 : index
    %23 = vector.load %arg12[%c0_23, %c0_24] : memref<32x32xf32, #tpu.memory_space<vmem>>, vector<32x32xf32>
    %cst_25 = arith.constant dense<0.000000e+00> : vector<2x32xf32>
    %24 = tpu.matmul %10, %23, %cst_25 {dimension_numbers = #tpu.dot_dimension_numbers<[1], [0], [0], [1], [0, 0, 1, 1], [], []>} : vector<2x32xf32>, vector<32x32xf32>, vector<2x32xf32> -> vector<2x32xf32>
    %c0_26 = arith.constant 0 : index
    %c0_27 = arith.constant 0 : index
    %25 = vector.load %arg13[%c0_26, %c0_27] : memref<1x32xf32, #tpu.memory_space<vmem>>, vector<1x32xf32>
    %26 = vector.broadcast %25 : vector<1x32xf32> to vector<2x32xf32>
    %27 = arith.addf %24, %26 : vector<2x32xf32>
    %c0_28 = arith.constant 0 : index
    %c0_29 = arith.constant 0 : index
    %28 = vector.load %arg3[%c0_28, %c0_29] : memref<16x32xf32, #tpu.memory_space<vmem>>, vector<16x32xf32>
    %29 = vector.shape_cast %28 : vector<16x32xf32> to vector<1x16x32xf32>
    %30 = vector.shape_cast %29 : vector<1x16x32xf32> to vector<1x16x32xf32>
    %31 = vector.broadcast %30 : vector<1x16x32xf32> to vector<2x16x32xf32>
    %32 = vector.shape_cast %31 : vector<2x16x32xf32> to vector<32x32xf32>
    %33 = arith.addf %0, %32 : vector<32x32xf32>
    %c0_30 = arith.constant 0 : index
    %c0_31 = arith.constant 0 : index
    %34 = vector.load %arg10[%c0_30, %c0_31] : memref<32x32xf32, #tpu.memory_space<vmem>>, vector<32x32xf32>
    %cst_32 = arith.constant dense<0.000000e+00> : vector<32x32xf32>
    %35 = tpu.matmul %33, %34, %cst_32 {dimension_numbers = #tpu.dot_dimension_numbers<[1], [0], [0], [1], [0, 0, 1, 1], [], []>} : vector<32x32xf32>, vector<32x32xf32>, vector<32x32xf32> -> vector<32x32xf32>
    %c0_33 = arith.constant 0 : index
    %c0_34 = arith.constant 0 : index
    %36 = vector.load %arg11[%c0_33, %c0_34] : memref<1x32xf32, #tpu.memory_space<vmem>>, vector<1x32xf32>
    %37 = vector.broadcast %36 : vector<1x32xf32> to vector<32x32xf32>
    %38 = arith.addf %35, %37 : vector<32x32xf32>
    %c0_35 = arith.constant 0 : index
    %c0_36 = arith.constant 0 : index
    %39 = vector.load %arg12[%c0_35, %c0_36] : memref<32x32xf32, #tpu.memory_space<vmem>>, vector<32x32xf32>
    %cst_37 = arith.constant dense<0.000000e+00> : vector<32x32xf32>
    %40 = tpu.matmul %33, %39, %cst_37 {dimension_numbers = #tpu.dot_dimension_numbers<[1], [0], [0], [1], [0, 0, 1, 1], [], []>} : vector<32x32xf32>, vector<32x32xf32>, vector<32x32xf32> -> vector<32x32xf32>
    %c0_38 = arith.constant 0 : index
    %c0_39 = arith.constant 0 : index
    %41 = vector.load %arg13[%c0_38, %c0_39] : memref<1x32xf32, #tpu.memory_space<vmem>>, vector<1x32xf32>
    %42 = vector.broadcast %41 : vector<1x32xf32> to vector<32x32xf32>
    %43 = arith.addf %40, %42 : vector<32x32xf32>
    %cst_40 = arith.constant dense<0.000000e+00> : vector<32x32xf32>
    %44 = tpu.matmul %2, %17, %cst_40 {dimension_numbers = #tpu.dot_dimension_numbers<[1], [0], [0], [1], [0, 0, 1, 1], [], []>} : vector<32x2xf32>, vector<2x32xf32>, vector<32x32xf32> -> vector<32x32xf32>
    %45 = arith.mulf %38, %44 : vector<32x32xf32>
    %cst_41 = arith.constant dense<0.000000e+00> : vector<32x4xf32>
    %46 = tpu.matmul %45, %3, %cst_41 {dimension_numbers = #tpu.dot_dimension_numbers<[1], [0], [0], [1], [0, 0, 1, 1], [], []>} : vector<32x32xf32>, vector<32x4xf32>, vector<32x4xf32> -> vector<32x4xf32>
    %47 = arith.mulf %22, %17 : vector<2x32xf32>
    %cst_42 = arith.constant dense<0.000000e+00> : vector<2x4xf32>
    %48 = tpu.matmul %47, %3, %cst_42 {dimension_numbers = #tpu.dot_dimension_numbers<[1], [0], [0], [1], [0, 0, 1, 1], [], []>} : vector<2x32xf32>, vector<32x4xf32>, vector<2x4xf32> -> vector<2x4xf32>
    %cst_43 = arith.constant dense<0xFF800000> : vector<4xf32>
    %49 = vector.multi_reduction <maximumf>, %46, %cst_43 [0] : vector<32x4xf32> to vector<4xf32>
    %50 = vector.shape_cast %49 : vector<4xf32> to vector<1x4xf32>
    %cst_44 = arith.constant dense<0xFF800000> : vector<4xf32>
    %51 = vector.multi_reduction <maximumf>, %48, %cst_44 [0] : vector<2x4xf32> to vector<4xf32>
    %52 = vector.shape_cast %51 : vector<4xf32> to vector<1x4xf32>
    %53 = arith.maximumf %50, %52 : vector<1x4xf32>
    %54 = vector.broadcast %53 : vector<1x4xf32> to vector<32x4xf32>
    %55 = arith.subf %46, %54 : vector<32x4xf32>
    %56 = math.exp %55 : vector<32x4xf32>
    %57 = vector.broadcast %53 : vector<1x4xf32> to vector<2x4xf32>
    %58 = arith.subf %48, %57 : vector<2x4xf32>
    %59 = math.exp %58 : vector<2x4xf32>
    %cst_45 = arith.constant dense<0.000000e+00> : vector<2x4xf32>
    %60 = tpu.matmul %1, %56, %cst_45 {dimension_numbers = #tpu.dot_dimension_numbers<[1], [0], [0], [1], [0, 0, 1, 1], [], []>} : vector<2x32xf32>, vector<32x4xf32>, vector<2x4xf32> -> vector<2x4xf32>
    %61 = arith.addf %60, %59 : vector<2x4xf32>
    %cst_46 = arith.constant 1.000000e-30 : f32
    %62 = vector.broadcast %cst_46 : f32 to vector<2x4xf32>
    %63 = arith.maximumf %61, %62 : vector<2x4xf32>
    %64 = tpu.reciprocal %63 {approx = true} : vector<2x4xf32> -> vector<2x4xf32>
    %65 = arith.mulf %63, %64 : vector<2x4xf32>
    %cst_47 = arith.constant 2.000000e+00 : f32
    %66 = vector.broadcast %cst_47 : f32 to vector<2x4xf32>
    %67 = arith.subf %66, %65 : vector<2x4xf32>
    %68 = arith.mulf %64, %67 : vector<2x4xf32>
    %cst_48 = arith.constant dense<0.000000e+00> : vector<32x32xf32>
    %69 = tpu.matmul %56, %4, %cst_48 {dimension_numbers = #tpu.dot_dimension_numbers<[1], [0], [0], [1], [0, 0, 1, 1], [], []>} : vector<32x4xf32>, vector<4x32xf32>, vector<32x32xf32> -> vector<32x32xf32>
    %70 = arith.mulf %69, %43 : vector<32x32xf32>
    %cst_49 = arith.constant dense<0.000000e+00> : vector<2x32xf32>
    %71 = tpu.matmul %1, %70, %cst_49 {dimension_numbers = #tpu.dot_dimension_numbers<[1], [0], [0], [1], [0, 0, 1, 1], [], []>} : vector<2x32xf32>, vector<32x32xf32>, vector<2x32xf32> -> vector<2x32xf32>
    %cst_50 = arith.constant dense<0.000000e+00> : vector<2x32xf32>
    %72 = tpu.matmul %59, %4, %cst_50 {dimension_numbers = #tpu.dot_dimension_numbers<[1], [0], [0], [1], [0, 0, 1, 1], [], []>} : vector<2x4xf32>, vector<4x32xf32>, vector<2x32xf32> -> vector<2x32xf32>
    %73 = arith.mulf %72, %27 : vector<2x32xf32>
    %74 = arith.addf %71, %73 : vector<2x32xf32>
    %cst_51 = arith.constant dense<0.000000e+00> : vector<2x32xf32>
    %75 = tpu.matmul %68, %4, %cst_51 {dimension_numbers = #tpu.dot_dimension_numbers<[1], [0], [0], [1], [0, 0, 1, 1], [], []>} : vector<2x4xf32>, vector<4x32xf32>, vector<2x32xf32> -> vector<2x32xf32>
    %76 = arith.mulf %74, %75 : vector<2x32xf32>
    %c0_52 = arith.constant 0 : index
    %c0_53 = arith.constant 0 : index
    %77 = vector.load %arg14[%c0_52, %c0_53] : memref<32x16xf32, #tpu.memory_space<vmem>>, vector<32x16xf32>
    %cst_54 = arith.constant dense<0.000000e+00> : vector<2x16xf32>
    %78 = tpu.matmul %76, %77, %cst_54 {dimension_numbers = #tpu.dot_dimension_numbers<[1], [0], [0], [1], [0, 0, 1, 1], [], []>} : vector<2x32xf32>, vector<32x16xf32>, vector<2x16xf32> -> vector<2x16xf32>
    %c0_55 = arith.constant 0 : index
    %c0_56 = arith.constant 0 : index
    %79 = vector.load %arg15[%c0_55, %c0_56] : memref<1x16xf32, #tpu.memory_space<vmem>>, vector<1x16xf32>
    %80 = vector.broadcast %79 : vector<1x16xf32> to vector<2x16xf32>
    %81 = arith.addf %78, %80 : vector<2x16xf32>
    %c0_57 = arith.constant 0 : index
    %c0_58 = arith.constant 0 : index
    %82 = vector.load %arg16[%c0_57, %c0_58] : memref<2x16xf32, #tpu.memory_space<vmem>>, vector<2x16xf32>
    tpu.vector_store %arg16[%c0_57, %c0_58], %81 {strides = array<i32>} : memref<2x16xf32, #tpu.memory_space<vmem>>, vector<2x16xf32>,
    return
  }
  func.func @transform_0(%arg0: i32) -> (i32, i32) {
    %c0_i32 = arith.constant 0 : i32
    %c0_i32_0 = arith.constant 0 : i32
    return %arg0, %c0_i32 : i32, i32
  }
  func.func @transform_1(%arg0: i32) -> (i32, i32) {
    %c0_i32 = arith.constant 0 : i32
    %c0_i32_0 = arith.constant 0 : i32
    %c0_i32_1 = arith.constant 0 : i32
    return %c0_i32, %c0_i32_0 : i32, i32
  }
  func.func @transform_2(%arg0: i32) -> (i32, i32) {
    %c0_i32 = arith.constant 0 : i32
    %c0_i32_0 = arith.constant 0 : i32
    %c0_i32_1 = arith.constant 0 : i32
    return %c0_i32, %c0_i32_0 : i32, i32
  }
  func.func @transform_3(%arg0: i32) -> (i32, i32) {
    %c0_i32 = arith.constant 0 : i32
    %c0_i32_0 = arith.constant 0 : i32
    %c0_i32_1 = arith.constant 0 : i32
    return %c0_i32, %c0_i32_0 : i32, i32
  }
  func.func @transform_4(%arg0: i32) -> (i32, i32) {
    %c0_i32 = arith.constant 0 : i32
    %c0_i32_0 = arith.constant 0 : i32
    %c0_i32_1 = arith.constant 0 : i32
    return %c0_i32, %c0_i32_0 : i32, i32
  }
  func.func @transform_5(%arg0: i32) -> (i32, i32) {
    %c0_i32 = arith.constant 0 : i32
    %c0_i32_0 = arith.constant 0 : i32
    %c0_i32_1 = arith.constant 0 : i32
    return %c0_i32, %c0_i32_0 : i32, i32
  }
  func.func @transform_6(%arg0: i32) -> (i32, i32) {
    %c0_i32 = arith.constant 0 : i32
    %c0_i32_0 = arith.constant 0 : i32
    %c0_i32_1 = arith.constant 0 : i32
    return %c0_i32, %c0_i32_0 : i32, i32
  }
  func.func @transform_7(%arg0: i32) -> (i32, i32) {
    %c0_i32 = arith.constant 0 : i32
    %c0_i32_0 = arith.constant 0 : i32
    %c0_i32_1 = arith.constant 0 : i32
    return %c0_i32, %c0_i32_0 : i32, i32
  }
  func.func @transform_8(%arg0: i32) -> (i32, i32) {
    %c0_i32 = arith.constant 0 : i32
    %c0_i32_0 = arith.constant 0 : i32
    %c0_i32_1 = arith.constant 0 : i32
    return %c0_i32, %c0_i32_0 : i32, i32
  }
  func.func @transform_9(%arg0: i32) -> (i32, i32) {
    %c0_i32 = arith.constant 0 : i32
    %c0_i32_0 = arith.constant 0 : i32
    %c0_i32_1 = arith.constant 0 : i32
    return %c0_i32, %c0_i32_0 : i32, i32
  }
  func.func @transform_10(%arg0: i32) -> (i32, i32) {
    %c0_i32 = arith.constant 0 : i32
    %c0_i32_0 = arith.constant 0 : i32
    %c0_i32_1 = arith.constant 0 : i32
    return %c0_i32, %c0_i32_0 : i32, i32
  }
  func.func @transform_11(%arg0: i32) -> (i32, i32) {
    %c0_i32 = arith.constant 0 : i32
    %c0_i32_0 = arith.constant 0 : i32
    %c0_i32_1 = arith.constant 0 : i32
    return %c0_i32, %c0_i32_0 : i32, i32
  }
  func.func @transform_12(%arg0: i32) -> (i32, i32) {
    %c0_i32 = arith.constant 0 : i32
    %c0_i32_0 = arith.constant 0 : i32
    %c0_i32_1 = arith.constant 0 : i32
    return %c0_i32, %c0_i32_0 : i32, i32
  }
  func.func @transform_13(%arg0: i32) -> (i32, i32) {
    %c0_i32 = arith.constant 0 : i32
    %c0_i32_0 = arith.constant 0 : i32
    %c0_i32_1 = arith.constant 0 : i32
    return %c0_i32, %c0_i32_0 : i32, i32
  }
  func.func @transform_14(%arg0: i32) -> (i32, i32) {
    %c0_i32 = arith.constant 0 : i32
    %c0_i32_0 = arith.constant 0 : i32
    %c0_i32_1 = arith.constant 0 : i32
    return %c0_i32, %c0_i32_0 : i32, i32
  }
  func.func @transform_15(%arg0: i32) -> (i32, i32) {
    %c0_i32 = arith.constant 0 : i32
    %c0_i32_0 = arith.constant 0 : i32
    return %arg0, %c0_i32 : i32, i32
  }
}

</mosaic_0001>

<llo_original>
// kernel: tpu_custom_call.1
$region0: #{tpu_custom_call.1}
  #allocation0 [shape = 'u32[]', space=smem, size = 0x4, offset = 0x4, fixed_abs, tag = 'smem constant byte address 0x4 - core index']
  #allocation1 [shape = 'u32[144,128]{1,0:T(1,128)}', space=vmem, size = 0x12000, scoped, tag = 'internal scratch']
  %s0 = inlined_call_operand.vmem [shape: f32[32,32], index: 0, kind: input, shape index: {}]
  %s1 = inlined_call_operand.hbm [shape: f32[1,32], index: 1, kind: input, shape index: {}]
  %s2 = inlined_call_operand.hbm [shape: f32[16,32], index: 2, kind: input, shape index: {}]
  %s3 = inlined_call_operand.hbm [shape: f32[2,32], index: 3, kind: input, shape index: {}]
  %s4 = inlined_call_operand.vmem [shape: f32[32,2], index: 4, kind: input, shape index: {}]
  %s5 = inlined_call_operand.vmem [shape: f32[32,4], index: 5, kind: input, shape index: {}]
  %s6 = inlined_call_operand.hbm [shape: f32[4,32], index: 6, kind: input, shape index: {}]
  %s7 = inlined_call_operand.vmem [shape: f32[32,32], index: 7, kind: input, shape index: {}]
  %s8 = inlined_call_operand.vmem [shape: f32[1,32], index: 8, kind: input, shape index: {}]
  %s9 = inlined_call_operand.vmem [shape: f32[32,32], index: 9, kind: input, shape index: {}]
  %s10 = inlined_call_operand.vmem [shape: f32[1,32], index: 10, kind: input, shape index: {}]
  %s11 = inlined_call_operand.vmem [shape: f32[32,32], index: 11, kind: input, shape index: {}]
  %s12 = inlined_call_operand.vmem [shape: f32[1,32], index: 12, kind: input, shape index: {}]
  %s13 = inlined_call_operand.vmem [shape: f32[32,16], index: 13, kind: input, shape index: {}]
  %s14 = inlined_call_operand.vmem [shape: f32[1,16], index: 14, kind: input, shape index: {}]
  %s15 = inlined_call_operand.hbm [shape: f32[2,16], index: 15, kind: output, shape index: {}]
  %s16 = sld [smem:[#allocation0]]
  $region86: #{tpu_custom_call.1} parent=0
    _
  %s18 = ssub.s32 1, %s16
  %s19 = scalar_select 0, %s18, %s16
  $region1: #{tpu_custom_call.1} parent=0
    #allocation2 [shape = 'u8[512]{0}', space=vmem, size = 0x400, scoped, tag = 'input window, operand 1, single buffered']
    #allocation3 [shape = 's32[1]{0}', space=sflag, size = 0x4, scoped, tag = 'scoped memory for tpu_custom_call.1']
    #allocation4 [shape = 's32[1]{0}', space=sflag, size = 0x4, scoped, tag = 'scoped memory for tpu_custom_call.1']
    #allocation5 [shape = 'u8[8192]{0}', space=vmem, size = 0x2000, scoped, tag = 'input window, operand 2, single buffered']
    #allocation6 [shape = 's32[1]{0}', space=sflag, size = 0x4, scoped, tag = 'scoped memory for tpu_custom_call.1']
    #allocation7 [shape = 'u8[1024]{0}', space=vmem, size = 0x400, scoped, tag = 'input window, operand 3, single buffered']
    #allocation8 [shape = 'u8[2048]{0}', space=vmem, size = 0x800, scoped, tag = 'input window, operand 6, single buffered']
    #allocation9 [shape = 's32[1]{0}', space=sflag, size = 0x4, scoped, tag = 'scoped memory for tpu_custom_call.1']
    #allocation10 [shape = 'u8[1024]{0}', space=vmem, size = 0x400, scoped, tag = 'output window, operand 0, single buffered']
    %20 = vsyncpa [#allocation3], 0
    %21 = vsyncpa [#allocation6], 0
    %22 = vsyncpa [#allocation9], 0
    %23 = vsyncpa [#allocation4], 0
    // Predicated region
    $region2: #{tpu_custom_call.1} parent=1 // pred_check
      _
    $region3: #{tpu_custom_call.1} parent=1 // pred_check_branch
      %25 = sbr.rel (0) target = $region5
    $region4: #{tpu_custom_call.1} parent=1 // pred_region
      _
    $region5: #{tpu_custom_call.1} parent=1 // pred_fallthru
      _
    // Predicated region
    $region6: #{tpu_custom_call.1} parent=1 // pred_check
      _
    $region7: #{tpu_custom_call.1} parent=1 // pred_check_branch
      %27 = sbr.rel (0) target = $region9
    $region8: #{tpu_custom_call.1} parent=1 // pred_region
      %s29 = ssub.s32 16, 16
      %30 = vsyncadd [#allocation3], %s29
      %s32 = sshll.u32 [#allocation2], 4
      %s33 = int_to_ptr.vmem [resolvable:$true] %s32
      %35 = dma.hbm_to_vmem [thread:$0]  %s1, 16, %s33, [#allocation3]
    $region9: #{tpu_custom_call.1} parent=1 // pred_fallthru
      _
    // Predicated region
    $region10: #{tpu_custom_call.1} parent=1 // pred_check
      _
    $region11: #{tpu_custom_call.1} parent=1 // pred_check_branch
      %37 = sbr.rel (0) target = $region13
    $region12: #{tpu_custom_call.1} parent=1 // pred_region
      %s39 = ssub.s32 256, 256
      %40 = vsyncadd [#allocation6], %s39
      %s41 = sshll.u32 [#allocation5], 4
      %s42 = int_to_ptr.vmem [resolvable:$true] %s41
      %47 = dma.hbm_to_vmem [thread:$0]  %s2, 256, %s42, [#allocation6], 128, 128, 8
    $region13: #{tpu_custom_call.1} parent=1 // pred_fallthru
      _
    // Predicated region
    $region14: #{tpu_custom_call.1} parent=1 // pred_check
      _
    $region15: #{tpu_custom_call.1} parent=1 // pred_check_branch
      %49 = sbr.rel (0) target = $region17
    $region16: #{tpu_custom_call.1} parent=1 // pred_region
      %s51 = ssub.s32 32, 32
      %52 = vsyncadd [#allocation6], %s51
      %s54 = sshll.u32 [#allocation7], 4
      %s55 = int_to_ptr.vmem [resolvable:$true] %s54
      %57 = dma.hbm_to_vmem [thread:$0]  %s3, 32, %s55, [#allocation6]
    $region17: #{tpu_custom_call.1} parent=1 // pred_fallthru
      _
    // Predicated region
    $region18: #{tpu_custom_call.1} parent=1 // pred_check
      _
    $region19: #{tpu_custom_call.1} parent=1 // pred_check_branch
      %59 = sbr.rel (0) target = $region21
    $region20: #{tpu_custom_call.1} parent=1 // pred_region
      _
    $region21: #{tpu_custom_call.1} parent=1 // pred_fallthru
      _
    // Predicated region
    $region22: #{tpu_custom_call.1} parent=1 // pred_check
      _
    $region23: #{tpu_custom_call.1} parent=1 // pred_check_branch
      %61 = sbr.rel (0) target = $region25
    $region24: #{tpu_custom_call.1} parent=1 // pred_region
      _
    $region25: #{tpu_custom_call.1} parent=1 // pred_fallthru
      _
    // Predicated region
    $region26: #{tpu_custom_call.1} parent=1 // pred_check
      _
    $region27: #{tpu_custom_call.1} parent=1 // pred_check_branch
      %63 = sbr.rel (0) target = $region29
    $region28: #{tpu_custom_call.1} parent=1 // pred_region
      %s65 = ssub.s32 64, 64
      %66 = vsyncadd [#allocation9], %s65
      %s68 = sshll.u32 [#allocation8], 4
      %s69 = int_to_ptr.vmem [resolvable:$true] %s68
      %71 = dma.hbm_to_vmem [thread:$0]  %s6, 64, %s69, [#allocation9]
    $region29: #{tpu_custom_call.1} parent=1 // pred_fallthru
      _
    // Predicated region
    $region30: #{tpu_custom_call.1} parent=1 // pred_check
      _
    $region31: #{tpu_custom_call.1} parent=1 // pred_check_branch
      %73 = sbr.rel (0) target = $region33
    $region32: #{tpu_custom_call.1} parent=1 // pred_region
      _
    $region33: #{tpu_custom_call.1} parent=1 // pred_fallthru
      _
    // Predicated region
    $region34: #{tpu_custom_call.1} parent=1 // pred_check
      _
    $region35: #{tpu_custom_call.1} parent=1 // pred_check_branch
      %75 = sbr.rel (0) target = $region37
    $region36: #{tpu_custom_call.1} parent=1 // pred_region
      _
    $region37: #{tpu_custom_call.1} parent=1 // pred_fallthru
      _
    // Predicated region
    $region38: #{tpu_custom_call.1} parent=1 // pred_check
      _
    $region39: #{tpu_custom_call.1} parent=1 // pred_check_branch
      %77 = sbr.rel (0) target = $region41
    $region40: #{tpu_custom_call.1} parent=1 // pred_region
      _
    $region41: #{tpu_custom_call.1} parent=1 // pred_fallthru
      _
    // Predicated region
    $region42: #{tpu_custom_call.1} parent=1 // pred_check
      _
    $region43: #{tpu_custom_call.1} parent=1 // pred_check_branch
      %79 = sbr.rel (0) target = $region45
    $region44: #{tpu_custom_call.1} parent=1 // pred_region
      _
    $region45: #{tpu_custom_call.1} parent=1 // pred_fallthru
      _
    // Predicated region
    $region46: #{tpu_custom_call.1} parent=1 // pred_check
      _
    $region47: #{tpu_custom_call.1} parent=1 // pred_check_branch
      %81 = sbr.rel (0) target = $region49
    $region48: #{tpu_custom_call.1} parent=1 // pred_region
      _
    $region49: #{tpu_custom_call.1} parent=1 // pred_fallthru
      _
    // Predicated region
    $region50: #{tpu_custom_call.1} parent=1 // pred_check
      _
    $region51: #{tpu_custom_call.1} parent=1 // pred_check_branch
      %83 = sbr.rel (0) target = $region53
    $region52: #{tpu_custom_call.1} parent=1 // pred_region
      _
    $region53: #{tpu_custom_call.1} parent=1 // pred_fallthru
      _
    // Predicated region
    $region54: #{tpu_custom_call.1} parent=1 // pred_check
      _
    $region55: #{tpu_custom_call.1} parent=1 // pred_check_branch
      %85 = sbr.rel (0) target = $region57
    $region56: #{tpu_custom_call.1} parent=1 // pred_region
      _
    $region57: #{tpu_custom_call.1} parent=1 // pred_fallthru
      _
    // Predicated region
    $region58: #{tpu_custom_call.1} parent=1 // pred_check
      _
    $region59: #{tpu_custom_call.1} parent=1 // pred_check_branch
      %87 = sbr.rel (0) target = $region61
    $region60: #{tpu_custom_call.1} parent=1 // pred_region
      _
    $region61: #{tpu_custom_call.1} parent=1 // pred_fallthru
      _
    // Predicated region
    $region62: #{tpu_custom_call.1} parent=1 // pred_check
      _
    $region63: #{tpu_custom_call.1} parent=1 // pred_check_branch
      %89 = sbr.rel (0) target = $region65
    $region64: #{tpu_custom_call.1} parent=1 // pred_region
      %90 = dma.done [#allocation3], 16
    $region65: #{tpu_custom_call.1} parent=1 // pred_fallthru
      _
    // Predicated region
    $region66: #{tpu_custom_call.1} parent=1 // pred_check
      _
    $region67: #{tpu_custom_call.1} parent=1 // pred_check_branch
      %92 = sbr.rel (0) target = $region69
    $region68: #{tpu_custom_call.1} parent=1 // pred_region
      %93 = dma.done [#allocation6], 256
    $region69: #{tpu_custom_call.1} parent=1 // pred_fallthru
      _
    // Predicated region
    $region70: #{tpu_custom_call.1} parent=1 // pred_check
      _
    $region71: #{tpu_custom_call.1} parent=1 // pred_check_branch
      %95 = sbr.rel (0) target = $region73
    $region72: #{tpu_custom_call.1} parent=1 // pred_region
      %96 = dma.done [#allocation6], 32
    $region73: #{tpu_custom_call.1} parent=1 // pred_fallthru
      _
    // Predicated region
    $region74: #{tpu_custom_call.1} parent=1 // pred_check
      _
    $region75: #{tpu_custom_call.1} parent=1 // pred_check_branch
      %98 = sbr.rel (0) target = $region77
    $region76: #{tpu_custom_call.1} parent=1 // pred_region
      %99 = dma.done [#allocation9], 64
    $region77: #{tpu_custom_call.1} parent=1 // pred_fallthru
      _
    %v100 = vld [vmem:[%s0] sm:$0xff]
    %v101 = vld [vmem:[%s0 + $0x8] sm:$0xff]
    %v102 = vld [vmem:[%s0 + $0x10] sm:$0xff]
    %v103 = vld [vmem:[%s0 + $0x18] sm:$0xff]
    %v104 = vld [vmem:[#allocation7] sm:$0x3]
    %v105 = vld [vmem:[%s4] sm:$0xff]
    %v106 = vld [vmem:[%s4 + $0x8] sm:$0xff]
    %v107 = vld [vmem:[%s4 + $0x10] sm:$0xff]
    %v108 = vld [vmem:[%s4 + $0x18] sm:$0xff]
    %v109 = vld [vmem:[%s5] sm:$0xff]
    %v110 = vld [vmem:[%s5 + $0x8] sm:$0xff]
    %v111 = vld [vmem:[%s5 + $0x10] sm:$0xff]
    %v112 = vld [vmem:[%s5 + $0x18] sm:$0xff]
    %v113 = vld [vmem:[#allocation8] sm:$0xf]
    %vm114 = vcmask 261120
    %v116 = vsel %vm114, %v104, 0
    %118 = vmatprep.subr.mxu0 0.0
    %119 = vmatpush1.msra.mxu0 %v100
    %120 = vmatprep.subr.mxu0 0.0
    %121 = vmatpush1.msra.mxu0 %v101
    %122 = vmatprep.subr.mxu0 0.0
    %123 = vmatpush1.msra.mxu0 %v102
    %124 = vmatprep.subr.mxu0 0.0
    %125 = vmatpush1.msra.mxu0 %v103
    %126 = vmatprep.subr.mxu0 0.0
    %127 = vmatpush1.msra.mxu0 0.0
    %128 = vmatprep.subr.mxu0 0.0
    %129 = vmatpush1.msra.mxu0 0.0
    %130 = vmatprep.subr.mxu0 0.0
    %131 = vmatpush1.msra.mxu0 0.0
    %132 = vmatprep.subr.mxu0 0.0
    %133 = vmatpush1.msra.mxu0 0.0
    %134 = vmatprep.subr.mxu0 0.0
    %135 = vmatpush1.msra.mxu0 0.0
    %136 = vmatprep.subr.mxu0 0.0
    %137 = vmatpush1.msra.mxu0 0.0
    %138 = vmatprep.subr.mxu0 0.0
    %139 = vmatpush1.msra.mxu0 0.0
    %140 = vmatprep.subr.mxu0 0.0
    %141 = vmatpush1.msra.mxu0 0.0
    %142 = vmatprep.subr.mxu0 0.0
    %143 = vmatpush1.msra.mxu0 0.0
    %144 = vmatprep.subr.mxu0 0.0
    %145 = vmatpush1.msra.mxu0 0.0
    %146 = vmatprep.subr.mxu0 0.0
    %147 = vmatpush1.msra.mxu0 0.0
    %148 = vmatprep.subr.mxu0 0.0
    %149 = vmatpush1.msra.mxu0 0.0
    %150 = vmatprep.subr.mxu0 0.0
    %151 = vmatpush1.msra.mxu0 0.0
    %152 = vmatprep.subr.mxu0 0.0
    %153 = vmatpush1.msra.mxu0 0.0
    %154 = vmatprep.subr.mxu0 0.0
    %155 = vmatpush1.msra.mxu0 0.0
    %156 = vmatprep.subr.mxu0 0.0
    %157 = vmatpush1.msra.mxu0 0.0
    %158 = vmatprep.subr.mxu0 0.0
    %159 = vmatpush1.msra.mxu0 0.0
    %160 = vmatprep.subr.mxu0 0.0
    %161 = vmatpush1.msra.mxu0 0.0
    %162 = vmatprep.subr.mxu0 0.0
    %163 = vmatpush1.msra.mxu0 0.0
    %164 = vmatprep.subr.mxu0 0.0
    %165 = vmatpush1.msra.mxu0 0.0
    %166 = vmatprep.subr.mxu0 0.0
    %167 = vmatpush1.msra.mxu0 0.0
    %168 = vmatprep.subr.mxu0 0.0
    %169 = vmatpush1.msra.mxu0 0.0
    %170 = vmatprep.subr.mxu0 0.0
    %171 = vmatpush1.msra.mxu0 0.0
    %172 = vmatprep.subr.mxu0 0.0
    %173 = vmatpush1.msra.mxu0 0.0
    %174 = vmatprep.subr.mxu0 0.0
    %175 = vmatpush1.msra.mxu0 0.0
    %176 = vmatprep.subr.mxu0 0.0
    %177 = vmatpush1.msra.mxu0 0.0
    %178 = vmatprep.subr.mxu0 0.0
    %179 = vmatpush1.msra.mxu0 0.0
    %180 = vmatprep.subr.mxu0 0.0
    %181 = vmatpush1.msra.mxu0 0.0
    %182 = vmatprep.mubr.f32.mxu0 0.0
    %183 = vmatmul.mubr.f32.gmra.mrb[0].mxu0 %v116
    %v184 = vpop.f32.mrb[0].mxu0
    %v185 = vadd.f32 0.0, %v184
    %v186 = vpop.f32.mrb[0].mxu0
    %187 = vdwg.mxu0
    %v188 = vmul.f32 %v185, 0.0625
    %v189 = vld [vmem:[#allocation2] sm:$0x1]
    %v191 = vlaneseq
    %v192 = vshrl.u32 %v191, 7
    %v193 = vsub.s32 0, %v192
    %v194 = vrot.slane %v189, %v193
    %v196 = vadd.f32 %v188, %v194
    %v197 = vld [vmem:[%s7] sm:$0xff]
    %v198 = vld [vmem:[%s7 + $0x8] sm:$0xff]
    %v199 = vld [vmem:[%s7 + $0x10] sm:$0xff]
    %v200 = vld [vmem:[%s7 + $0x18] sm:$0xff]
    %v201 = vld [vmem:[%s8] sm:$0x1]
    %v203 = vlaneseq
    %v204 = vshrl.u32 %v203, 7
    %v205 = vsub.s32 0, %v204
    %v206 = vrot.slane %v201, %v205
    %v209 = vsel %vm114, %v196, 0
    %211 = vmatprep.subr.mxu0 0.0
    %212 = vmatpush1.msra.mxu0 %v197
    %213 = vmatprep.subr.mxu0 0.0
    %214 = vmatpush1.msra.mxu0 %v198
    %215 = vmatprep.subr.mxu0 0.0
    %216 = vmatpush1.msra.mxu0 %v199
    %217 = vmatprep.subr.mxu0 0.0
    %218 = vmatpush1.msra.mxu0 %v200
    %219 = vmatprep.subr.mxu0 0.0
    %220 = vmatpush1.msra.mxu0 0.0
    %221 = vmatprep.subr.mxu0 0.0
    %222 = vmatpush1.msra.mxu0 0.0
    %223 = vmatprep.subr.mxu0 0.0
    %224 = vmatpush1.msra.mxu0 0.0
    %225 = vmatprep.subr.mxu0 0.0
    %226 = vmatpush1.msra.mxu0 0.0
    %227 = vmatprep.subr.mxu0 0.0
    %228 = vmatpush1.msra.mxu0 0.0
    %229 = vmatprep.subr.mxu0 0.0
    %230 = vmatpush1.msra.mxu0 0.0
    %231 = vmatprep.subr.mxu0 0.0
    %232 = vmatpush1.msra.mxu0 0.0
    %233 = vmatprep.subr.mxu0 0.0
    %234 = vmatpush1.msra.mxu0 0.0
    %235 = vmatprep.subr.mxu0 0.0
    %236 = vmatpush1.msra.mxu0 0.0
    %237 = vmatprep.subr.mxu0 0.0
    %238 = vmatpush1.msra.mxu0 0.0
    %239 = vmatprep.subr.mxu0 0.0
    %240 = vmatpush1.msra.mxu0 0.0
    %241 = vmatprep.subr.mxu0 0.0
    %242 = vmatpush1.msra.mxu0 0.0
    %243 = vmatprep.subr.mxu0 0.0
    %244 = vmatpush1.msra.mxu0 0.0
    %245 = vmatprep.subr.mxu0 0.0
    %246 = vmatpush1.msra.mxu0 0.0
    %247 = vmatprep.subr.mxu0 0.0
    %248 = vmatpush1.msra.mxu0 0.0
    %249 = vmatprep.subr.mxu0 0.0
    %250 = vmatpush1.msra.mxu0 0.0
    %251 = vmatprep.subr.mxu0 0.0
    %252 = vmatpush1.msra.mxu0 0.0
    %253 = vmatprep.subr.mxu0 0.0
    %254 = vmatpush1.msra.mxu0 0.0
    %255 = vmatprep.subr.mxu0 0.0
    %256 = vmatpush1.msra.mxu0 0.0
    %257 = vmatprep.subr.mxu0 0.0
    %258 = vmatpush1.msra.mxu0 0.0
    %259 = vmatprep.subr.mxu0 0.0
    %260 = vmatpush1.msra.mxu0 0.0
    %261 = vmatprep.subr.mxu0 0.0
    %262 = vmatpush1.msra.mxu0 0.0
    %263 = vmatprep.subr.mxu0 0.0
    %264 = vmatpush1.msra.mxu0 0.0
    %265 = vmatprep.subr.mxu0 0.0
    %266 = vmatpush1.msra.mxu0 0.0
    %267 = vmatprep.subr.mxu0 0.0
    %268 = vmatpush1.msra.mxu0 0.0
    %269 = vmatprep.subr.mxu0 0.0
    %270 = vmatpush1.msra.mxu0 0.0
    %271 = vmatprep.subr.mxu0 0.0
    %272 = vmatpush1.msra.mxu0 0.0
    %273 = vmatprep.subr.mxu0 0.0
    %274 = vmatpush1.msra.mxu0 0.0
    %275 = vmatprep.mubr.f32.mxu0 0.0
    %276 = vmatmul.mubr.f32.gmra.mrb[0].mxu0 %v209
    %v277 = vpop.f32.mrb[0].mxu0
    %v278 = vadd.f32 %v206, %v277
    %v279 = vpop.f32.mrb[0].mxu0
    %280 = vdwg.mxu0
    %v281 = vmul.f32 %v278, 0.35355338
    %v282 = vld [vmem:[%s9] sm:$0xff]
    %v283 = vld [vmem:[%s9 + $0x8] sm:$0xff]
    %v284 = vld [vmem:[%s9 + $0x10] sm:$0xff]
    %v285 = vld [vmem:[%s9 + $0x18] sm:$0xff]
    %v286 = vld [vmem:[%s10] sm:$0x1]
    %v288 = vlaneseq
    %v289 = vshrl.u32 %v288, 7
    %v290 = vsub.s32 0, %v289
    %v291 = vrot.slane %v286, %v290
    %293 = vmatprep.subr.mxu0 0.0
    %294 = vmatpush1.msra.mxu0 %v282
    %295 = vmatprep.subr.mxu0 0.0
    %296 = vmatpush1.msra.mxu0 %v283
    %297 = vmatprep.subr.mxu0 0.0
    %298 = vmatpush1.msra.mxu0 %v284
    %299 = vmatprep.subr.mxu0 0.0
    %300 = vmatpush1.msra.mxu0 %v285
    %301 = vmatprep.subr.mxu0 0.0
    %302 = vmatpush1.msra.mxu0 0.0
    %303 = vmatprep.subr.mxu0 0.0
    %304 = vmatpush1.msra.mxu0 0.0
    %305 = vmatprep.subr.mxu0 0.0
    %306 = vmatpush1.msra.mxu0 0.0
    %307 = vmatprep.subr.mxu0 0.0
    %308 = vmatpush1.msra.mxu0 0.0
    %309 = vmatprep.subr.mxu0 0.0
    %310 = vmatpush1.msra.mxu0 0.0
    %311 = vmatprep.subr.mxu0 0.0
    %312 = vmatpush1.msra.mxu0 0.0
    %313 = vmatprep.subr.mxu0 0.0
    %314 = vmatpush1.msra.mxu0 0.0
    %315 = vmatprep.subr.mxu0 0.0
    %316 = vmatpush1.msra.mxu0 0.0
    %317 = vmatprep.subr.mxu0 0.0
    %318 = vmatpush1.msra.mxu0 0.0
    %319 = vmatprep.subr.mxu0 0.0
    %320 = vmatpush1.msra.mxu0 0.0
    %321 = vmatprep.subr.mxu0 0.0
    %322 = vmatpush1.msra.mxu0 0.0
    %323 = vmatprep.subr.mxu0 0.0
    %324 = vmatpush1.msra.mxu0 0.0
    %325 = vmatprep.subr.mxu0 0.0
    %326 = vmatpush1.msra.mxu0 0.0
    %327 = vmatprep.subr.mxu0 0.0
    %328 = vmatpush1.msra.mxu0 0.0
    %329 = vmatprep.subr.mxu0 0.0
    %330 = vmatpush1.msra.mxu0 0.0
    %331 = vmatprep.subr.mxu0 0.0
    %332 = vmatpush1.msra.mxu0 0.0
    %333 = vmatprep.subr.mxu0 0.0
    %334 = vmatpush1.msra.mxu0 0.0
    %335 = vmatprep.subr.mxu0 0.0
    %336 = vmatpush1.msra.mxu0 0.0
    %337 = vmatprep.subr.mxu0 0.0
    %338 = vmatpush1.msra.mxu0 0.0
    %339 = vmatprep.subr.mxu0 0.0
    %340 = vmatpush1.msra.mxu0 0.0
    %341 = vmatprep.subr.mxu0 0.0
    %342 = vmatpush1.msra.mxu0 0.0
    %343 = vmatprep.subr.mxu0 0.0
    %344 = vmatpush1.msra.mxu0 0.0
    %345 = vmatprep.subr.mxu0 0.0
    %346 = vmatpush1.msra.mxu0 0.0
    %347 = vmatprep.subr.mxu0 0.0
    %348 = vmatpush1.msra.mxu0 0.0
    %349 = vmatprep.subr.mxu0 0.0
    %350 = vmatpush1.msra.mxu0 0.0
    %351 = vmatprep.subr.mxu0 0.0
    %352 = vmatpush1.msra.mxu0 0.0
    %353 = vmatprep.subr.mxu0 0.0
    %354 = vmatpush1.msra.mxu0 0.0
    %355 = vmatprep.subr.mxu0 0.0
    %356 = vmatpush1.msra.mxu0 0.0
    %357 = vmatprep.mubr.f32.mxu0 0.0
    %358 = vmatmul.mubr.f32.gmra.mrb[0].mxu0 %v209
    %v359 = vpop.f32.mrb[0].mxu0
    %v360 = vadd.f32 %v291, %v359
    %v361 = vpop.f32.mrb[0].mxu0
    %362 = vdwg.mxu0
    %v363 = vld [vmem:[%s11] sm:$0xff]
    %v364 = vld [vmem:[%s11 + $0x8] sm:$0xff]
    %v365 = vld [vmem:[%s11 + $0x10] sm:$0xff]
    %v366 = vld [vmem:[%s11 + $0x18] sm:$0xff]
    %v367 = vld [vmem:[%s12] sm:$0x1]
    %v369 = vlaneseq
    %v370 = vshrl.u32 %v369, 7
    %v371 = vsub.s32 0, %v370
    %v372 = vrot.slane %v367, %v371
    %374 = vmatprep.subr.mxu0 0.0
    %375 = vmatpush1.msra.mxu0 %v363
    %376 = vmatprep.subr.mxu0 0.0
    %377 = vmatpush1.msra.mxu0 %v364
    %378 = vmatprep.subr.mxu0 0.0
    %379 = vmatpush1.msra.mxu0 %v365
    %380 = vmatprep.subr.mxu0 0.0
    %381 = vmatpush1.msra.mxu0 %v366
    %382 = vmatprep.subr.mxu0 0.0
    %383 = vmatpush1.msra.mxu0 0.0
    %384 = vmatprep.subr.mxu0 0.0
    %385 = vmatpush1.msra.mxu0 0.0
    %386 = vmatprep.subr.mxu0 0.0
    %387 = vmatpush1.msra.mxu0 0.0
    %388 = vmatprep.subr.mxu0 0.0
    %389 = vmatpush1.msra.mxu0 0.0
    %390 = vmatprep.subr.mxu0 0.0
    %391 = vmatpush1.msra.mxu0 0.0
    %392 = vmatprep.subr.mxu0 0.0
    %393 = vmatpush1.msra.mxu0 0.0
    %394 = vmatprep.subr.mxu0 0.0
    %395 = vmatpush1.msra.mxu0 0.0
    %396 = vmatprep.subr.mxu0 0.0
    %397 = vmatpush1.msra.mxu0 0.0
    %398 = vmatprep.subr.mxu0 0.0
    %399 = vmatpush1.msra.mxu0 0.0
    %400 = vmatprep.subr.mxu0 0.0
    %401 = vmatpush1.msra.mxu0 0.0
    %402 = vmatprep.subr.mxu0 0.0
    %403 = vmatpush1.msra.mxu0 0.0
    %404 = vmatprep.subr.mxu0 0.0
    %405 = vmatpush1.msra.mxu0 0.0
    %406 = vmatprep.subr.mxu0 0.0
    %407 = vmatpush1.msra.mxu0 0.0
    %408 = vmatprep.subr.mxu0 0.0
    %409 = vmatpush1.msra.mxu0 0.0
    %410 = vmatprep.subr.mxu0 0.0
    %411 = vmatpush1.msra.mxu0 0.0
    %412 = vmatprep.subr.mxu0 0.0
    %413 = vmatpush1.msra.mxu0 0.0
    %414 = vmatprep.subr.mxu0 0.0
    %415 = vmatpush1.msra.mxu0 0.0
    %416 = vmatprep.subr.mxu0 0.0
    %417 = vmatpush1.msra.mxu0 0.0
    %418 = vmatprep.subr.mxu0 0.0
    %419 = vmatpush1.msra.mxu0 0.0
    %420 = vmatprep.subr.mxu0 0.0
    %421 = vmatpush1.msra.mxu0 0.0
    %422 = vmatprep.subr.mxu0 0.0
    %423 = vmatpush1.msra.mxu0 0.0
    %424 = vmatprep.subr.mxu0 0.0
    %425 = vmatpush1.msra.mxu0 0.0
    %426 = vmatprep.subr.mxu0 0.0
    %427 = vmatpush1.msra.mxu0 0.0
    %428 = vmatprep.subr.mxu0 0.0
    %429 = vmatpush1.msra.mxu0 0.0
    %430 = vmatprep.subr.mxu0 0.0
    %431 = vmatpush1.msra.mxu0 0.0
    %432 = vmatprep.subr.mxu0 0.0
    %433 = vmatpush1.msra.mxu0 0.0
    %434 = vmatprep.subr.mxu0 0.0
    %435 = vmatpush1.msra.mxu0 0.0
    %436 = vmatprep.subr.mxu0 0.0
    %437 = vmatpush1.msra.mxu0 0.0
    %438 = vmatprep.mubr.f32.mxu0 0.0
    %439 = vmatmul.mubr.f32.gmra.mrb[0].mxu0 %v209
    %v440 = vpop.f32.mrb[0].mxu0
    %v441 = vadd.f32 %v372, %v440
    %v442 = vpop.f32.mrb[0].mxu0
    %443 = vdwg.mxu0
    %v444 = vld [vmem:[#allocation5] sm:$0xff]
    %v445 = vld [vmem:[#allocation5 + $0x8] sm:$0xff]
    %v446 = vadd.f32 %v100, %v444
    %v447 = vadd.f32 %v101, %v445
    %v448 = vadd.f32 %v102, %v444
    %v449 = vadd.f32 %v103, %v445
    %v451 = vsel %vm114, %v446, 0
    %v454 = vsel %vm114, %v447, 0
    %v457 = vsel %vm114, %v448, 0
    %v460 = vsel %vm114, %v449, 0
    %462 = vmatprep.subr.mxu0 0.0
    %463 = vmatpush1.msra.mxu0 %v282
    %464 = vmatprep.subr.mxu0 0.0
    %465 = vmatpush1.msra.mxu0 %v283
    %466 = vmatprep.subr.mxu0 0.0
    %467 = vmatpush1.msra.mxu0 %v284
    %468 = vmatprep.subr.mxu0 0.0
    %469 = vmatpush1.msra.mxu0 %v285
    %470 = vmatprep.subr.mxu0 0.0
    %471 = vmatpush1.msra.mxu0 0.0
    %472 = vmatprep.subr.mxu0 0.0
    %473 = vmatpush1.msra.mxu0 0.0
    %474 = vmatprep.subr.mxu0 0.0
    %475 = vmatpush1.msra.mxu0 0.0
    %476 = vmatprep.subr.mxu0 0.0
    %477 = vmatpush1.msra.mxu0 0.0
    %478 = vmatprep.subr.mxu0 0.0
    %479 = vmatpush1.msra.mxu0 0.0
    %480 = vmatprep.subr.mxu0 0.0
    %481 = vmatpush1.msra.mxu0 0.0
    %482 = vmatprep.subr.mxu0 0.0
    %483 = vmatpush1.msra.mxu0 0.0
    %484 = vmatprep.subr.mxu0 0.0
    %485 = vmatpush1.msra.mxu0 0.0
    %486 = vmatprep.subr.mxu0 0.0
    %487 = vmatpush1.msra.mxu0 0.0
    %488 = vmatprep.subr.mxu0 0.0
    %489 = vmatpush1.msra.mxu0 0.0
    %490 = vmatprep.subr.mxu0 0.0
    %491 = vmatpush1.msra.mxu0 0.0
    %492 = vmatprep.subr.mxu0 0.0
    %493 = vmatpush1.msra.mxu0 0.0
    %494 = vmatprep.subr.mxu0 0.0
    %495 = vmatpush1.msra.mxu0 0.0
    %496 = vmatprep.subr.mxu0 0.0
    %497 = vmatpush1.msra.mxu0 0.0
    %498 = vmatprep.subr.mxu0 0.0
    %499 = vmatpush1.msra.mxu0 0.0
    %500 = vmatprep.subr.mxu0 0.0
    %501 = vmatpush1.msra.mxu0 0.0
    %502 = vmatprep.subr.mxu0 0.0
    %503 = vmatpush1.msra.mxu0 0.0
    %504 = vmatprep.subr.mxu0 0.0
    %505 = vmatpush1.msra.mxu0 0.0
    %506 = vmatprep.subr.mxu0 0.0
    %507 = vmatpush1.msra.mxu0 0.0
    %508 = vmatprep.subr.mxu0 0.0
    %509 = vmatpush1.msra.mxu0 0.0
    %510 = vmatprep.subr.mxu0 0.0
    %511 = vmatpush1.msra.mxu0 0.0
    %512 = vmatprep.subr.mxu0 0.0
    %513 = vmatpush1.msra.mxu0 0.0
    %514 = vmatprep.subr.mxu0 0.0
    %515 = vmatpush1.msra.mxu0 0.0
    %516 = vmatprep.subr.mxu0 0.0
    %517 = vmatpush1.msra.mxu0 0.0
    %518 = vmatprep.subr.mxu0 0.0
    %519 = vmatpush1.msra.mxu0 0.0
    %520 = vmatprep.subr.mxu0 0.0
    %521 = vmatpush1.msra.mxu0 0.0
    %522 = vmatprep.subr.mxu0 0.0
    %523 = vmatpush1.msra.mxu0 0.0
    %524 = vmatprep.subr.mxu0 0.0
    %525 = vmatpush1.msra.mxu0 0.0
    %526 = vmatprep.mubr.f32.mxu0 0.0
    %527 = vmatmul.mubr.f32.gmra.mrb[0].mxu0 %v451
    %v528 = vpop.f32.mrb[0].mxu0
    %v529 = vadd.f32 %v291, %v528
    %v530 = vpop.f32.mrb[0].mxu0
    %531 = vmatprep.mubr.f32.mxu0 0.0
    %532 = vmatmul.mubr.f32.gmra.mrb[0].mxu0 %v454
    %v533 = vpop.f32.mrb[0].mxu0
    %v534 = vadd.f32 %v291, %v533
    %v535 = vpop.f32.mrb[0].mxu0
    %536 = vmatprep.mubr.f32.mxu0 0.0
    %537 = vmatmul.mubr.f32.gmra.mrb[0].mxu0 %v457
    %v538 = vpop.f32.mrb[0].mxu0
    %v539 = vadd.f32 %v291, %v538
    %v540 = vpop.f32.mrb[0].mxu0
    %541 = vmatprep.mubr.f32.mxu0 0.0
    %542 = vmatmul.mubr.f32.gmra.mrb[0].mxu0 %v460
    %v543 = vpop.f32.mrb[0].mxu0
    %v544 = vadd.f32 %v291, %v543
    %v545 = vpop.f32.mrb[0].mxu0
    %546 = vdwg.mxu0
    %547 = vmatprep.subr.mxu0 0.0
    %548 = vmatpush1.msra.mxu0 %v363
    %549 = vmatprep.subr.mxu0 0.0
    %550 = vmatpush1.msra.mxu0 %v364
    %551 = vmatprep.subr.mxu0 0.0
    %552 = vmatpush1.msra.mxu0 %v365
    %553 = vmatprep.subr.mxu0 0.0
    %554 = vmatpush1.msra.mxu0 %v366
    %555 = vmatprep.subr.mxu0 0.0
    %556 = vmatpush1.msra.mxu0 0.0
    %557 = vmatprep.subr.mxu0 0.0
    %558 = vmatpush1.msra.mxu0 0.0
    %559 = vmatprep.subr.mxu0 0.0
    %560 = vmatpush1.msra.mxu0 0.0
    %561 = vmatprep.subr.mxu0 0.0
    %562 = vmatpush1.msra.mxu0 0.0
    %563 = vmatprep.subr.mxu0 0.0
    %564 = vmatpush1.msra.mxu0 0.0
    %565 = vmatprep.subr.mxu0 0.0
    %566 = vmatpush1.msra.mxu0 0.0
    %567 = vmatprep.subr.mxu0 0.0
    %568 = vmatpush1.msra.mxu0 0.0
    %569 = vmatprep.subr.mxu0 0.0
    %570 = vmatpush1.msra.mxu0 0.0
    %571 = vmatprep.subr.mxu0 0.0
    %572 = vmatpush1.msra.mxu0 0.0
    %573 = vmatprep.subr.mxu0 0.0
    %574 = vmatpush1.msra.mxu0 0.0
    %575 = vmatprep.subr.mxu0 0.0
    %576 = vmatpush1.msra.mxu0 0.0
    %577 = vmatprep.subr.mxu0 0.0
    %578 = vmatpush1.msra.mxu0 0.0
    %579 = vmatprep.subr.mxu0 0.0
    %580 = vmatpush1.msra.mxu0 0.0
    %581 = vmatprep.subr.mxu0 0.0
    %582 = vmatpush1.msra.mxu0 0.0
    %583 = vmatprep.subr.mxu0 0.0
    %584 = vmatpush1.msra.mxu0 0.0
    %585 = vmatprep.subr.mxu0 0.0
    %586 = vmatpush1.msra.mxu0 0.0
    %587 = vmatprep.subr.mxu0 0.0
    %588 = vmatpush1.msra.mxu0 0.0
    %589 = vmatprep.subr.mxu0 0.0
    %590 = vmatpush1.msra.mxu0 0.0
    %591 = vmatprep.subr.mxu0 0.0
    %592 = vmatpush1.msra.mxu0 0.0
    %593 = vmatprep.subr.mxu0 0.0
    %594 = vmatpush1.msra.mxu0 0.0
    %595 = vmatprep.subr.mxu0 0.0
    %596 = vmatpush1.msra.mxu0 0.0
    %597 = vmatprep.subr.mxu0 0.0
    %598 = vmatpush1.msra.mxu0 0.0
    %599 = vmatprep.subr.mxu0 0.0
    %600 = vmatpush1.msra.mxu0 0.0
    %601 = vmatprep.subr.mxu0 0.0
    %602 = vmatpush1.msra.mxu0 0.0
    %603 = vmatprep.subr.mxu0 0.0
    %604 = vmatpush1.msra.mxu0 0.0
    %605 = vmatprep.subr.mxu0 0.0
    %606 = vmatpush1.msra.mxu0 0.0
    %607 = vmatprep.subr.mxu0 0.0
    %608 = vmatpush1.msra.mxu0 0.0
    %609 = vmatprep.subr.mxu0 0.0
    %610 = vmatpush1.msra.mxu0 0.0
    %611 = vmatprep.mubr.f32.mxu0 0.0
    %612 = vmatmul.mubr.f32.gmra.mrb[0].mxu0 %v451
    %v613 = vpop.f32.mrb[0].mxu0
    %v614 = vadd.f32 %v372, %v613
    %v615 = vpop.f32.mrb[0].mxu0
    %616 = vmatprep.mubr.f32.mxu0 0.0
    %617 = vmatmul.mubr.f32.gmra.mrb[0].mxu0 %v454
    %v618 = vpop.f32.mrb[0].mxu0
    %v619 = vadd.f32 %v372, %v618
    %v620 = vpop.f32.mrb[0].mxu0
    %621 = vmatprep.mubr.f32.mxu0 0.0
    %622 = vmatmul.mubr.f32.gmra.mrb[0].mxu0 %v457
    %v623 = vpop.f32.mrb[0].mxu0
    %v624 = vadd.f32 %v372, %v623
    %v625 = vpop.f32.mrb[0].mxu0
    %626 = vmatprep.mubr.f32.mxu0 0.0
    %627 = vmatmul.mubr.f32.gmra.mrb[0].mxu0 %v460
    %v628 = vpop.f32.mrb[0].mxu0
    %v629 = vadd.f32 %v372, %v628
    %v630 = vpop.f32.mrb[0].mxu0
    %631 = vdwg.mxu0
    %vm632 = vcmask 15360
    %v634 = vsel %vm632, %v105, 0
    %v637 = vsel %vm632, %v106, 0
    %v640 = vsel %vm632, %v107, 0
    %v643 = vsel %vm632, %v108, 0
    %vm645 = vcmask 1041408
    %v647 = vsel %vm645, %v281, 0
    %649 = vmatprep.subr.mxu0 0.0
    %650 = vmatpush1.msra.mxu0 %v647
    %651 = vmatprep.subr.mxu0 0.0
    %652 = vmatpush1.msra.mxu0 0.0
    %653 = vmatprep.subr.mxu0 0.0
    %654 = vmatpush1.msra.mxu0 0.0
    %655 = vmatprep.subr.mxu0 0.0
    %656 = vmatpush1.msra.mxu0 0.0
    %657 = vmatprep.subr.mxu0 0.0
    %658 = vmatpush1.msra.mxu0 0.0
    %659 = vmatprep.subr.mxu0 0.0
    %660 = vmatpush1.msra.mxu0 0.0
    %661 = vmatprep.subr.mxu0 0.0
    %662 = vmatpush1.msra.mxu0 0.0
    %663 = vmatprep.subr.mxu0 0.0
    %664 = vmatpush1.msra.mxu0 0.0
    %665 = vmatprep.subr.mxu0 0.0
    %666 = vmatpush1.msra.mxu0 0.0
    %667 = vmatprep.subr.mxu0 0.0
    %668 = vmatpush1.msra.mxu0 0.0
    %669 = vmatprep.subr.mxu0 0.0
    %670 = vmatpush1.msra.mxu0 0.0
    %671 = vmatprep.subr.mxu0 0.0
    %672 = vmatpush1.msra.mxu0 0.0
    %673 = vmatprep.subr.mxu0 0.0
    %674 = vmatpush1.msra.mxu0 0.0
    %675 = vmatprep.subr.mxu0 0.0
    %676 = vmatpush1.msra.mxu0 0.0
    %677 = vmatprep.subr.mxu0 0.0
    %678 = vmatpush1.msra.mxu0 0.0
    %679 = vmatprep.subr.mxu0 0.0
    %680 = vmatpush1.msra.mxu0 0.0
    %681 = vmatprep.subr.mxu0 0.0
    %682 = vmatpush1.msra.mxu0 0.0
    %683 = vmatprep.subr.mxu0 0.0
    %684 = vmatpush1.msra.mxu0 0.0
    %685 = vmatprep.subr.mxu0 0.0
    %686 = vmatpush1.msra.mxu0 0.0
    %687 = vmatprep.subr.mxu0 0.0
    %688 = vmatpush1.msra.mxu0 0.0
    %689 = vmatprep.subr.mxu0 0.0
    %690 = vmatpush1.msra.mxu0 0.0
    %691 = vmatprep.subr.mxu0 0.0
    %692 = vmatpush1.msra.mxu0 0.0
    %693 = vmatprep.subr.mxu0 0.0
    %694 = vmatpush1.msra.mxu0 0.0
    %695 = vmatprep.subr.mxu0 0.0
    %696 = vmatpush1.msra.mxu0 0.0
    %697 = vmatprep.subr.mxu0 0.0
    %698 = vmatpush1.msra.mxu0 0.0
    %699 = vmatprep.subr.mxu0 0.0
    %700 = vmatpush1.msra.mxu0 0.0
    %701 = vmatprep.subr.mxu0 0.0
    %702 = vmatpush1.msra.mxu0 0.0
    %703 = vmatprep.subr.mxu0 0.0
    %704 = vmatpush1.msra.mxu0 0.0
    %705 = vmatprep.subr.mxu0 0.0
    %706 = vmatpush1.msra.mxu0 0.0
    %707 = vmatprep.subr.mxu0 0.0
    %708 = vmatpush1.msra.mxu0 0.0
    %709 = vmatprep.subr.mxu0 0.0
    %710 = vmatpush1.msra.mxu0 0.0
    %711 = vmatprep.subr.mxu0 0.0
    %712 = vmatpush1.msra.mxu0 0.0
    %713 = vmatprep.mubr.f32.mxu0 0.0
    %714 = vmatmul.mubr.f32.gmra.mrb[0].mxu0 %v634
    %v715 = vpop.f32.mrb[0].mxu0
    %v716 = vadd.f32 0.0, %v715
    %v717 = vpop.f32.mrb[0].mxu0
    %718 = vmatprep.mubr.f32.mxu0 0.0
    %719 = vmatmul.mubr.f32.gmra.mrb[0].mxu0 %v637
    %v720 = vpop.f32.mrb[0].mxu0
    %v721 = vadd.f32 0.0, %v720
    %v722 = vpop.f32.mrb[0].mxu0
    %723 = vmatprep.mubr.f32.mxu0 0.0
    %724 = vmatmul.mubr.f32.gmra.mrb[0].mxu0 %v640
    %v725 = vpop.f32.mrb[0].mxu0
    %v726 = vadd.f32 0.0, %v725
    %v727 = vpop.f32.mrb[0].mxu0
    %728 = vmatprep.mubr.f32.mxu0 0.0
    %729 = vmatmul.mubr.f32.gmra.mrb[0].mxu0 %v643
    %v730 = vpop.f32.mrb[0].mxu0
    %v731 = vadd.f32 0.0, %v730
    %v732 = vpop.f32.mrb[0].mxu0
    %733 = vdwg.mxu0
    %v734 = vmul.f32 %v529, %v716
    %v735 = vmul.f32 %v534, %v721
    %v736 = vmul.f32 %v539, %v726
    %v737 = vmul.f32 %v544, %v731
    %v739 = vsel %vm114, %v734, 0
    %v742 = vsel %vm114, %v735, 0
    %v745 = vsel %vm114, %v736, 0
    %v748 = vsel %vm114, %v737, 0
    %750 = vmatprep.subr.mxu0 0.0
    %751 = vmatpush1.msra.mxu0 %v109
    %752 = vmatprep.subr.mxu0 0.0
    %753 = vmatpush1.msra.mxu0 %v110
    %754 = vmatprep.subr.mxu0 0.0
    %755 = vmatpush1.msra.mxu0 %v111
    %756 = vmatprep.subr.mxu0 0.0
    %757 = vmatpush1.msra.mxu0 %v112
    %758 = vmatprep.subr.mxu0 0.0
    %759 = vmatpush1.msra.mxu0 0.0
    %760 = vmatprep.subr.mxu0 0.0
    %761 = vmatpush1.msra.mxu0 0.0
    %762 = vmatprep.subr.mxu0 0.0
    %763 = vmatpush1.msra.mxu0 0.0
    %764 = vmatprep.subr.mxu0 0.0
    %765 = vmatpush1.msra.mxu0 0.0
    %766 = vmatprep.subr.mxu0 0.0
    %767 = vmatpush1.msra.mxu0 0.0
    %768 = vmatprep.subr.mxu0 0.0
    %769 = vmatpush1.msra.mxu0 0.0
    %770 = vmatprep.subr.mxu0 0.0
    %771 = vmatpush1.msra.mxu0 0.0
    %772 = vmatprep.subr.mxu0 0.0
    %773 = vmatpush1.msra.mxu0 0.0
    %774 = vmatprep.subr.mxu0 0.0
    %775 = vmatpush1.msra.mxu0 0.0
    %776 = vmatprep.subr.mxu0 0.0
    %777 = vmatpush1.msra.mxu0 0.0
    %778 = vmatprep.subr.mxu0 0.0
    %779 = vmatpush1.msra.mxu0 0.0
    %780 = vmatprep.subr.mxu0 0.0
    %781 = vmatpush1.msra.mxu0 0.0
    %782 = vmatprep.subr.mxu0 0.0
    %783 = vmatpush1.msra.mxu0 0.0
    %784 = vmatprep.subr.mxu0 0.0
    %785 = vmatpush1.msra.mxu0 0.0
    %786 = vmatprep.subr.mxu0 0.0
    %787 = vmatpush1.msra.mxu0 0.0
    %788 = vmatprep.subr.mxu0 0.0
    %789 = vmatpush1.msra.mxu0 0.0
    %790 = vmatprep.subr.mxu0 0.0
    %791 = vmatpush1.msra.mxu0 0.0
    %792 = vmatprep.subr.mxu0 0.0
    %793 = vmatpush1.msra.mxu0 0.0
    %794 = vmatprep.subr.mxu0 0.0
    %795 = vmatpush1.msra.mxu0 0.0
    %796 = vmatprep.subr.mxu0 0.0
    %797 = vmatpush1.msra.mxu0 0.0
    %798 = vmatprep.subr.mxu0 0.0
    %799 = vmatpush1.msra.mxu0 0.0
    %800 = vmatprep.subr.mxu0 0.0
    %801 = vmatpush1.msra.mxu0 0.0
    %802 = vmatprep.subr.mxu0 0.0
    %803 = vmatpush1.msra.mxu0 0.0
    %804 = vmatprep.subr.mxu0 0.0
    %805 = vmatpush1.msra.mxu0 0.0
    %806 = vmatprep.subr.mxu0 0.0
    %807 = vmatpush1.msra.mxu0 0.0
    %808 = vmatprep.subr.mxu0 0.0
    %809 = vmatpush1.msra.mxu0 0.0
    %810 = vmatprep.subr.mxu0 0.0
    %811 = vmatpush1.msra.mxu0 0.0
    %812 = vmatprep.subr.mxu0 0.0
    %813 = vmatpush1.msra.mxu0 0.0
    %814 = vmatprep.mubr.f32.mxu0 0.0
    %815 = vmatmul.mubr.f32.gmra.mrb[0].mxu0 %v739
    %v816 = vpop.f32.mrb[0].mxu0
    %v817 = vadd.f32 0.0, %v816
    %v818 = vpop.f32.mrb[0].mxu0
    %819 = vmatprep.mubr.f32.mxu0 0.0
    %820 = vmatmul.mubr.f32.gmra.mrb[0].mxu0 %v742
    %v821 = vpop.f32.mrb[0].mxu0
    %v822 = vadd.f32 0.0, %v821
    %v823 = vpop.f32.mrb[0].mxu0
    %824 = vmatprep.mubr.f32.mxu0 0.0
    %825 = vmatmul.mubr.f32.gmra.mrb[0].mxu0 %v745
    %v826 = vpop.f32.mrb[0].mxu0
    %v827 = vadd.f32 0.0, %v826
    %v828 = vpop.f32.mrb[0].mxu0
    %829 = vmatprep.mubr.f32.mxu0 0.0
    %830 = vmatmul.mubr.f32.gmra.mrb[0].mxu0 %v748
    %v831 = vpop.f32.mrb[0].mxu0
    %v832 = vadd.f32 0.0, %v831
    %v833 = vpop.f32.mrb[0].mxu0
    %834 = vdwg.mxu0
    %v835 = vmul.f32 %v360, %v281
    %v837 = vsel %vm114, %v835, 0
    %839 = vmatprep.subr.mxu0 0.0
    %840 = vmatpush1.msra.mxu0 %v109
    %841 = vmatprep.subr.mxu0 0.0
    %842 = vmatpush1.msra.mxu0 %v110
    %843 = vmatprep.subr.mxu0 0.0
    %844 = vmatpush1.msra.mxu0 %v111
    %845 = vmatprep.subr.mxu0 0.0
    %846 = vmatpush1.msra.mxu0 %v112
    %847 = vmatprep.subr.mxu0 0.0
    %848 = vmatpush1.msra.mxu0 0.0
    %849 = vmatprep.subr.mxu0 0.0
    %850 = vmatpush1.msra.mxu0 0.0
    %851 = vmatprep.subr.mxu0 0.0
    %852 = vmatpush1.msra.mxu0 0.0
    %853 = vmatprep.subr.mxu0 0.0
    %854 = vmatpush1.msra.mxu0 0.0
    %855 = vmatprep.subr.mxu0 0.0
    %856 = vmatpush1.msra.mxu0 0.0
    %857 = vmatprep.subr.mxu0 0.0
    %858 = vmatpush1.msra.mxu0 0.0
    %859 = vmatprep.subr.mxu0 0.0
    %860 = vmatpush1.msra.mxu0 0.0
    %861 = vmatprep.subr.mxu0 0.0
    %862 = vmatpush1.msra.mxu0 0.0
    %863 = vmatprep.subr.mxu0 0.0
    %864 = vmatpush1.msra.mxu0 0.0
    %865 = vmatprep.subr.mxu0 0.0
    %866 = vmatpush1.msra.mxu0 0.0
    %867 = vmatprep.subr.mxu0 0.0
    %868 = vmatpush1.msra.mxu0 0.0
    %869 = vmatprep.subr.mxu0 0.0
    %870 = vmatpush1.msra.mxu0 0.0
    %871 = vmatprep.subr.mxu0 0.0
    %872 = vmatpush1.msra.mxu0 0.0
    %873 = vmatprep.subr.mxu0 0.0
    %874 = vmatpush1.msra.mxu0 0.0
    %875 = vmatprep.subr.mxu0 0.0
    %876 = vmatpush1.msra.mxu0 0.0
    %877 = vmatprep.subr.mxu0 0.0
    %878 = vmatpush1.msra.mxu0 0.0
    %879 = vmatprep.subr.mxu0 0.0
    %880 = vmatpush1.msra.mxu0 0.0
    %881 = vmatprep.subr.mxu0 0.0
    %882 = vmatpush1.msra.mxu0 0.0
    %883 = vmatprep.subr.mxu0 0.0
    %884 = vmatpush1.msra.mxu0 0.0
    %885 = vmatprep.subr.mxu0 0.0
    %886 = vmatpush1.msra.mxu0 0.0
    %887 = vmatprep.subr.mxu0 0.0
    %888 = vmatpush1.msra.mxu0 0.0
    %889 = vmatprep.subr.mxu0 0.0
    %890 = vmatpush1.msra.mxu0 0.0
    %891 = vmatprep.subr.mxu0 0.0
    %892 = vmatpush1.msra.mxu0 0.0
    %893 = vmatprep.subr.mxu0 0.0
    %894 = vmatpush1.msra.mxu0 0.0
    %895 = vmatprep.subr.mxu0 0.0
    %896 = vmatpush1.msra.mxu0 0.0
    %897 = vmatprep.subr.mxu0 0.0
    %898 = vmatpush1.msra.mxu0 0.0
    %899 = vmatprep.subr.mxu0 0.0
    %900 = vmatpush1.msra.mxu0 0.0
    %901 = vmatprep.subr.mxu0 0.0
    %902 = vmatpush1.msra.mxu0 0.0
    %903 = vmatprep.mubr.f32.mxu0 0.0
    %904 = vmatmul.mubr.f32.gmra.mrb[0].mxu0 %v837
    %v905 = vpop.f32.mrb[0].mxu0
    %v906 = vadd.f32 0.0, %v905
    %v907 = vpop.f32.mrb[0].mxu0
    %908 = vdwg.mxu0
    %vm909 = vcmask 31744
    %v910 = vsel %vm909, %v817, -inf
    %v911 = vsel %vm909, %v822, -inf
    %v912 = vsel %vm909, %v827, -inf
    %v913 = vsel %vm909, %v832, -inf
    %v914 = vmax.f32 %v910, %v911
    %v915 = vmax.f32 %v912, %v913
    %v916 = vmax.f32 %v914, %v915
    %v917 = vrot.slane %v916, 4
    %v918 = vmax.f32 %v916, %v917
    %v919 = vrot.slane %v918, 2
    %v920 = vmax.f32 %v918, %v919
    %v921 = vrot.slane %v920, 1
    %v922 = vmax.f32 %v920, %v921
    %vm923 = vcmask 25600
    %v924 = vsel %vm923, %v906, -inf
    %v925 = vrot.slane %v924, 4
    %v926 = vmax.f32 %v924, %v925
    %v927 = vrot.slane %v926, 2
    %v928 = vmax.f32 %v926, %v927
    %v929 = vrot.slane %v928, 1
    %v930 = vmax.f32 %v928, %v929
    %v931 = vmax.f32 %v922, %v930
    %v932 = vsub.f32 %v817, %v931
    %v933 = vsub.f32 %v822, %v931
    %v934 = vsub.f32 %v827, %v931
    %v935 = vsub.f32 %v832, %v931
    %v936 = vmul.f32 %v932, 1.442695
    %v937 = vpow.pop %v936
    %v938 = vmul.f32 %v933, 1.442695
    %v939 = vpow.pop %v938
    %v940 = vmul.f32 %v934, 1.442695
    %v941 = vpow.pop %v940
    %v942 = vmul.f32 %v935, 1.442695
    %v943 = vpow.pop %v942
    %v944 = vsub.f32 %v906, %v931
    %v945 = vmul.f32 %v944, 1.442695
    %v946 = vpow.pop %v945
    %947 = vmatprep.subr.mxu0 0.0
    %948 = vmatpush1.msra.mxu0 %v937
    %949 = vmatprep.subr.mxu0 0.0
    %950 = vmatpush1.msra.mxu0 %v939
    %951 = vmatprep.subr.mxu0 0.0
    %952 = vmatpush1.msra.mxu0 %v941
    %953 = vmatprep.subr.mxu0 0.0
    %954 = vmatpush1.msra.mxu0 %v943
    %955 = vmatprep.subr.mxu0 0.0
    %956 = vmatpush1.msra.mxu0 0.0
    %957 = vmatprep.subr.mxu0 0.0
    %958 = vmatpush1.msra.mxu0 0.0
    %959 = vmatprep.subr.mxu0 0.0
    %960 = vmatpush1.msra.mxu0 0.0
    %961 = vmatprep.subr.mxu0 0.0
    %962 = vmatpush1.msra.mxu0 0.0
    %963 = vmatprep.subr.mxu0 0.0
    %964 = vmatpush1.msra.mxu0 0.0
    %965 = vmatprep.subr.mxu0 0.0
    %966 = vmatpush1.msra.mxu0 0.0
    %967 = vmatprep.subr.mxu0 0.0
    %968 = vmatpush1.msra.mxu0 0.0
    %969 = vmatprep.subr.mxu0 0.0
    %970 = vmatpush1.msra.mxu0 0.0
    %971 = vmatprep.subr.mxu0 0.0
    %972 = vmatpush1.msra.mxu0 0.0
    %973 = vmatprep.subr.mxu0 0.0
    %974 = vmatpush1.msra.mxu0 0.0
    %975 = vmatprep.subr.mxu0 0.0
    %976 = vmatpush1.msra.mxu0 0.0
    %977 = vmatprep.subr.mxu0 0.0
    %978 = vmatpush1.msra.mxu0 0.0
    %979 = vmatprep.subr.mxu0 0.0
    %980 = vmatpush1.msra.mxu0 0.0
    %981 = vmatprep.subr.mxu0 0.0
    %982 = vmatpush1.msra.mxu0 0.0
    %983 = vmatprep.subr.mxu0 0.0
    %984 = vmatpush1.msra.mxu0 0.0
    %985 = vmatprep.subr.mxu0 0.0
    %986 = vmatpush1.msra.mxu0 0.0
    %987 = vmatprep.subr.mxu0 0.0
    %988 = vmatpush1.msra.mxu0 0.0
    %989 = vmatprep.subr.mxu0 0.0
    %990 = vmatpush1.msra.mxu0 0.0
    %991 = vmatprep.subr.mxu0 0.0
    %992 = vmatpush1.msra.mxu0 0.0
    %993 = vmatprep.subr.mxu0 0.0
    %994 = vmatpush1.msra.mxu0 0.0
    %995 = vmatprep.subr.mxu0 0.0
    %996 = vmatpush1.msra.mxu0 0.0
    %997 = vmatprep.subr.mxu0 0.0
    %998 = vmatpush1.msra.mxu0 0.0
    %999 = vmatprep.subr.mxu0 0.0
    %1000 = vmatpush1.msra.mxu0 0.0
    %1001 = vmatprep.subr.mxu0 0.0
    %1002 = vmatpush1.msra.mxu0 0.0
    %1003 = vmatprep.subr.mxu0 0.0
    %1004 = vmatpush1.msra.mxu0 0.0
    %1005 = vmatprep.subr.mxu0 0.0
    %1006 = vmatpush1.msra.mxu0 0.0
    %1007 = vmatprep.subr.mxu0 0.0
    %1008 = vmatpush1.msra.mxu0 0.0
    %1009 = vmatprep.subr.mxu0 0.0
    %1010 = vmatpush1.msra.mxu0 0.0
    %1011 = vmatprep.mubr.f32.mxu0 0.0
    %1012 = vmatmul.mubr.f32.gmra.mrb[0].mxu0 %v116
    %v1013 = vpop.f32.mrb[0].mxu0
    %v1014 = vadd.f32 %v946, %v1013
    %v1015 = vpop.f32.mrb[0].mxu0
    %1016 = vdwg.mxu0
    %v1017 = vmax.f32 %v1014, 1e-30
    %v1018 = vrcp.pop %v1017
    %v1019 = vmul.f32 %v1017, %v1018
    %v1020 = vsub.f32 2.0, %v1019
    %v1021 = vmul.f32 %v1018, %v1020
    %v1023 = vsel %vm909, %v937, 0
    %v1026 = vsel %vm909, %v939, 0
    %v1029 = vsel %vm909, %v941, 0
    %v1032 = vsel %vm909, %v943, 0
    %vm1034 = vcmask 1043456
    %v1036 = vsel %vm1034, %v113, 0
    %1038 = vmatprep.subr.mxu0 0.0
    %1039 = vmatpush1.msra.mxu0 %v1036
    %1040 = vmatprep.subr.mxu0 0.0
    %1041 = vmatpush1.msra.mxu0 0.0
    %1042 = vmatprep.subr.mxu0 0.0
    %1043 = vmatpush1.msra.mxu0 0.0
    %1044 = vmatprep.subr.mxu0 0.0
    %1045 = vmatpush1.msra.mxu0 0.0
    %1046 = vmatprep.subr.mxu0 0.0
    %1047 = vmatpush1.msra.mxu0 0.0
    %1048 = vmatprep.subr.mxu0 0.0
    %1049 = vmatpush1.msra.mxu0 0.0
    %1050 = vmatprep.subr.mxu0 0.0
    %1051 = vmatpush1.msra.mxu0 0.0
    %1052 = vmatprep.subr.mxu0 0.0
    %1053 = vmatpush1.msra.mxu0 0.0
    %1054 = vmatprep.subr.mxu0 0.0
    %1055 = vmatpush1.msra.mxu0 0.0
    %1056 = vmatprep.subr.mxu0 0.0
    %1057 = vmatpush1.msra.mxu0 0.0
    %1058 = vmatprep.subr.mxu0 0.0
    %1059 = vmatpush1.msra.mxu0 0.0
    %1060 = vmatprep.subr.mxu0 0.0
    %1061 = vmatpush1.msra.mxu0 0.0
    %1062 = vmatprep.subr.mxu0 0.0
    %1063 = vmatpush1.msra.mxu0 0.0
    %1064 = vmatprep.subr.mxu0 0.0
    %1065 = vmatpush1.msra.mxu0 0.0
    %1066 = vmatprep.subr.mxu0 0.0
    %1067 = vmatpush1.msra.mxu0 0.0
    %1068 = vmatprep.subr.mxu0 0.0
    %1069 = vmatpush1.msra.mxu0 0.0
    %1070 = vmatprep.subr.mxu0 0.0
    %1071 = vmatpush1.msra.mxu0 0.0
    %1072 = vmatprep.subr.mxu0 0.0
    %1073 = vmatpush1.msra.mxu0 0.0
    %1074 = vmatprep.subr.mxu0 0.0
    %1075 = vmatpush1.msra.mxu0 0.0
    %1076 = vmatprep.subr.mxu0 0.0
    %1077 = vmatpush1.msra.mxu0 0.0
    %1078 = vmatprep.subr.mxu0 0.0
    %1079 = vmatpush1.msra.mxu0 0.0
    %1080 = vmatprep.subr.mxu0 0.0
    %1081 = vmatpush1.msra.mxu0 0.0
    %1082 = vmatprep.subr.mxu0 0.0
    %1083 = vmatpush1.msra.mxu0 0.0
    %1084 = vmatprep.subr.mxu0 0.0
    %1085 = vmatpush1.msra.mxu0 0.0
    %1086 = vmatprep.subr.mxu0 0.0
    %1087 = vmatpush1.msra.mxu0 0.0
    %1088 = vmatprep.subr.mxu0 0.0
    %1089 = vmatpush1.msra.mxu0 0.0
    %1090 = vmatprep.subr.mxu0 0.0
    %1091 = vmatpush1.msra.mxu0 0.0
    %1092 = vmatprep.subr.mxu0 0.0
    %1093 = vmatpush1.msra.mxu0 0.0
    %1094 = vmatprep.subr.mxu0 0.0
    %1095 = vmatpush1.msra.mxu0 0.0
    %1096 = vmatprep.subr.mxu0 0.0
    %1097 = vmatpush1.msra.mxu0 0.0
    %1098 = vmatprep.subr.mxu0 0.0
    %1099 = vmatpush1.msra.mxu0 0.0
    %1100 = vmatprep.subr.mxu0 0.0
    %1101 = vmatpush1.msra.mxu0 0.0
    %1102 = vmatprep.mubr.f32.mxu0 0.0
    %1103 = vmatmul.mubr.f32.gmra.mrb[0].mxu0 %v1023
    %v1104 = vpop.f32.mrb[0].mxu0
    %v1105 = vadd.f32 0.0, %v1104
    %v1106 = vpop.f32.mrb[0].mxu0
    %1107 = vmatprep.mubr.f32.mxu0 0.0
    %1108 = vmatmul.mubr.f32.gmra.mrb[0].mxu0 %v1026
    %v1109 = vpop.f32.mrb[0].mxu0
    %v1110 = vadd.f32 0.0, %v1109
    %v1111 = vpop.f32.mrb[0].mxu0
    %1112 = vmatprep.mubr.f32.mxu0 0.0
    %1113 = vmatmul.mubr.f32.gmra.mrb[0].mxu0 %v1029
    %v1114 = vpop.f32.mrb[0].mxu0
    %v1115 = vadd.f32 0.0, %v1114
    %v1116 = vpop.f32.mrb[0].mxu0
    %1117 = vmatprep.mubr.f32.mxu0 0.0
    %1118 = vmatmul.mubr.f32.gmra.mrb[0].mxu0 %v1032
    %v1119 = vpop.f32.mrb[0].mxu0
    %v1120 = vadd.f32 0.0, %v1119
    %v1121 = vpop.f32.mrb[0].mxu0
    %1122 = vdwg.mxu0
    %v1123 = vmul.f32 %v1105, %v614
    %v1124 = vmul.f32 %v1110, %v619
    %v1125 = vmul.f32 %v1115, %v624
    %v1126 = vmul.f32 %v1120, %v629
    %v1128 = vsel %vm909, %v946, 0
    %1130 = vmatprep.subr.mxu0 0.0
    %1131 = vmatpush1.msra.mxu0 %v1036
    %1132 = vmatprep.subr.mxu0 0.0
    %1133 = vmatpush1.msra.mxu0 0.0
    %1134 = vmatprep.subr.mxu0 0.0
    %1135 = vmatpush1.msra.mxu0 0.0
    %1136 = vmatprep.subr.mxu0 0.0
    %1137 = vmatpush1.msra.mxu0 0.0
    %1138 = vmatprep.subr.mxu0 0.0
    %1139 = vmatpush1.msra.mxu0 0.0
    %1140 = vmatprep.subr.mxu0 0.0
    %1141 = vmatpush1.msra.mxu0 0.0
    %1142 = vmatprep.subr.mxu0 0.0
    %1143 = vmatpush1.msra.mxu0 0.0
    %1144 = vmatprep.subr.mxu0 0.0
    %1145 = vmatpush1.msra.mxu0 0.0
    %1146 = vmatprep.subr.mxu0 0.0
    %1147 = vmatpush1.msra.mxu0 0.0
    %1148 = vmatprep.subr.mxu0 0.0
    %1149 = vmatpush1.msra.mxu0 0.0
    %1150 = vmatprep.subr.mxu0 0.0
    %1151 = vmatpush1.msra.mxu0 0.0
    %1152 = vmatprep.subr.mxu0 0.0
    %1153 = vmatpush1.msra.mxu0 0.0
    %1154 = vmatprep.subr.mxu0 0.0
    %1155 = vmatpush1.msra.mxu0 0.0
    %1156 = vmatprep.subr.mxu0 0.0
    %1157 = vmatpush1.msra.mxu0 0.0
    %1158 = vmatprep.subr.mxu0 0.0
    %1159 = vmatpush1.msra.mxu0 0.0
    %1160 = vmatprep.subr.mxu0 0.0
    %1161 = vmatpush1.msra.mxu0 0.0
    %1162 = vmatprep.subr.mxu0 0.0
    %1163 = vmatpush1.msra.mxu0 0.0
    %1164 = vmatprep.subr.mxu0 0.0
    %1165 = vmatpush1.msra.mxu0 0.0
    %1166 = vmatprep.subr.mxu0 0.0
    %1167 = vmatpush1.msra.mxu0 0.0
    %1168 = vmatprep.subr.mxu0 0.0
    %1169 = vmatpush1.msra.mxu0 0.0
    %1170 = vmatprep.subr.mxu0 0.0
    %1171 = vmatpush1.msra.mxu0 0.0
    %1172 = vmatprep.subr.mxu0 0.0
    %1173 = vmatpush1.msra.mxu0 0.0
    %1174 = vmatprep.subr.mxu0 0.0
    %1175 = vmatpush1.msra.mxu0 0.0
    %1176 = vmatprep.subr.mxu0 0.0
    %1177 = vmatpush1.msra.mxu0 0.0
    %1178 = vmatprep.subr.mxu0 0.0
    %1179 = vmatpush1.msra.mxu0 0.0
    %1180 = vmatprep.subr.mxu0 0.0
    %1181 = vmatpush1.msra.mxu0 0.0
    %1182 = vmatprep.subr.mxu0 0.0
    %1183 = vmatpush1.msra.mxu0 0.0
    %1184 = vmatprep.subr.mxu0 0.0
    %1185 = vmatpush1.msra.mxu0 0.0
    %1186 = vmatprep.subr.mxu0 0.0
    %1187 = vmatpush1.msra.mxu0 0.0
    %1188 = vmatprep.subr.mxu0 0.0
    %1189 = vmatpush1.msra.mxu0 0.0
    %1190 = vmatprep.subr.mxu0 0.0
    %1191 = vmatpush1.msra.mxu0 0.0
    %1192 = vmatprep.subr.mxu0 0.0
    %1193 = vmatpush1.msra.mxu0 0.0
    %1194 = vmatprep.mubr.f32.mxu0 0.0
    %1195 = vmatmul.mubr.f32.gmra.mrb[0].mxu0 %v1128
    %v1196 = vpop.f32.mrb[0].mxu0
    %v1197 = vadd.f32 0.0, %v1196
    %v1198 = vpop.f32.mrb[0].mxu0
    %1199 = vdwg.mxu0
    %v1200 = vmul.f32 %v1197, %v441
    %1201 = vmatprep.subr.mxu0 0.0
    %1202 = vmatpush1.msra.mxu0 %v1123
    %1203 = vmatprep.subr.mxu0 0.0
    %1204 = vmatpush1.msra.mxu0 %v1124
    %1205 = vmatprep.subr.mxu0 0.0
    %1206 = vmatpush1.msra.mxu0 %v1125
    %1207 = vmatprep.subr.mxu0 0.0
    %1208 = vmatpush1.msra.mxu0 %v1126
    %1209 = vmatprep.subr.mxu0 0.0
    %1210 = vmatpush1.msra.mxu0 0.0
    %1211 = vmatprep.subr.mxu0 0.0
    %1212 = vmatpush1.msra.mxu0 0.0
    %1213 = vmatprep.subr.mxu0 0.0
    %1214 = vmatpush1.msra.mxu0 0.0
    %1215 = vmatprep.subr.mxu0 0.0
    %1216 = vmatpush1.msra.mxu0 0.0
    %1217 = vmatprep.subr.mxu0 0.0
    %1218 = vmatpush1.msra.mxu0 0.0
    %1219 = vmatprep.subr.mxu0 0.0
    %1220 = vmatpush1.msra.mxu0 0.0
    %1221 = vmatprep.subr.mxu0 0.0
    %1222 = vmatpush1.msra.mxu0 0.0
    %1223 = vmatprep.subr.mxu0 0.0
    %1224 = vmatpush1.msra.mxu0 0.0
    %1225 = vmatprep.subr.mxu0 0.0
    %1226 = vmatpush1.msra.mxu0 0.0
    %1227 = vmatprep.subr.mxu0 0.0
    %1228 = vmatpush1.msra.mxu0 0.0
    %1229 = vmatprep.subr.mxu0 0.0
    %1230 = vmatpush1.msra.mxu0 0.0
    %1231 = vmatprep.subr.mxu0 0.0
    %1232 = vmatpush1.msra.mxu0 0.0
    %1233 = vmatprep.subr.mxu0 0.0
    %1234 = vmatpush1.msra.mxu0 0.0
    %1235 = vmatprep.subr.mxu0 0.0
    %1236 = vmatpush1.msra.mxu0 0.0
    %1237 = vmatprep.subr.mxu0 0.0
    %1238 = vmatpush1.msra.mxu0 0.0
    %1239 = vmatprep.subr.mxu0 0.0
    %1240 = vmatpush1.msra.mxu0 0.0
    %1241 = vmatprep.subr.mxu0 0.0
    %1242 = vmatpush1.msra.mxu0 0.0
    %1243 = vmatprep.subr.mxu0 0.0
    %1244 = vmatpush1.msra.mxu0 0.0
    %1245 = vmatprep.subr.mxu0 0.0
    %1246 = vmatpush1.msra.mxu0 0.0
    %1247 = vmatprep.subr.mxu0 0.0
    %1248 = vmatpush1.msra.mxu0 0.0
    %1249 = vmatprep.subr.mxu0 0.0
    %1250 = vmatpush1.msra.mxu0 0.0
    %1251 = vmatprep.subr.mxu0 0.0
    %1252 = vmatpush1.msra.mxu0 0.0
    %1253 = vmatprep.subr.mxu0 0.0
    %1254 = vmatpush1.msra.mxu0 0.0
    %1255 = vmatprep.subr.mxu0 0.0
    %1256 = vmatpush1.msra.mxu0 0.0
    %1257 = vmatprep.subr.mxu0 0.0
    %1258 = vmatpush1.msra.mxu0 0.0
    %1259 = vmatprep.subr.mxu0 0.0
    %1260 = vmatpush1.msra.mxu0 0.0
    %1261 = vmatprep.subr.mxu0 0.0
    %1262 = vmatpush1.msra.mxu0 0.0
    %1263 = vmatprep.subr.mxu0 0.0
    %1264 = vmatpush1.msra.mxu0 0.0
    %1265 = vmatprep.mubr.f32.mxu0 0.0
    %1266 = vmatmul.mubr.f32.gmra.mrb[0].mxu0 %v116
    %v1267 = vpop.f32.mrb[0].mxu0
    %v1268 = vadd.f32 %v1200, %v1267
    %v1269 = vpop.f32.mrb[0].mxu0
    %1270 = vdwg.mxu0
    %v1272 = vsel %vm909, %v1021, 0
    %1274 = vmatprep.subr.mxu0 0.0
    %1275 = vmatpush1.msra.mxu0 %v1036
    %1276 = vmatprep.subr.mxu0 0.0
    %1277 = vmatpush1.msra.mxu0 0.0
    %1278 = vmatprep.subr.mxu0 0.0
    %1279 = vmatpush1.msra.mxu0 0.0
    %1280 = vmatprep.subr.mxu0 0.0
    %1281 = vmatpush1.msra.mxu0 0.0
    %1282 = vmatprep.subr.mxu0 0.0
    %1283 = vmatpush1.msra.mxu0 0.0
    %1284 = vmatprep.subr.mxu0 0.0
    %1285 = vmatpush1.msra.mxu0 0.0
    %1286 = vmatprep.subr.mxu0 0.0
    %1287 = vmatpush1.msra.mxu0 0.0
    %1288 = vmatprep.subr.mxu0 0.0
    %1289 = vmatpush1.msra.mxu0 0.0
    %1290 = vmatprep.subr.mxu0 0.0
    %1291 = vmatpush1.msra.mxu0 0.0
    %1292 = vmatprep.subr.mxu0 0.0
    %1293 = vmatpush1.msra.mxu0 0.0
    %1294 = vmatprep.subr.mxu0 0.0
    %1295 = vmatpush1.msra.mxu0 0.0
    %1296 = vmatprep.subr.mxu0 0.0
    %1297 = vmatpush1.msra.mxu0 0.0
    %1298 = vmatprep.subr.mxu0 0.0
    %1299 = vmatpush1.msra.mxu0 0.0
    %1300 = vmatprep.subr.mxu0 0.0
    %1301 = vmatpush1.msra.mxu0 0.0
    %1302 = vmatprep.subr.mxu0 0.0
    %1303 = vmatpush1.msra.mxu0 0.0
    %1304 = vmatprep.subr.mxu0 0.0
    %1305 = vmatpush1.msra.mxu0 0.0
    %1306 = vmatprep.subr.mxu0 0.0
    %1307 = vmatpush1.msra.mxu0 0.0
    %1308 = vmatprep.subr.mxu0 0.0
    %1309 = vmatpush1.msra.mxu0 0.0
    %1310 = vmatprep.subr.mxu0 0.0
    %1311 = vmatpush1.msra.mxu0 0.0
    %1312 = vmatprep.subr.mxu0 0.0
    %1313 = vmatpush1.msra.mxu0 0.0
    %1314 = vmatprep.subr.mxu0 0.0
    %1315 = vmatpush1.msra.mxu0 0.0
    %1316 = vmatprep.subr.mxu0 0.0
    %1317 = vmatpush1.msra.mxu0 0.0
    %1318 = vmatprep.subr.mxu0 0.0
    %1319 = vmatpush1.msra.mxu0 0.0
    %1320 = vmatprep.subr.mxu0 0.0
    %1321 = vmatpush1.msra.mxu0 0.0
    %1322 = vmatprep.subr.mxu0 0.0
    %1323 = vmatpush1.msra.mxu0 0.0
    %1324 = vmatprep.subr.mxu0 0.0
    %1325 = vmatpush1.msra.mxu0 0.0
    %1326 = vmatprep.subr.mxu0 0.0
    %1327 = vmatpush1.msra.mxu0 0.0
    %1328 = vmatprep.subr.mxu0 0.0
    %1329 = vmatpush1.msra.mxu0 0.0
    %1330 = vmatprep.subr.mxu0 0.0
    %1331 = vmatpush1.msra.mxu0 0.0
    %1332 = vmatprep.subr.mxu0 0.0
    %1333 = vmatpush1.msra.mxu0 0.0
    %1334 = vmatprep.subr.mxu0 0.0
    %1335 = vmatpush1.msra.mxu0 0.0
    %1336 = vmatprep.subr.mxu0 0.0
    %1337 = vmatpush1.msra.mxu0 0.0
    %1338 = vmatprep.mubr.f32.mxu0 0.0
    %1339 = vmatmul.mubr.f32.gmra.mrb[0].mxu0 %v1272
    %v1340 = vpop.f32.mrb[0].mxu0
    %v1341 = vadd.f32 0.0, %v1340
    %v1342 = vpop.f32.mrb[0].mxu0
    %1343 = vdwg.mxu0
    %v1344 = vmul.f32 %v1268, %v1341
    %v1345 = vld [vmem:[%s13] sm:$0xff]
    %v1346 = vld [vmem:[%s13 + $0x8] sm:$0xff]
    %v1347 = vld [vmem:[%s13 + $0x10] sm:$0xff]
    %v1348 = vld [vmem:[%s13 + $0x18] sm:$0xff]
    %v1349 = vld [vmem:[%s14] sm:$0x1]
    %v1351 = vlaneseq
    %v1352 = vshrl.u32 %v1351, 7
    %v1353 = vsub.s32 0, %v1352
    %v1354 = vrot.slane %v1349, %v1353
    %v1357 = vsel %vm114, %v1344, 0
    %1359 = vmatprep.subr.mxu0 0.0
    %1360 = vmatpush1.msra.mxu0 %v1345
    %1361 = vmatprep.subr.mxu0 0.0
    %1362 = vmatpush1.msra.mxu0 %v1346
    %1363 = vmatprep.subr.mxu0 0.0
    %1364 = vmatpush1.msra.mxu0 %v1347
    %1365 = vmatprep.subr.mxu0 0.0
    %1366 = vmatpush1.msra.mxu0 %v1348
    %1367 = vmatprep.subr.mxu0 0.0
    %1368 = vmatpush1.msra.mxu0 0.0
    %1369 = vmatprep.subr.mxu0 0.0
    %1370 = vmatpush1.msra.mxu0 0.0
    %1371 = vmatprep.subr.mxu0 0.0
    %1372 = vmatpush1.msra.mxu0 0.0
    %1373 = vmatprep.subr.mxu0 0.0
    %1374 = vmatpush1.msra.mxu0 0.0
    %1375 = vmatprep.subr.mxu0 0.0
    %1376 = vmatpush1.msra.mxu0 0.0
    %1377 = vmatprep.subr.mxu0 0.0
    %1378 = vmatpush1.msra.mxu0 0.0
    %1379 = vmatprep.subr.mxu0 0.0
    %1380 = vmatpush1.msra.mxu0 0.0
    %1381 = vmatprep.subr.mxu0 0.0
    %1382 = vmatpush1.msra.mxu0 0.0
    %1383 = vmatprep.subr.mxu0 0.0
    %1384 = vmatpush1.msra.mxu0 0.0
    %1385 = vmatprep.subr.mxu0 0.0
    %1386 = vmatpush1.msra.mxu0 0.0
    %1387 = vmatprep.subr.mxu0 0.0
    %1388 = vmatpush1.msra.mxu0 0.0
    %1389 = vmatprep.subr.mxu0 0.0
    %1390 = vmatpush1.msra.mxu0 0.0
    %1391 = vmatprep.subr.mxu0 0.0
    %1392 = vmatpush1.msra.mxu0 0.0
    %1393 = vmatprep.subr.mxu0 0.0
    %1394 = vmatpush1.msra.mxu0 0.0
    %1395 = vmatprep.subr.mxu0 0.0
    %1396 = vmatpush1.msra.mxu0 0.0
    %1397 = vmatprep.subr.mxu0 0.0
    %1398 = vmatpush1.msra.mxu0 0.0
    %1399 = vmatprep.subr.mxu0 0.0
    %1400 = vmatpush1.msra.mxu0 0.0
    %1401 = vmatprep.subr.mxu0 0.0
    %1402 = vmatpush1.msra.mxu0 0.0
    %1403 = vmatprep.subr.mxu0 0.0
    %1404 = vmatpush1.msra.mxu0 0.0
    %1405 = vmatprep.subr.mxu0 0.0
    %1406 = vmatpush1.msra.mxu0 0.0
    %1407 = vmatprep.subr.mxu0 0.0
    %1408 = vmatpush1.msra.mxu0 0.0
    %1409 = vmatprep.subr.mxu0 0.0
    %1410 = vmatpush1.msra.mxu0 0.0
    %1411 = vmatprep.subr.mxu0 0.0
    %1412 = vmatpush1.msra.mxu0 0.0
    %1413 = vmatprep.subr.mxu0 0.0
    %1414 = vmatpush1.msra.mxu0 0.0
    %1415 = vmatprep.subr.mxu0 0.0
    %1416 = vmatpush1.msra.mxu0 0.0
    %1417 = vmatprep.subr.mxu0 0.0
    %1418 = vmatpush1.msra.mxu0 0.0
    %1419 = vmatprep.subr.mxu0 0.0
    %1420 = vmatpush1.msra.mxu0 0.0
    %1421 = vmatprep.subr.mxu0 0.0
    %1422 = vmatpush1.msra.mxu0 0.0
    %1423 = vmatprep.mubr.f32.mxu0 0.0
    %1424 = vmatmul.mubr.f32.gmra.mrb[0].mxu0 %v1357
    %v1425 = vpop.f32.mrb[0].mxu0
    %v1426 = vadd.f32 %v1354, %v1425
    %v1427 = vpop.f32.mrb[0].mxu0
    %1428 = vdwg.mxu0
    %vm1429 = vcmask 123904
    %1430 = vst.msk [vmem:[#allocation10] sm:$0x3] %vm1429, %v1426
    // Predicated region
    $region78: #{tpu_custom_call.1} parent=1 // pred_check
      _
    $region79: #{tpu_custom_call.1} parent=1 // pred_check_branch
      %1432 = sbr.rel (0) target = $region81
    $region80: #{tpu_custom_call.1} parent=1 // pred_region
      %s1434 = ssub.s32 32, 32
      %1435 = vsyncadd [#allocation4], %s1434
      %s1437 = sshll.u32 [#allocation10], 4
      %s1438 = int_to_ptr.vmem [resolvable:$true] %s1437
      %1440 = dma.vmem_to_hbm [thread:$0]  %s1438, 32, %s15, [#allocation4]
    $region81: #{tpu_custom_call.1} parent=1 // pred_fallthru
      _
    // Predicated region
    $region82: #{tpu_custom_call.1} parent=1 // pred_check
      _
    $region83: #{tpu_custom_call.1} parent=1 // pred_check_branch
      %1442 = sbr.rel (0) target = $region85
    $region84: #{tpu_custom_call.1} parent=1 // pred_region
      %1443 = dma.done [#allocation4], 32
    $region85: #{tpu_custom_call.1} parent=1 // pred_fallthru
      _
    %1444 = vsyncpa [#allocation3], 1
    %1445 = vsyncpa [#allocation6], 1
    %1446 = vsyncpa [#allocation9], 1
    %1447 = vsyncpa [#allocation4], 1

// kernel: tpu_custom_call.1
$region0: #{tpu_custom_call.1}
  #allocation0 [shape = 'u32[]', space=smem, size = 0x4, offset = 0x4, fixed_abs, tag = 'smem constant byte address 0x4 - core index']
  #allocation1 [shape = 'u32[144,128]{1,0:T(1,128)}', space=vmem, size = 0x12000, scoped, tag = 'internal scratch']
  %s0 = inlined_call_operand.vmem [shape: f32[32,32], index: 0, kind: input, shape index: {}]
  %s1 = inlined_call_operand.hbm [shape: f32[1,32], index: 1, kind: input, shape index: {}]
  %s2 = inlined_call_operand.hbm [shape: f32[16,32], index: 2, kind: input, shape index: {}]
  %s3 = inlined_call_operand.hbm [shape: f32[2,32], index: 3, kind: input, shape index: {}]
  %s4 = inlined_call_operand.vmem [shape: f32[32,2], index: 4, kind: input, shape index: {}]
  %s5 = inlined_call_operand.vmem [shape: f32[32,4], index: 5, kind: input, shape index: {}]
  %s6 = inlined_call_operand.hbm [shape: f32[4,32], index: 6, kind: input, shape index: {}]
  %s7 = inlined_call_operand.vmem [shape: f32[32,32], index: 7, kind: input, shape index: {}]
  %s8 = inlined_call_operand.vmem [shape: f32[1,32], index: 8, kind: input, shape index: {}]
  %s9 = inlined_call_operand.vmem [shape: f32[32,32], index: 9, kind: input, shape index: {}]
  %s10 = inlined_call_operand.vmem [shape: f32[1,32], index: 10, kind: input, shape index: {}]
  %s11 = inlined_call_operand.vmem [shape: f32[32,32], index: 11, kind: input, shape index: {}]
  %s12 = inlined_call_operand.vmem [shape: f32[1,32], index: 12, kind: input, shape index: {}]
  %s13 = inlined_call_operand.vmem [shape: f32[32,16], index: 13, kind: input, shape index: {}]
  %s14 = inlined_call_operand.vmem [shape: f32[1,16], index: 14, kind: input, shape index: {}]
  %s15 = inlined_call_operand.hbm [shape: f32[2,16], index: 15, kind: output, shape index: {}]
  %s16 = sld [smem:[#allocation0]]
  $region86: #{tpu_custom_call.1} parent=0
    _
  %s18 = ssub.s32 1, %s16
  %s19 = scalar_select 0, %s18, %s16
  $region1: #{tpu_custom_call.1} parent=0
    #allocation2 [shape = 'u8[512]{0}', space=vmem, size = 0x400, scoped, tag = 'input window, operand 1, single buffered']
    #allocation3 [shape = 's32[1]{0}', space=sflag, size = 0x4, scoped, tag = 'scoped memory for tpu_custom_call.1']
    #allocation4 [shape = 's32[1]{0}', space=sflag, size = 0x4, scoped, tag = 'scoped memory for tpu_custom_call.1']
    #allocation5 [shape = 'u8[8192]{0}', space=vmem, size = 0x2000, scoped, tag = 'input window, operand 2, single buffered']
    #allocation6 [shape = 's32[1]{0}', space=sflag, size = 0x4, scoped, tag = 'scoped memory for tpu_custom_call.1']
    #allocation7 [shape = 'u8[1024]{0}', space=vmem, size = 0x400, scoped, tag = 'input window, operand 3, single buffered']
    #allocation8 [shape = 'u8[2048]{0}', space=vmem, size = 0x800, scoped, tag = 'input window, operand 6, single buffered']
    #allocation9 [shape = 's32[1]{0}', space=sflag, size = 0x4, scoped, tag = 'scoped memory for tpu_custom_call.1']
    #allocation10 [shape = 'u8[1024]{0}', space=vmem, size = 0x400, scoped, tag = 'output window, operand 0, single buffered']
    %20 = vsyncpa [#allocation3], 0
    %21 = vsyncpa [#allocation6], 0
    %22 = vsyncpa [#allocation9], 0
    %23 = vsyncpa [#allocation4], 0
    // Predicated region
    $region2: #{tpu_custom_call.1} parent=1 // pred_check
      _
    $region3: #{tpu_custom_call.1} parent=1 // pred_check_branch
      %25 = sbr.rel (0) target = $region5
    $region4: #{tpu_custom_call.1} parent=1 // pred_region
      _
    $region5: #{tpu_custom_call.1} parent=1 // pred_fallthru
      _
    // Predicated region
    $region6: #{tpu_custom_call.1} parent=1 // pred_check
      _
    $region7: #{tpu_custom_call.1} parent=1 // pred_check_branch
      %27 = sbr.rel (0) target = $region9
    $region8: #{tpu_custom_call.1} parent=1 // pred_region
      %s29 = ssub.s32 16, 16
      %30 = vsyncadd [#allocation3], %s29
      %s32 = sshll.u32 [#allocation2], 4
      %s33 = int_to_ptr.vmem [resolvable:$true] %s32
      %35 = dma.hbm_to_vmem [thread:$0]  %s1, 16, %s33, [#allocation3]
    $region9: #{tpu_custom_call.1} parent=1 // pred_fallthru
      _
    // Predicated region
    $region10: #{tpu_custom_call.1} parent=1 // pred_check
      _
    $region11: #{tpu_custom_call.1} parent=1 // pred_check_branch
      %37 = sbr.rel (0) target = $region13
    $region12: #{tpu_custom_call.1} parent=1 // pred_region
      %s39 = ssub.s32 256, 256
      %40 = vsyncadd [#allocation6], %s39
      %s41 = sshll.u32 [#allocation5], 4
      %s42 = int_to_ptr.vmem [resolvable:$true] %s41
      %47 = dma.hbm_to_vmem [thread:$0]  %s2, 256, %s42, [#allocation6], 128, 128, 8
    $region13: #{tpu_custom_call.1} parent=1 // pred_fallthru
      _
    // Predicated region
    $region14: #{tpu_custom_call.1} parent=1 // pred_check
      _
    $region15: #{tpu_custom_call.1} parent=1 // pred_check_branch
      %49 = sbr.rel (0) target = $region17
    $region16: #{tpu_custom_call.1} parent=1 // pred_region
      %s51 = ssub.s32 32, 32
      %52 = vsyncadd [#allocation6], %s51
      %s54 = sshll.u32 [#allocation7], 4
      %s55 = int_to_ptr.vmem [resolvable:$true] %s54
      %57 = dma.hbm_to_vmem [thread:$0]  %s3, 32, %s55, [#allocation6]
    $region17: #{tpu_custom_call.1} parent=1 // pred_fallthru
      _
    // Predicated region
    $region18: #{tpu_custom_call.1} parent=1 // pred_check
      _
    $region19: #{tpu_custom_call.1} parent=1 // pred_check_branch
      %59 = sbr.rel (0) target = $region21
    $region20: #{tpu_custom_call.1} parent=1 // pred_region
      _
    $region21: #{tpu_custom_call.1} parent=1 // pred_fallthru
      _
    // Predicated region
    $region22: #{tpu_custom_call.1} parent=1 // pred_check
      _
    $region23: #{tpu_custom_call.1} parent=1 // pred_check_branch
      %61 = sbr.rel (0) target = $region25
    $region24: #{tpu_custom_call.1} parent=1 // pred_region
      _
    $region25: #{tpu_custom_call.1} parent=1 // pred_fallthru
      _
    // Predicated region
    $region26: #{tpu_custom_call.1} parent=1 // pred_check
      _
    $region27: #{tpu_custom_call.1} parent=1 // pred_check_branch
      %63 = sbr.rel (0) target = $region29
    $region28: #{tpu_custom_call.1} parent=1 // pred_region
      %s65 = ssub.s32 64, 64
      %66 = vsyncadd [#allocation9], %s65
      %s68 = sshll.u32 [#allocation8], 4
      %s69 = int_to_ptr.vmem [resolvable:$true] %s68
      %71 = dma.hbm_to_vmem [thread:$0]  %s6, 64, %s69, [#allocation9]
    $region29: #{tpu_custom_call.1} parent=1 // pred_fallthru
      _
    // Predicated region
    $region30: #{tpu_custom_call.1} parent=1 // pred_check
      _
    $region31: #{tpu_custom_call.1} parent=1 // pred_check_branch
      %73 = sbr.rel (0) target = $region33
    $region32: #{tpu_custom_call.1} parent=1 // pred_region
      _
    $region33: #{tpu_custom_call.1} parent=1 // pred_fallthru
      _
    // Predicated region
    $region34: #{tpu_custom_call.1} parent=1 // pred_check
      _
    $region35: #{tpu_custom_call.1} parent=1 // pred_check_branch
      %75 = sbr.rel (0) target = $region37
    $region36: #{tpu_custom_call.1} parent=1 // pred_region
      _
    $region37: #{tpu_custom_call.1} parent=1 // pred_fallthru
      _
    // Predicated region
    $region38: #{tpu_custom_call.1} parent=1 // pred_check
      _
    $region39: #{tpu_custom_call.1} parent=1 // pred_check_branch
      %77 = sbr.rel (0) target = $region41
    $region40: #{tpu_custom_call.1} parent=1 // pred_region
      _
    $region41: #{tpu_custom_call.1} parent=1 // pred_fallthru
      _
    // Predicated region
    $region42: #{tpu_custom_call.1} parent=1 // pred_check
      _
    $region43: #{tpu_custom_call.1} parent=1 // pred_check_branch
      %79 = sbr.rel (0) target = $region45
    $region44: #{tpu_custom_call.1} parent=1 // pred_region
      _
    $region45: #{tpu_custom_call.1} parent=1 // pred_fallthru
      _
    // Predicated region
    $region46: #{tpu_custom_call.1} parent=1 // pred_check
      _
    $region47: #{tpu_custom_call.1} parent=1 // pred_check_branch
      %81 = sbr.rel (0) target = $region49
    $region48: #{tpu_custom_call.1} parent=1 // pred_region
      _
    $region49: #{tpu_custom_call.1} parent=1 // pred_fallthru
      _
    // Predicated region
    $region50: #{tpu_custom_call.1} parent=1 // pred_check
      _
    $region51: #{tpu_custom_call.1} parent=1 // pred_check_branch
      %83 = sbr.rel (0) target = $region53
    $region52: #{tpu_custom_call.1} parent=1 // pred_region
      _
    $region53: #{tpu_custom_call.1} parent=1 // pred_fallthru
      _
    // Predicated region
    $region54: #{tpu_custom_call.1} parent=1 // pred_check
      _
    $region55: #{tpu_custom_call.1} parent=1 // pred_check_branch
      %85 = sbr.rel (0) target = $region57
    $region56: #{tpu_custom_call.1} parent=1 // pred_region
      _
    $region57: #{tpu_custom_call.1} parent=1 // pred_fallthru
      _
    // Predicated region
    $region58: #{tpu_custom_call.1} parent=1 // pred_check
      _
    $region59: #{tpu_custom_call.1} parent=1 // pred_check_branch
      %87 = sbr.rel (0) target = $region61
    $region60: #{tpu_custom_call.1} parent=1 // pred_region
      _
    $region61: #{tpu_custom_call.1} parent=1 // pred_fallthru
      _
    // Predicated region
    $region62: #{tpu_custom_call.1} parent=1 // pred_check
      _
    $region63: #{tpu_custom_call.1} parent=1 // pred_check_branch
      %89 = sbr.rel (0) target = $region65
    $region64: #{tpu_custom_call.1} parent=1 // pred_region
      %90 = dma.done [#allocation3], 16
    $region65: #{tpu_custom_call.1} parent=1 // pred_fallthru
      _
    // Predicated region
    $region66: #{tpu_custom_call.1} parent=1 // pred_check
      _
    $region67: #{tpu_custom_call.1} parent=1 // pred_check_branch
      %92 = sbr.rel (0) target = $region69
    $region68: #{tpu_custom_call.1} parent=1 // pred_region
      %93 = dma.done [#allocation6], 256
    $region69: #{tpu_custom_call.1} parent=1 // pred_fallthru
      _
    // Predicated region
    $region70: #{tpu_custom_call.1} parent=1 // pred_check
      _
    $region71: #{tpu_custom_call.1} parent=1 // pred_check_branch
      %95 = sbr.rel (0) target = $region73
    $region72: #{tpu_custom_call.1} parent=1 // pred_region
      %96 = dma.done [#allocation6], 32
    $region73: #{tpu_custom_call.1} parent=1 // pred_fallthru
      _
    // Predicated region
    $region74: #{tpu_custom_call.1} parent=1 // pred_check
      _
    $region75: #{tpu_custom_call.1} parent=1 // pred_check_branch
      %98 = sbr.rel (0) target = $region77
    $region76: #{tpu_custom_call.1} parent=1 // pred_region
      %99 = dma.done [#allocation9], 64
    $region77: #{tpu_custom_call.1} parent=1 // pred_fallthru
      _
    %v100 = vld [vmem:[%s0] sm:$0xff]
    %v101 = vld [vmem:[%s0 + $0x8] sm:$0xff]
    %v102 = vld [vmem:[%s0 + $0x10] sm:$0xff]
    %v103 = vld [vmem:[%s0 + $0x18] sm:$0xff]
    %v104 = vld [vmem:[#allocation7] sm:$0x3]
    %v105 = vld [vmem:[%s4] sm:$0xff]
    %v106 = vld [vmem:[%s4 + $0x8] sm:$0xff]
    %v107 = vld [vmem:[%s4 + $0x10] sm:$0xff]
    %v108 = vld [vmem:[%s4 + $0x18] sm:$0xff]
    %v109 = vld [vmem:[%s5] sm:$0xff]
    %v110 = vld [vmem:[%s5 + $0x8] sm:$0xff]
    %v111 = vld [vmem:[%s5 + $0x10] sm:$0xff]
    %v112 = vld [vmem:[%s5 + $0x18] sm:$0xff]
    %v113 = vld [vmem:[#allocation8] sm:$0xf]
    %vm114 = vcmask 261120
    %v116 = vsel %vm114, %v104, 0
    %118 = vmatprep.subr.mxu0 0.0
    %119 = vmatpush1.msra.mxu0 %v100
    %120 = vmatprep.subr.mxu0 0.0
    %121 = vmatpush1.msra.mxu0 %v101
    %122 = vmatprep.subr.mxu0 0.0
    %123 = vmatpush1.msra.mxu0 %v102
    %124 = vmatprep.subr.mxu0 0.0
    %125 = vmatpush1.msra.mxu0 %v103
    %126 = vmatprep.subr.mxu0 0.0
    %127 = vmatpush1.msra.mxu0 0.0
    %128 = vmatprep.subr.mxu0 0.0
    %129 = vmatpush1.msra.mxu0 0.0
    %130 = vmatprep.subr.mxu0 0.0
    %131 = vmatpush1.msra.mxu0 0.0
    %132 = vmatprep.subr.mxu0 0.0
    %133 = vmatpush1.msra.mxu0 0.0
    %134 = vmatprep.subr.mxu0 0.0
    %135 = vmatpush1.msra.mxu0 0.0
    %136 = vmatprep.subr.mxu0 0.0
    %137 = vmatpush1.msra.mxu0 0.0
    %138 = vmatprep.subr.mxu0 0.0
    %139 = vmatpush1.msra.mxu0 0.0
    %140 = vmatprep.subr.mxu0 0.0
    %141 = vmatpush1.msra.mxu0 0.0
    %142 = vmatprep.subr.mxu0 0.0
    %143 = vmatpush1.msra.mxu0 0.0
    %144 = vmatprep.subr.mxu0 0.0
    %145 = vmatpush1.msra.mxu0 0.0
    %146 = vmatprep.subr.mxu0 0.0
    %147 = vmatpush1.msra.mxu0 0.0
    %148 = vmatprep.subr.mxu0 0.0
    %149 = vmatpush1.msra.mxu0 0.0
    %150 = vmatprep.subr.mxu0 0.0
    %151 = vmatpush1.msra.mxu0 0.0
    %152 = vmatprep.subr.mxu0 0.0
    %153 = vmatpush1.msra.mxu0 0.0
    %154 = vmatprep.subr.mxu0 0.0
    %155 = vmatpush1.msra.mxu0 0.0
    %156 = vmatprep.subr.mxu0 0.0
    %157 = vmatpush1.msra.mxu0 0.0
    %158 = vmatprep.subr.mxu0 0.0
    %159 = vmatpush1.msra.mxu0 0.0
    %160 = vmatprep.subr.mxu0 0.0
    %161 = vmatpush1.msra.mxu0 0.0
    %162 = vmatprep.subr.mxu0 0.0
    %163 = vmatpush1.msra.mxu0 0.0
    %164 = vmatprep.subr.mxu0 0.0
    %165 = vmatpush1.msra.mxu0 0.0
    %166 = vmatprep.subr.mxu0 0.0
    %167 = vmatpush1.msra.mxu0 0.0
    %168 = vmatprep.subr.mxu0 0.0
    %169 = vmatpush1.msra.mxu0 0.0
    %170 = vmatprep.subr.mxu0 0.0
    %171 = vmatpush1.msra.mxu0 0.0
    %172 = vmatprep.subr.mxu0 0.0
    %173 = vmatpush1.msra.mxu0 0.0
    %174 = vmatprep.subr.mxu0 0.0
    %175 = vmatpush1.msra.mxu0 0.0
    %176 = vmatprep.subr.mxu0 0.0
    %177 = vmatpush1.msra.mxu0 0.0
    %178 = vmatprep.subr.mxu0 0.0
    %179 = vmatpush1.msra.mxu0 0.0
    %180 = vmatprep.subr.mxu0 0.0
    %181 = vmatpush1.msra.mxu0 0.0
    %182 = vmatprep.mubr.f32.mxu0 0.0
    %183 = vmatmul.mubr.f32.gmra.mrb[0].mxu0 %v116
    %v184 = vpop.f32.mrb[0].mxu0
    %v185 = vadd.f32 0.0, %v184
    %v186 = vpop.f32.mrb[0].mxu0
    %187 = vdwg.mxu0
    %v188 = vmul.f32 %v185, 0.0625
    %v189 = vld [vmem:[#allocation2] sm:$0x1]
    %v191 = vlaneseq
    %v192 = vshrl.u32 %v191, 7
    %v193 = vsub.s32 0, %v192
    %v194 = vrot.slane %v189, %v193
    %v196 = vadd.f32 %v188, %v194
    %v197 = vld [vmem:[%s7] sm:$0xff]
    %v198 = vld [vmem:[%s7 + $0x8] sm:$0xff]
    %v199 = vld [vmem:[%s7 + $0x10] sm:$0xff]
    %v200 = vld [vmem:[%s7 + $0x18] sm:$0xff]
    %v201 = vld [vmem:[%s8] sm:$0x1]
    %v203 = vlaneseq
    %v204 = vshrl.u32 %v203, 7
    %v205 = vsub.s32 0, %v204
    %v206 = vrot.slane %v201, %v205
    %v209 = vsel %vm114, %v196, 0
    %211 = vmatprep.subr.mxu0 0.0
    %212 = vmatpush1.msra.mxu0 %v197
    %213 = vmatprep.subr.mxu0 0.0
    %214 = vmatpush1.msra.mxu0 %v198
    %215 = vmatprep.subr.mxu0 0.0
    %216 = vmatpush1.msra.mxu0 %v199
    %217 = vmatprep.subr.mxu0 0.0
    %218 = vmatpush1.msra.mxu0 %v200
    %219 = vmatprep.subr.mxu0 0.0
    %220 = vmatpush1.msra.mxu0 0.0
    %221 = vmatprep.subr.mxu0 0.0
    %222 = vmatpush1.msra.mxu0 0.0
    %223 = vmatprep.subr.mxu0 0.0
    %224 = vmatpush1.msra.mxu0 0.0
    %225 = vmatprep.subr.mxu0 0.0
    %226 = vmatpush1.msra.mxu0 0.0
    %227 = vmatprep.subr.mxu0 0.0
    %228 = vmatpush1.msra.mxu0 0.0
    %229 = vmatprep.subr.mxu0 0.0
    %230 = vmatpush1.msra.mxu0 0.0
    %231 = vmatprep.subr.mxu0 0.0
    %232 = vmatpush1.msra.mxu0 0.0
    %233 = vmatprep.subr.mxu0 0.0
    %234 = vmatpush1.msra.mxu0 0.0
    %235 = vmatprep.subr.mxu0 0.0
    %236 = vmatpush1.msra.mxu0 0.0
    %237 = vmatprep.subr.mxu0 0.0
    %238 = vmatpush1.msra.mxu0 0.0
    %239 = vmatprep.subr.mxu0 0.0
    %240 = vmatpush1.msra.mxu0 0.0
    %241 = vmatprep.subr.mxu0 0.0
    %242 = vmatpush1.msra.mxu0 0.0
    %243 = vmatprep.subr.mxu0 0.0
    %244 = vmatpush1.msra.mxu0 0.0
    %245 = vmatprep.subr.mxu0 0.0
    %246 = vmatpush1.msra.mxu0 0.0
    %247 = vmatprep.subr.mxu0 0.0
    %248 = vmatpush1.msra.mxu0 0.0
    %249 = vmatprep.subr.mxu0 0.0
    %250 = vmatpush1.msra.mxu0 0.0
    %251 = vmatprep.subr.mxu0 0.0
    %252 = vmatpush1.msra.mxu0 0.0
    %253 = vmatprep.subr.mxu0 0.0
    %254 = vmatpush1.msra.mxu0 0.0
    %255 = vmatprep.subr.mxu0 0.0
    %256 = vmatpush1.msra.mxu0 0.0
    %257 = vmatprep.subr.mxu0 0.0
    %258 = vmatpush1.msra.mxu0 0.0
    %259 = vmatprep.subr.mxu0 0.0
    %260 = vmatpush1.msra.mxu0 0.0
    %261 = vmatprep.subr.mxu0 0.0
    %262 = vmatpush1.msra.mxu0 0.0
    %263 = vmatprep.subr.mxu0 0.0
    %264 = vmatpush1.msra.mxu0 0.0
    %265 = vmatprep.subr.mxu0 0.0
    %266 = vmatpush1.msra.mxu0 0.0
    %267 = vmatprep.subr.mxu0 0.0
    %268 = vmatpush1.msra.mxu0 0.0
    %269 = vmatprep.subr.mxu0 0.0
    %270 = vmatpush1.msra.mxu0 0.0
    %271 = vmatprep.subr.mxu0 0.0
    %272 = vmatpush1.msra.mxu0 0.0
    %273 = vmatprep.subr.mxu0 0.0
    %274 = vmatpush1.msra.mxu0 0.0
    %275 = vmatprep.mubr.f32.mxu0 0.0
    %276 = vmatmul.mubr.f32.gmra.mrb[0].mxu0 %v209
    %v277 = vpop.f32.mrb[0].mxu0
    %v278 = vadd.f32 %v206, %v277
    %v279 = vpop.f32.mrb[0].mxu0
    %280 = vdwg.mxu0
    %v281 = vmul.f32 %v278, 0.35355338
    %v282 = vld [vmem:[%s9] sm:$0xff]
    %v283 = vld [vmem:[%s9 + $0x8] sm:$0xff]
    %v284 = vld [vmem:[%s9 + $0x10] sm:$0xff]
    %v285 = vld [vmem:[%s9 + $0x18] sm:$0xff]
    %v286 = vld [vmem:[%s10] sm:$0x1]
    %v288 = vlaneseq
    %v289 = vshrl.u32 %v288, 7
    %v290 = vsub.s32 0, %v289
    %v291 = vrot.slane %v286, %v290
    %293 = vmatprep.subr.mxu0 0.0
    %294 = vmatpush1.msra.mxu0 %v282
    %295 = vmatprep.subr.mxu0 0.0
    %296 = vmatpush1.msra.mxu0 %v283
    %297 = vmatprep.subr.mxu0 0.0
    %298 = vmatpush1.msra.mxu0 %v284
    %299 = vmatprep.subr.mxu0 0.0
    %300 = vmatpush1.msra.mxu0 %v285
    %301 = vmatprep.subr.mxu0 0.0
    %302 = vmatpush1.msra.mxu0 0.0
    %303 = vmatprep.subr.mxu0 0.0
    %304 = vmatpush1.msra.mxu0 0.0
    %305 = vmatprep.subr.mxu0 0.0
    %306 = vmatpush1.msra.mxu0 0.0
    %307 = vmatprep.subr.mxu0 0.0
    %308 = vmatpush1.msra.mxu0 0.0
    %309 = vmatprep.subr.mxu0 0.0
    %310 = vmatpush1.msra.mxu0 0.0
    %311 = vmatprep.subr.mxu0 0.0
    %312 = vmatpush1.msra.mxu0 0.0
    %313 = vmatprep.subr.mxu0 0.0
    %314 = vmatpush1.msra.mxu0 0.0
    %315 = vmatprep.subr.mxu0 0.0
    %316 = vmatpush1.msra.mxu0 0.0
    %317 = vmatprep.subr.mxu0 0.0
    %318 = vmatpush1.msra.mxu0 0.0
    %319 = vmatprep.subr.mxu0 0.0
    %320 = vmatpush1.msra.mxu0 0.0
    %321 = vmatprep.subr.mxu0 0.0
    %322 = vmatpush1.msra.mxu0 0.0
    %323 = vmatprep.subr.mxu0 0.0
    %324 = vmatpush1.msra.mxu0 0.0
    %325 = vmatprep.subr.mxu0 0.0
    %326 = vmatpush1.msra.mxu0 0.0
    %327 = vmatprep.subr.mxu0 0.0
    %328 = vmatpush1.msra.mxu0 0.0
    %329 = vmatprep.subr.mxu0 0.0
    %330 = vmatpush1.msra.mxu0 0.0
    %331 = vmatprep.subr.mxu0 0.0
    %332 = vmatpush1.msra.mxu0 0.0
    %333 = vmatprep.subr.mxu0 0.0
    %334 = vmatpush1.msra.mxu0 0.0
    %335 = vmatprep.subr.mxu0 0.0
    %336 = vmatpush1.msra.mxu0 0.0
    %337 = vmatprep.subr.mxu0 0.0
    %338 = vmatpush1.msra.mxu0 0.0
    %339 = vmatprep.subr.mxu0 0.0
    %340 = vmatpush1.msra.mxu0 0.0
    %341 = vmatprep.subr.mxu0 0.0
    %342 = vmatpush1.msra.mxu0 0.0
    %343 = vmatprep.subr.mxu0 0.0
    %344 = vmatpush1.msra.mxu0 0.0
    %345 = vmatprep.subr.mxu0 0.0
    %346 = vmatpush1.msra.mxu0 0.0
    %347 = vmatprep.subr.mxu0 0.0
    %348 = vmatpush1.msra.mxu0 0.0
    %349 = vmatprep.subr.mxu0 0.0
    %350 = vmatpush1.msra.mxu0 0.0
    %351 = vmatprep.subr.mxu0 0.0
    %352 = vmatpush1.msra.mxu0 0.0
    %353 = vmatprep.subr.mxu0 0.0
    %354 = vmatpush1.msra.mxu0 0.0
    %355 = vmatprep.subr.mxu0 0.0
    %356 = vmatpush1.msra.mxu0 0.0
    %357 = vmatprep.mubr.f32.mxu0 0.0
    %358 = vmatmul.mubr.f32.gmra.mrb[0].mxu0 %v209
    %v359 = vpop.f32.mrb[0].mxu0
    %v360 = vadd.f32 %v291, %v359
    %v361 = vpop.f32.mrb[0].mxu0
    %362 = vdwg.mxu0
    %v363 = vld [vmem:[%s11] sm:$0xff]
    %v364 = vld [vmem:[%s11 + $0x8] sm:$0xff]
    %v365 = vld [vmem:[%s11 + $0x10] sm:$0xff]
    %v366 = vld [vmem:[%s11 + $0x18] sm:$0xff]
    %v367 = vld [vmem:[%s12] sm:$0x1]
    %v369 = vlaneseq
    %v370 = vshrl.u32 %v369, 7
    %v371 = vsub.s32 0, %v370
    %v372 = vrot.slane %v367, %v371
    %374 = vmatprep.subr.mxu0 0.0
    %375 = vmatpush1.msra.mxu0 %v363
    %376 = vmatprep.subr.mxu0 0.0
    %377 = vmatpush1.msra.mxu0 %v364
    %378 = vmatprep.subr.mxu0 0.0
    %379 = vmatpush1.msra.mxu0 %v365
    %380 = vmatprep.subr.mxu0 0.0
    %381 = vmatpush1.msra.mxu0 %v366
    %382 = vmatprep.subr.mxu0 0.0
    %383 = vmatpush1.msra.mxu0 0.0
    %384 = vmatprep.subr.mxu0 0.0
    %385 = vmatpush1.msra.mxu0 0.0
    %386 = vmatprep.subr.mxu0 0.0
    %387 = vmatpush1.msra.mxu0 0.0
    %388 = vmatprep.subr.mxu0 0.0
    %389 = vmatpush1.msra.mxu0 0.0
    %390 = vmatprep.subr.mxu0 0.0
    %391 = vmatpush1.msra.mxu0 0.0
    %392 = vmatprep.subr.mxu0 0.0
    %393 = vmatpush1.msra.mxu0 0.0
    %394 = vmatprep.subr.mxu0 0.0
    %395 = vmatpush1.msra.mxu0 0.0
    %396 = vmatprep.subr.mxu0 0.0
    %397 = vmatpush1.msra.mxu0 0.0
    %398 = vmatprep.subr.mxu0 0.0
    %399 = vmatpush1.msra.mxu0 0.0
    %400 = vmatprep.subr.mxu0 0.0
    %401 = vmatpush1.msra.mxu0 0.0
    %402 = vmatprep.subr.mxu0 0.0
    %403 = vmatpush1.msra.mxu0 0.0
    %404 = vmatprep.subr.mxu0 0.0
    %405 = vmatpush1.msra.mxu0 0.0
    %406 = vmatprep.subr.mxu0 0.0
    %407 = vmatpush1.msra.mxu0 0.0
    %408 = vmatprep.subr.mxu0 0.0
    %409 = vmatpush1.msra.mxu0 0.0
    %410 = vmatprep.subr.mxu0 0.0
    %411 = vmatpush1.msra.mxu0 0.0
    %412 = vmatprep.subr.mxu0 0.0
    %413 = vmatpush1.msra.mxu0 0.0
    %414 = vmatprep.subr.mxu0 0.0
    %415 = vmatpush1.msra.mxu0 0.0
    %416 = vmatprep.subr.mxu0 0.0
    %417 = vmatpush1.msra.mxu0 0.0
    %418 = vmatprep.subr.mxu0 0.0
    %419 = vmatpush1.msra.mxu0 0.0
    %420 = vmatprep.subr.mxu0 0.0
    %421 = vmatpush1.msra.mxu0 0.0
    %422 = vmatprep.subr.mxu0 0.0
    %423 = vmatpush1.msra.mxu0 0.0
    %424 = vmatprep.subr.mxu0 0.0
    %425 = vmatpush1.msra.mxu0 0.0
    %426 = vmatprep.subr.mxu0 0.0
    %427 = vmatpush1.msra.mxu0 0.0
    %428 = vmatprep.subr.mxu0 0.0
    %429 = vmatpush1.msra.mxu0 0.0
    %430 = vmatprep.subr.mxu0 0.0
    %431 = vmatpush1.msra.mxu0 0.0
    %432 = vmatprep.subr.mxu0 0.0
    %433 = vmatpush1.msra.mxu0 0.0
    %434 = vmatprep.subr.mxu0 0.0
    %435 = vmatpush1.msra.mxu0 0.0
    %436 = vmatprep.subr.mxu0 0.0
    %437 = vmatpush1.msra.mxu0 0.0
    %438 = vmatprep.mubr.f32.mxu0 0.0
    %439 = vmatmul.mubr.f32.gmra.mrb[0].mxu0 %v209
    %v440 = vpop.f32.mrb[0].mxu0
    %v441 = vadd.f32 %v372, %v440
    %v442 = vpop.f32.mrb[0].mxu0
    %443 = vdwg.mxu0
    %v444 = vld [vmem:[#allocation5] sm:$0xff]
    %v445 = vld [vmem:[#allocation5 + $0x8] sm:$0xff]
    %v446 = vadd.f32 %v100, %v444
    %v447 = vadd.f32 %v101, %v445
    %v448 = vadd.f32 %v102, %v444
    %v449 = vadd.f32 %v103, %v445
    %v451 = vsel %vm114, %v446, 0
    %v454 = vsel %vm114, %v447, 0
    %v457 = vsel %vm114, %v448, 0
    %v460 = vsel %vm114, %v449, 0
    %462 = vmatprep.subr.mxu0 0.0
    %463 = vmatpush1.msra.mxu0 %v282
    %464 = vmatprep.subr.mxu0 0.0
    %465 = vmatpush1.msra.mxu0 %v283
    %466 = vmatprep.subr.mxu0 0.0
    %467 = vmatpush1.msra.mxu0 %v284
    %468 = vmatprep.subr.mxu0 0.0
    %469 = vmatpush1.msra.mxu0 %v285
    %470 = vmatprep.subr.mxu0 0.0
    %471 = vmatpush1.msra.mxu0 0.0
    %472 = vmatprep.subr.mxu0 0.0
    %473 = vmatpush1.msra.mxu0 0.0
    %474 = vmatprep.subr.mxu0 0.0
    %475 = vmatpush1.msra.mxu0 0.0
    %476 = vmatprep.subr.mxu0 0.0
    %477 = vmatpush1.msra.mxu0 0.0
    %478 = vmatprep.subr.mxu0 0.0
    %479 = vmatpush1.msra.mxu0 0.0
    %480 = vmatprep.subr.mxu0 0.0
    %481 = vmatpush1.msra.mxu0 0.0
    %482 = vmatprep.subr.mxu0 0.0
    %483 = vmatpush1.msra.mxu0 0.0
    %484 = vmatprep.subr.mxu0 0.0
    %485 = vmatpush1.msra.mxu0 0.0
    %486 = vmatprep.subr.mxu0 0.0
    %487 = vmatpush1.msra.mxu0 0.0
    %488 = vmatprep.subr.mxu0 0.0
    %489 = vmatpush1.msra.mxu0 0.0
    %490 = vmatprep.subr.mxu0 0.0
    %491 = vmatpush1.msra.mxu0 0.0
    %492 = vmatprep.subr.mxu0 0.0
    %493 = vmatpush1.msra.mxu0 0.0
    %494 = vmatprep.subr.mxu0 0.0
    %495 = vmatpush1.msra.mxu0 0.0
    %496 = vmatprep.subr.mxu0 0.0
    %497 = vmatpush1.msra.mxu0 0.0
    %498 = vmatprep.subr.mxu0 0.0
    %499 = vmatpush1.msra.mxu0 0.0
    %500 = vmatprep.subr.mxu0 0.0
    %501 = vmatpush1.msra.mxu0 0.0
    %502 = vmatprep.subr.mxu0 0.0
    %503 = vmatpush1.msra.mxu0 0.0
    %504 = vmatprep.subr.mxu0 0.0
    %505 = vmatpush1.msra.mxu0 0.0
    %506 = vmatprep.subr.mxu0 0.0
    %507 = vmatpush1.msra.mxu0 0.0
    %508 = vmatprep.subr.mxu0 0.0
    %509 = vmatpush1.msra.mxu0 0.0
    %510 = vmatprep.subr.mxu0 0.0
    %511 = vmatpush1.msra.mxu0 0.0
    %512 = vmatprep.subr.mxu0 0.0
    %513 = vmatpush1.msra.mxu0 0.0
    %514 = vmatprep.subr.mxu0 0.0
    %515 = vmatpush1.msra.mxu0 0.0
    %516 = vmatprep.subr.mxu0 0.0
    %517 = vmatpush1.msra.mxu0 0.0
    %518 = vmatprep.subr.mxu0 0.0
    %519 = vmatpush1.msra.mxu0 0.0
    %520 = vmatprep.subr.mxu0 0.0
    %521 = vmatpush1.msra.mxu0 0.0
    %522 = vmatprep.subr.mxu0 0.0
    %523 = vmatpush1.msra.mxu0 0.0
    %524 = vmatprep.subr.mxu0 0.0
    %525 = vmatpush1.msra.mxu0 0.0
    %526 = vmatprep.mubr.f32.mxu0 0.0
    %527 = vmatmul.mubr.f32.gmra.mrb[0].mxu0 %v451
    %v528 = vpop.f32.mrb[0].mxu0
    %v529 = vadd.f32 %v291, %v528
    %v530 = vpop.f32.mrb[0].mxu0
    %531 = vmatprep.mubr.f32.mxu0 0.0
    %532 = vmatmul.mubr.f32.gmra.mrb[0].mxu0 %v454
    %v533 = vpop.f32.mrb[0].mxu0
    %v534 = vadd.f32 %v291, %v533
    %v535 = vpop.f32.mrb[0].mxu0
    %536 = vmatprep.mubr.f32.mxu0 0.0
    %537 = vmatmul.mubr.f32.gmra.mrb[0].mxu0 %v457
    %v538 = vpop.f32.mrb[0].mxu0
    %v539 = vadd.f32 %v291, %v538
    %v540 = vpop.f32.mrb[0].mxu0
    %541 = vmatprep.mubr.f32.mxu0 0.0
    %542 = vmatmul.mubr.f32.gmra.mrb[0].mxu0 %v460
    %v543 = vpop.f32.mrb[0].mxu0
    %v544 = vadd.f32 %v291, %v543
    %v545 = vpop.f32.mrb[0].mxu0
    %546 = vdwg.mxu0
    %547 = vmatprep.subr.mxu0 0.0
    %548 = vmatpush1.msra.mxu0 %v363
    %549 = vmatprep.subr.mxu0 0.0
    %550 = vmatpush1.msra.mxu0 %v364
    %551 = vmatprep.subr.mxu0 0.0
    %552 = vmatpush1.msra.mxu0 %v365
    %553 = vmatprep.subr.mxu0 0.0
    %554 = vmatpush1.msra.mxu0 %v366
    %555 = vmatprep.subr.mxu0 0.0
    %556 = vmatpush1.msra.mxu0 0.0
    %557 = vmatprep.subr.mxu0 0.0
    %558 = vmatpush1.msra.mxu0 0.0
    %559 = vmatprep.subr.mxu0 0.0
    %560 = vmatpush1.msra.mxu0 0.0
    %561 = vmatprep.subr.mxu0 0.0
    %562 = vmatpush1.msra.mxu0 0.0
    %563 = vmatprep.subr.mxu0 0.0
    %564 = vmatpush1.msra.mxu0 0.0
    %565 = vmatprep.subr.mxu0 0.0
    %566 = vmatpush1.msra.mxu0 0.0
    %567 = vmatprep.subr.mxu0 0.0
    %568 = vmatpush1.msra.mxu0 0.0
    %569 = vmatprep.subr.mxu0 0.0
    %570 = vmatpush1.msra.mxu0 0.0
    %571 = vmatprep.subr.mxu0 0.0
    %572 = vmatpush1.msra.mxu0 0.0
    %573 = vmatprep.subr.mxu0 0.0
    %574 = vmatpush1.msra.mxu0 0.0
    %575 = vmatprep.subr.mxu0 0.0
    %576 = vmatpush1.msra.mxu0 0.0
    %577 = vmatprep.subr.mxu0 0.0
    %578 = vmatpush1.msra.mxu0 0.0
    %579 = vmatprep.subr.mxu0 0.0
    %580 = vmatpush1.msra.mxu0 0.0
    %581 = vmatprep.subr.mxu0 0.0
    %582 = vmatpush1.msra.mxu0 0.0
    %583 = vmatprep.subr.mxu0 0.0
    %584 = vmatpush1.msra.mxu0 0.0
    %585 = vmatprep.subr.mxu0 0.0
    %586 = vmatpush1.msra.mxu0 0.0
    %587 = vmatprep.subr.mxu0 0.0
    %588 = vmatpush1.msra.mxu0 0.0
    %589 = vmatprep.subr.mxu0 0.0
    %590 = vmatpush1.msra.mxu0 0.0
    %591 = vmatprep.subr.mxu0 0.0
    %592 = vmatpush1.msra.mxu0 0.0
    %593 = vmatprep.subr.mxu0 0.0
    %594 = vmatpush1.msra.mxu0 0.0
    %595 = vmatprep.subr.mxu0 0.0
    %596 = vmatpush1.msra.mxu0 0.0
    %597 = vmatprep.subr.mxu0 0.0
    %598 = vmatpush1.msra.mxu0 0.0
    %599 = vmatprep.subr.mxu0 0.0
    %600 = vmatpush1.msra.mxu0 0.0
    %601 = vmatprep.subr.mxu0 0.0
    %602 = vmatpush1.msra.mxu0 0.0
    %603 = vmatprep.subr.mxu0 0.0
    %604 = vmatpush1.msra.mxu0 0.0
    %605 = vmatprep.subr.mxu0 0.0
    %606 = vmatpush1.msra.mxu0 0.0
    %607 = vmatprep.subr.mxu0 0.0
    %608 = vmatpush1.msra.mxu0 0.0
    %609 = vmatprep.subr.mxu0 0.0
    %610 = vmatpush1.msra.mxu0 0.0
    %611 = vmatprep.mubr.f32.mxu0 0.0
    %612 = vmatmul.mubr.f32.gmra.mrb[0].mxu0 %v451
    %v613 = vpop.f32.mrb[0].mxu0
    %v614 = vadd.f32 %v372, %v613
    %v615 = vpop.f32.mrb[0].mxu0
    %616 = vmatprep.mubr.f32.mxu0 0.0
    %617 = vmatmul.mubr.f32.gmra.mrb[0].mxu0 %v454
    %v618 = vpop.f32.mrb[0].mxu0
    %v619 = vadd.f32 %v372, %v618
    %v620 = vpop.f32.mrb[0].mxu0
    %621 = vmatprep.mubr.f32.mxu0 0.0
    %622 = vmatmul.mubr.f32.gmra.mrb[0].mxu0 %v457
    %v623 = vpop.f32.mrb[0].mxu0
    %v624 = vadd.f32 %v372, %v623
    %v625 = vpop.f32.mrb[0].mxu0
    %626 = vmatprep.mubr.f32.mxu0 0.0
    %627 = vmatmul.mubr.f32.gmra.mrb[0].mxu0 %v460
    %v628 = vpop.f32.mrb[0].mxu0
    %v629 = vadd.f32 %v372, %v628
    %v630 = vpop.f32.mrb[0].mxu0
    %631 = vdwg.mxu0
    %vm632 = vcmask 15360
    %v634 = vsel %vm632, %v105, 0
    %v637 = vsel %vm632, %v106, 0
    %v640 = vsel %vm632, %v107, 0
    %v643 = vsel %vm632, %v108, 0
    %vm645 = vcmask 1041408
    %v647 = vsel %vm645, %v281, 0
    %649 = vmatprep.subr.mxu0 0.0
    %650 = vmatpush1.msra.mxu0 %v647
    %651 = vmatprep.subr.mxu0 0.0
    %652 = vmatpush1.msra.mxu0 0.0
    %653 = vmatprep.subr.mxu0 0.0
    %654 = vmatpush1.msra.mxu0 0.0
    %655 = vmatprep.subr.mxu0 0.0
    %656 = vmatpush1.msra.mxu0 0.0
    %657 = vmatprep.subr.mxu0 0.0
    %658 = vmatpush1.msra.mxu0 0.0
    %659 = vmatprep.subr.mxu0 0.0
    %660 = vmatpush1.msra.mxu0 0.0
    %661 = vmatprep.subr.mxu0 0.0
    %662 = vmatpush1.msra.mxu0 0.0
    %663 = vmatprep.subr.mxu0 0.0
    %664 = vmatpush1.msra.mxu0 0.0
    %665 = vmatprep.subr.mxu0 0.0
    %666 = vmatpush1.msra.mxu0 0.0
    %667 = vmatprep.subr.mxu0 0.0
    %668 = vmatpush1.msra.mxu0 0.0
    %669 = vmatprep.subr.mxu0 0.0
    %670 = vmatpush1.msra.mxu0 0.0
    %671 = vmatprep.subr.mxu0 0.0
    %672 = vmatpush1.msra.mxu0 0.0
    %673 = vmatprep.subr.mxu0 0.0
    %674 = vmatpush1.msra.mxu0 0.0
    %675 = vmatprep.subr.mxu0 0.0
    %676 = vmatpush1.msra.mxu0 0.0
    %677 = vmatprep.subr.mxu0 0.0
    %678 = vmatpush1.msra.mxu0 0.0
    %679 = vmatprep.subr.mxu0 0.0
    %680 = vmatpush1.msra.mxu0 0.0
    %681 = vmatprep.subr.mxu0 0.0
    %682 = vmatpush1.msra.mxu0 0.0
    %683 = vmatprep.subr.mxu0 0.0
    %684 = vmatpush1.msra.mxu0 0.0
    %685 = vmatprep.subr.mxu0 0.0
    %686 = vmatpush1.msra.mxu0 0.0
    %687 = vmatprep.subr.mxu0 0.0
    %688 = vmatpush1.msra.mxu0 0.0
    %689 = vmatprep.subr.mxu0 0.0
    %690 = vmatpush1.msra.mxu0 0.0
    %691 = vmatprep.subr.mxu0 0.0
    %692 = vmatpush1.msra.mxu0 0.0
    %693 = vmatprep.subr.mxu0 0.0
    %694 = vmatpush1.msra.mxu0 0.0
    %695 = vmatprep.subr.mxu0 0.0
    %696 = vmatpush1.msra.mxu0 0.0
    %697 = vmatprep.subr.mxu0 0.0
    %698 = vmatpush1.msra.mxu0 0.0
    %699 = vmatprep.subr.mxu0 0.0
    %700 = vmatpush1.msra.mxu0 0.0
    %701 = vmatprep.subr.mxu0 0.0
    %702 = vmatpush1.msra.mxu0 0.0
    %703 = vmatprep.subr.mxu0 0.0
    %704 = vmatpush1.msra.mxu0 0.0
    %705 = vmatprep.subr.mxu0 0.0
    %706 = vmatpush1.msra.mxu0 0.0
    %707 = vmatprep.subr.mxu0 0.0
    %708 = vmatpush1.msra.mxu0 0.0
    %709 = vmatprep.subr.mxu0 0.0
    %710 = vmatpush1.msra.mxu0 0.0
    %711 = vmatprep.subr.mxu0 0.0
    %712 = vmatpush1.msra.mxu0 0.0
    %713 = vmatprep.mubr.f32.mxu0 0.0
    %714 = vmatmul.mubr.f32.gmra.mrb[0].mxu0 %v634
    %v715 = vpop.f32.mrb[0].mxu0
    %v716 = vadd.f32 0.0, %v715
    %v717 = vpop.f32.mrb[0].mxu0
    %718 = vmatprep.mubr.f32.mxu0 0.0
    %719 = vmatmul.mubr.f32.gmra.mrb[0].mxu0 %v637
    %v720 = vpop.f32.mrb[0].mxu0
    %v721 = vadd.f32 0.0, %v720
    %v722 = vpop.f32.mrb[0].mxu0
    %723 = vmatprep.mubr.f32.mxu0 0.0
    %724 = vmatmul.mubr.f32.gmra.mrb[0].mxu0 %v640
    %v725 = vpop.f32.mrb[0].mxu0
    %v726 = vadd.f32 0.0, %v725
    %v727 = vpop.f32.mrb[0].mxu0
    %728 = vmatprep.mubr.f32.mxu0 0.0
    %729 = vmatmul.mubr.f32.gmra.mrb[0].mxu0 %v643
    %v730 = vpop.f32.mrb[0].mxu0
    %v731 = vadd.f32 0.0, %v730
    %v732 = vpop.f32.mrb[0].mxu0
    %733 = vdwg.mxu0
    %v734 = vmul.f32 %v529, %v716
    %v735 = vmul.f32 %v534, %v721
    %v736 = vmul.f32 %v539, %v726
    %v737 = vmul.f32 %v544, %v731
    %v739 = vsel %vm114, %v734, 0
    %v742 = vsel %vm114, %v735, 0
    %v745 = vsel %vm114, %v736, 0
    %v748 = vsel %vm114, %v737, 0
    %750 = vmatprep.subr.mxu0 0.0
    %751 = vmatpush1.msra.mxu0 %v109
    %752 = vmatprep.subr.mxu0 0.0
    %753 = vmatpush1.msra.mxu0 %v110
    %754 = vmatprep.subr.mxu0 0.0
    %755 = vmatpush1.msra.mxu0 %v111
    %756 = vmatprep.subr.mxu0 0.0
    %757 = vmatpush1.msra.mxu0 %v112
    %758 = vmatprep.subr.mxu0 0.0
    %759 = vmatpush1.msra.mxu0 0.0
    %760 = vmatprep.subr.mxu0 0.0
    %761 = vmatpush1.msra.mxu0 0.0
    %762 = vmatprep.subr.mxu0 0.0
    %763 = vmatpush1.msra.mxu0 0.0
    %764 = vmatprep.subr.mxu0 0.0
    %765 = vmatpush1.msra.mxu0 0.0
    %766 = vmatprep.subr.mxu0 0.0
    %767 = vmatpush1.msra.mxu0 0.0
    %768 = vmatprep.subr.mxu0 0.0
    %769 = vmatpush1.msra.mxu0 0.0
    %770 = vmatprep.subr.mxu0 0.0
    %771 = vmatpush1.msra.mxu0 0.0
    %772 = vmatprep.subr.mxu0 0.0
    %773 = vmatpush1.msra.mxu0 0.0
    %774 = vmatprep.subr.mxu0 0.0
    %775 = vmatpush1.msra.mxu0 0.0
    %776 = vmatprep.subr.mxu0 0.0
    %777 = vmatpush1.msra.mxu0 0.0
    %778 = vmatprep.subr.mxu0 0.0
    %779 = vmatpush1.msra.mxu0 0.0
    %780 = vmatprep.subr.mxu0 0.0
    %781 = vmatpush1.msra.mxu0 0.0
    %782 = vmatprep.subr.mxu0 0.0
    %783 = vmatpush1.msra.mxu0 0.0
    %784 = vmatprep.subr.mxu0 0.0
    %785 = vmatpush1.msra.mxu0 0.0
    %786 = vmatprep.subr.mxu0 0.0
    %787 = vmatpush1.msra.mxu0 0.0
    %788 = vmatprep.subr.mxu0 0.0
    %789 = vmatpush1.msra.mxu0 0.0
    %790 = vmatprep.subr.mxu0 0.0
    %791 = vmatpush1.msra.mxu0 0.0
    %792 = vmatprep.subr.mxu0 0.0
    %793 = vmatpush1.msra.mxu0 0.0
    %794 = vmatprep.subr.mxu0 0.0
    %795 = vmatpush1.msra.mxu0 0.0
    %796 = vmatprep.subr.mxu0 0.0
    %797 = vmatpush1.msra.mxu0 0.0
    %798 = vmatprep.subr.mxu0 0.0
    %799 = vmatpush1.msra.mxu0 0.0
    %800 = vmatprep.subr.mxu0 0.0
    %801 = vmatpush1.msra.mxu0 0.0
    %802 = vmatprep.subr.mxu0 0.0
    %803 = vmatpush1.msra.mxu0 0.0
    %804 = vmatprep.subr.mxu0 0.0
    %805 = vmatpush1.msra.mxu0 0.0
    %806 = vmatprep.subr.mxu0 0.0
    %807 = vmatpush1.msra.mxu0 0.0
    %808 = vmatprep.subr.mxu0 0.0
    %809 = vmatpush1.msra.mxu0 0.0
    %810 = vmatprep.subr.mxu0 0.0
    %811 = vmatpush1.msra.mxu0 0.0
    %812 = vmatprep.subr.mxu0 0.0
    %813 = vmatpush1.msra.mxu0 0.0
    %814 = vmatprep.mubr.f32.mxu0 0.0
    %815 = vmatmul.mubr.f32.gmra.mrb[0].mxu0 %v739
    %v816 = vpop.f32.mrb[0].mxu0
    %v817 = vadd.f32 0.0, %v816
    %v818 = vpop.f32.mrb[0].mxu0
    %819 = vmatprep.mubr.f32.mxu0 0.0
    %820 = vmatmul.mubr.f32.gmra.mrb[0].mxu0 %v742
    %v821 = vpop.f32.mrb[0].mxu0
    %v822 = vadd.f32 0.0, %v821
    %v823 = vpop.f32.mrb[0].mxu0
    %824 = vmatprep.mubr.f32.mxu0 0.0
    %825 = vmatmul.mubr.f32.gmra.mrb[0].mxu0 %v745
    %v826 = vpop.f32.mrb[0].mxu0
    %v827 = vadd.f32 0.0, %v826
    %v828 = vpop.f32.mrb[0].mxu0
    %829 = vmatprep.mubr.f32.mxu0 0.0
    %830 = vmatmul.mubr.f32.gmra.mrb[0].mxu0 %v748
    %v831 = vpop.f32.mrb[0].mxu0
    %v832 = vadd.f32 0.0, %v831
    %v833 = vpop.f32.mrb[0].mxu0
    %834 = vdwg.mxu0
    %v835 = vmul.f32 %v360, %v281
    %v837 = vsel %vm114, %v835, 0
    %839 = vmatprep.subr.mxu0 0.0
    %840 = vmatpush1.msra.mxu0 %v109
    %841 = vmatprep.subr.mxu0 0.0
    %842 = vmatpush1.msra.mxu0 %v110
    %843 = vmatprep.subr.mxu0 0.0
    %844 = vmatpush1.msra.mxu0 %v111
    %845 = vmatprep.subr.mxu0 0.0
    %846 = vmatpush1.msra.mxu0 %v112
    %847 = vmatprep.subr.mxu0 0.0
    %848 = vmatpush1.msra.mxu0 0.0
    %849 = vmatprep.subr.mxu0 0.0
    %850 = vmatpush1.msra.mxu0 0.0
    %851 = vmatprep.subr.mxu0 0.0
    %852 = vmatpush1.msra.mxu0 0.0
    %853 = vmatprep.subr.mxu0 0.0
    %854 = vmatpush1.msra.mxu0 0.0
    %855 = vmatprep.subr.mxu0 0.0
    %856 = vmatpush1.msra.mxu0 0.0
    %857 = vmatprep.subr.mxu0 0.0
    %858 = vmatpush1.msra.mxu0 0.0
    %859 = vmatprep.subr.mxu0 0.0
    %860 = vmatpush1.msra.mxu0 0.0
    %861 = vmatprep.subr.mxu0 0.0
    %862 = vmatpush1.msra.mxu0 0.0
    %863 = vmatprep.subr.mxu0 0.0
    %864 = vmatpush1.msra.mxu0 0.0
    %865 = vmatprep.subr.mxu0 0.0
    %866 = vmatpush1.msra.mxu0 0.0
    %867 = vmatprep.subr.mxu0 0.0
    %868 = vmatpush1.msra.mxu0 0.0
    %869 = vmatprep.subr.mxu0 0.0
    %870 = vmatpush1.msra.mxu0 0.0
    %871 = vmatprep.subr.mxu0 0.0
    %872 = vmatpush1.msra.mxu0 0.0
    %873 = vmatprep.subr.mxu0 0.0
    %874 = vmatpush1.msra.mxu0 0.0
    %875 = vmatprep.subr.mxu0 0.0
    %876 = vmatpush1.msra.mxu0 0.0
    %877 = vmatprep.subr.mxu0 0.0
    %878 = vmatpush1.msra.mxu0 0.0
    %879 = vmatprep.subr.mxu0 0.0
    %880 = vmatpush1.msra.mxu0 0.0
    %881 = vmatprep.subr.mxu0 0.0
    %882 = vmatpush1.msra.mxu0 0.0
    %883 = vmatprep.subr.mxu0 0.0
    %884 = vmatpush1.msra.mxu0 0.0
    %885 = vmatprep.subr.mxu0 0.0
    %886 = vmatpush1.msra.mxu0 0.0
    %887 = vmatprep.subr.mxu0 0.0
    %888 = vmatpush1.msra.mxu0 0.0
    %889 = vmatprep.subr.mxu0 0.0
    %890 = vmatpush1.msra.mxu0 0.0
    %891 = vmatprep.subr.mxu0 0.0
    %892 = vmatpush1.msra.mxu0 0.0
    %893 = vmatprep.subr.mxu0 0.0
    %894 = vmatpush1.msra.mxu0 0.0
    %895 = vmatprep.subr.mxu0 0.0
    %896 = vmatpush1.msra.mxu0 0.0
    %897 = vmatprep.subr.mxu0 0.0
    %898 = vmatpush1.msra.mxu0 0.0
    %899 = vmatprep.subr.mxu0 0.0
    %900 = vmatpush1.msra.mxu0 0.0
    %901 = vmatprep.subr.mxu0 0.0
    %902 = vmatpush1.msra.mxu0 0.0
    %903 = vmatprep.mubr.f32.mxu0 0.0
    %904 = vmatmul.mubr.f32.gmra.mrb[0].mxu0 %v837
    %v905 = vpop.f32.mrb[0].mxu0
    %v906 = vadd.f32 0.0, %v905
    %v907 = vpop.f32.mrb[0].mxu0
    %908 = vdwg.mxu0
    %vm909 = vcmask 31744
    %v910 = vsel %vm909, %v817, -inf
    %v911 = vsel %vm909, %v822, -inf
    %v912 = vsel %vm909, %v827, -inf
    %v913 = vsel %vm909, %v832, -inf
    %v914 = vmax.f32 %v910, %v911
    %v915 = vmax.f32 %v912, %v913
    %v916 = vmax.f32 %v914, %v915
    %v917 = vrot.slane %v916, 4
    %v918 = vmax.f32 %v916, %v917
    %v919 = vrot.slane %v918, 2
    %v920 = vmax.f32 %v918, %v919
    %v921 = vrot.slane %v920, 1
    %v922 = vmax.f32 %v920, %v921
    %vm923 = vcmask 25600
    %v924 = vsel %vm923, %v906, -inf
    %v925 = vrot.slane %v924, 4
    %v926 = vmax.f32 %v924, %v925
    %v927 = vrot.slane %v926, 2
    %v928 = vmax.f32 %v926, %v927
    %v929 = vrot.slane %v928, 1
    %v930 = vmax.f32 %v928, %v929
    %v931 = vmax.f32 %v922, %v930
    %v932 = vsub.f32 %v817, %v931
    %v933 = vsub.f32 %v822, %v931
    %v934 = vsub.f32 %v827, %v931
    %v935 = vsub.f32 %v832, %v931
    %v936 = vmul.f32 %v932, 1.442695
    %v937 = vpow.pop %v936
    %v938 = vmul.f32 %v933, 1.442695
    %v939 = vpow.pop %v938
    %v940 = vmul.f32 %v934, 1.442695
    %v941 = vpow.pop %v940
    %v942 = vmul.f32 %v935, 1.442695
    %v943 = vpow.pop %v942
    %v944 = vsub.f32 %v906, %v931
    %v945 = vmul.f32 %v944, 1.442695
    %v946 = vpow.pop %v945
    %947 = vmatprep.subr.mxu0 0.0
    %948 = vmatpush1.msra.mxu0 %v937
    %949 = vmatprep.subr.mxu0 0.0
    %950 = vmatpush1.msra.mxu0 %v939
    %951 = vmatprep.subr.mxu0 0.0
    %952 = vmatpush1.msra.mxu0 %v941
    %953 = vmatprep.subr.mxu0 0.0
    %954 = vmatpush1.msra.mxu0 %v943
    %955 = vmatprep.subr.mxu0 0.0
    %956 = vmatpush1.msra.mxu0 0.0
    %957 = vmatprep.subr.mxu0 0.0
    %958 = vmatpush1.msra.mxu0 0.0
    %959 = vmatprep.subr.mxu0 0.0
    %960 = vmatpush1.msra.mxu0 0.0
    %961 = vmatprep.subr.mxu0 0.0
    %962 = vmatpush1.msra.mxu0 0.0
    %963 = vmatprep.subr.mxu0 0.0
    %964 = vmatpush1.msra.mxu0 0.0
    %965 = vmatprep.subr.mxu0 0.0
    %966 = vmatpush1.msra.mxu0 0.0
    %967 = vmatprep.subr.mxu0 0.0
    %968 = vmatpush1.msra.mxu0 0.0
    %969 = vmatprep.subr.mxu0 0.0
    %970 = vmatpush1.msra.mxu0 0.0
    %971 = vmatprep.subr.mxu0 0.0
    %972 = vmatpush1.msra.mxu0 0.0
    %973 = vmatprep.subr.mxu0 0.0
    %974 = vmatpush1.msra.mxu0 0.0
    %975 = vmatprep.subr.mxu0 0.0
    %976 = vmatpush1.msra.mxu0 0.0
    %977 = vmatprep.subr.mxu0 0.0
    %978 = vmatpush1.msra.mxu0 0.0
    %979 = vmatprep.subr.mxu0 0.0
    %980 = vmatpush1.msra.mxu0 0.0
    %981 = vmatprep.subr.mxu0 0.0
    %982 = vmatpush1.msra.mxu0 0.0
    %983 = vmatprep.subr.mxu0 0.0
    %984 = vmatpush1.msra.mxu0 0.0
    %985 = vmatprep.subr.mxu0 0.0
    %986 = vmatpush1.msra.mxu0 0.0
    %987 = vmatprep.subr.mxu0 0.0
    %988 = vmatpush1.msra.mxu0 0.0
    %989 = vmatprep.subr.mxu0 0.0
    %990 = vmatpush1.msra.mxu0 0.0
    %991 = vmatprep.subr.mxu0 0.0
    %992 = vmatpush1.msra.mxu0 0.0
    %993 = vmatprep.subr.mxu0 0.0
    %994 = vmatpush1.msra.mxu0 0.0
    %995 = vmatprep.subr.mxu0 0.0
    %996 = vmatpush1.msra.mxu0 0.0
    %997 = vmatprep.subr.mxu0 0.0
    %998 = vmatpush1.msra.mxu0 0.0
    %999 = vmatprep.subr.mxu0 0.0
    %1000 = vmatpush1.msra.mxu0 0.0
    %1001 = vmatprep.subr.mxu0 0.0
    %1002 = vmatpush1.msra.mxu0 0.0
    %1003 = vmatprep.subr.mxu0 0.0
    %1004 = vmatpush1.msra.mxu0 0.0
    %1005 = vmatprep.subr.mxu0 0.0
    %1006 = vmatpush1.msra.mxu0 0.0
    %1007 = vmatprep.subr.mxu0 0.0
    %1008 = vmatpush1.msra.mxu0 0.0
    %1009 = vmatprep.subr.mxu0 0.0
    %1010 = vmatpush1.msra.mxu0 0.0
    %1011 = vmatprep.mubr.f32.mxu0 0.0
    %1012 = vmatmul.mubr.f32.gmra.mrb[0].mxu0 %v116
    %v1013 = vpop.f32.mrb[0].mxu0
    %v1014 = vadd.f32 %v946, %v1013
    %v1015 = vpop.f32.mrb[0].mxu0
    %1016 = vdwg.mxu0
    %v1017 = vmax.f32 %v1014, 1e-30
    %v1018 = vrcp.pop %v1017
    %v1019 = vmul.f32 %v1017, %v1018
    %v1020 = vsub.f32 2.0, %v1019
    %v1021 = vmul.f32 %v1018, %v1020
    %v1023 = vsel %vm909, %v937, 0
    %v1026 = vsel %vm909, %v939, 0
    %v1029 = vsel %vm909, %v941, 0
    %v1032 = vsel %vm909, %v943, 0
    %vm1034 = vcmask 1043456
    %v1036 = vsel %vm1034, %v113, 0
    %1038 = vmatprep.subr.mxu0 0.0
    %1039 = vmatpush1.msra.mxu0 %v1036
    %1040 = vmatprep.subr.mxu0 0.0
    %1041 = vmatpush1.msra.mxu0 0.0
    %1042 = vmatprep.subr.mxu0 0.0
    %1043 = vmatpush1.msra.mxu0 0.0
    %1044 = vmatprep.subr.mxu0 0.0
    %1045 = vmatpush1.msra.mxu0 0.0
    %1046 = vmatprep.subr.mxu0 0.0
    %1047 = vmatpush1.msra.mxu0 0.0
    %1048 = vmatprep.subr.mxu0 0.0
    %1049 = vmatpush1.msra.mxu0 0.0
    %1050 = vmatprep.subr.mxu0 0.0
    %1051 = vmatpush1.msra.mxu0 0.0
    %1052 = vmatprep.subr.mxu0 0.0
    %1053 = vmatpush1.msra.mxu0 0.0
    %1054 = vmatprep.subr.mxu0 0.0
    %1055 = vmatpush1.msra.mxu0 0.0
    %1056 = vmatprep.subr.mxu0 0.0
    %1057 = vmatpush1.msra.mxu0 0.0
    %1058 = vmatprep.subr.mxu0 0.0
    %1059 = vmatpush1.msra.mxu0 0.0
    %1060 = vmatprep.subr.mxu0 0.0
    %1061 = vmatpush1.msra.mxu0 0.0
    %1062 = vmatprep.subr.mxu0 0.0
    %1063 = vmatpush1.msra.mxu0 0.0
    %1064 = vmatprep.subr.mxu0 0.0
    %1065 = vmatpush1.msra.mxu0 0.0
    %1066 = vmatprep.subr.mxu0 0.0
    %1067 = vmatpush1.msra.mxu0 0.0
    %1068 = vmatprep.subr.mxu0 0.0
    %1069 = vmatpush1.msra.mxu0 0.0
    %1070 = vmatprep.subr.mxu0 0.0
    %1071 = vmatpush1.msra.mxu0 0.0
    %1072 = vmatprep.subr.mxu0 0.0
    %1073 = vmatpush1.msra.mxu0 0.0
    %1074 = vmatprep.subr.mxu0 0.0
    %1075 = vmatpush1.msra.mxu0 0.0
    %1076 = vmatprep.subr.mxu0 0.0
    %1077 = vmatpush1.msra.mxu0 0.0
    %1078 = vmatprep.subr.mxu0 0.0
    %1079 = vmatpush1.msra.mxu0 0.0
    %1080 = vmatprep.subr.mxu0 0.0
    %1081 = vmatpush1.msra.mxu0 0.0
    %1082 = vmatprep.subr.mxu0 0.0
    %1083 = vmatpush1.msra.mxu0 0.0
    %1084 = vmatprep.subr.mxu0 0.0
    %1085 = vmatpush1.msra.mxu0 0.0
    %1086 = vmatprep.subr.mxu0 0.0
    %1087 = vmatpush1.msra.mxu0 0.0
    %1088 = vmatprep.subr.mxu0 0.0
    %1089 = vmatpush1.msra.mxu0 0.0
    %1090 = vmatprep.subr.mxu0 0.0
    %1091 = vmatpush1.msra.mxu0 0.0
    %1092 = vmatprep.subr.mxu0 0.0
    %1093 = vmatpush1.msra.mxu0 0.0
    %1094 = vmatprep.subr.mxu0 0.0
    %1095 = vmatpush1.msra.mxu0 0.0
    %1096 = vmatprep.subr.mxu0 0.0
    %1097 = vmatpush1.msra.mxu0 0.0
    %1098 = vmatprep.subr.mxu0 0.0
    %1099 = vmatpush1.msra.mxu0 0.0
    %1100 = vmatprep.subr.mxu0 0.0
    %1101 = vmatpush1.msra.mxu0 0.0
    %1102 = vmatprep.mubr.f32.mxu0 0.0
    %1103 = vmatmul.mubr.f32.gmra.mrb[0].mxu0 %v1023
    %v1104 = vpop.f32.mrb[0].mxu0
    %v1105 = vadd.f32 0.0, %v1104
    %v1106 = vpop.f32.mrb[0].mxu0
    %1107 = vmatprep.mubr.f32.mxu0 0.0
    %1108 = vmatmul.mubr.f32.gmra.mrb[0].mxu0 %v1026
    %v1109 = vpop.f32.mrb[0].mxu0
    %v1110 = vadd.f32 0.0, %v1109
    %v1111 = vpop.f32.mrb[0].mxu0
    %1112 = vmatprep.mubr.f32.mxu0 0.0
    %1113 = vmatmul.mubr.f32.gmra.mrb[0].mxu0 %v1029
    %v1114 = vpop.f32.mrb[0].mxu0
    %v1115 = vadd.f32 0.0, %v1114
    %v1116 = vpop.f32.mrb[0].mxu0
    %1117 = vmatprep.mubr.f32.mxu0 0.0
    %1118 = vmatmul.mubr.f32.gmra.mrb[0].mxu0 %v1032
    %v1119 = vpop.f32.mrb[0].mxu0
    %v1120 = vadd.f32 0.0, %v1119
    %v1121 = vpop.f32.mrb[0].mxu0
    %1122 = vdwg.mxu0
    %v1123 = vmul.f32 %v1105, %v614
    %v1124 = vmul.f32 %v1110, %v619
    %v1125 = vmul.f32 %v1115, %v624
    %v1126 = vmul.f32 %v1120, %v629
    %v1128 = vsel %vm909, %v946, 0
    %1130 = vmatprep.subr.mxu0 0.0
    %1131 = vmatpush1.msra.mxu0 %v1036
    %1132 = vmatprep.subr.mxu0 0.0
    %1133 = vmatpush1.msra.mxu0 0.0
    %1134 = vmatprep.subr.mxu0 0.0
    %1135 = vmatpush1.msra.mxu0 0.0
    %1136 = vmatprep.subr.mxu0 0.0
    %1137 = vmatpush1.msra.mxu0 0.0
    %1138 = vmatprep.subr.mxu0 0.0
    %1139 = vmatpush1.msra.mxu0 0.0
    %1140 = vmatprep.subr.mxu0 0.0
    %1141 = vmatpush1.msra.mxu0 0.0
    %1142 = vmatprep.subr.mxu0 0.0
    %1143 = vmatpush1.msra.mxu0 0.0
    %1144 = vmatprep.subr.mxu0 0.0
    %1145 = vmatpush1.msra.mxu0 0.0
    %1146 = vmatprep.subr.mxu0 0.0
    %1147 = vmatpush1.msra.mxu0 0.0
    %1148 = vmatprep.subr.mxu0 0.0
    %1149 = vmatpush1.msra.mxu0 0.0
    %1150 = vmatprep.subr.mxu0 0.0
    %1151 = vmatpush1.msra.mxu0 0.0
    %1152 = vmatprep.subr.mxu0 0.0
    %1153 = vmatpush1.msra.mxu0 0.0
    %1154 = vmatprep.subr.mxu0 0.0
    %1155 = vmatpush1.msra.mxu0 0.0
    %1156 = vmatprep.subr.mxu0 0.0
    %1157 = vmatpush1.msra.mxu0 0.0
    %1158 = vmatprep.subr.mxu0 0.0
    %1159 = vmatpush1.msra.mxu0 0.0
    %1160 = vmatprep.subr.mxu0 0.0
    %1161 = vmatpush1.msra.mxu0 0.0
    %1162 = vmatprep.subr.mxu0 0.0
    %1163 = vmatpush1.msra.mxu0 0.0
    %1164 = vmatprep.subr.mxu0 0.0
    %1165 = vmatpush1.msra.mxu0 0.0
    %1166 = vmatprep.subr.mxu0 0.0
    %1167 = vmatpush1.msra.mxu0 0.0
    %1168 = vmatprep.subr.mxu0 0.0
    %1169 = vmatpush1.msra.mxu0 0.0
    %1170 = vmatprep.subr.mxu0 0.0
    %1171 = vmatpush1.msra.mxu0 0.0
    %1172 = vmatprep.subr.mxu0 0.0
    %1173 = vmatpush1.msra.mxu0 0.0
    %1174 = vmatprep.subr.mxu0 0.0
    %1175 = vmatpush1.msra.mxu0 0.0
    %1176 = vmatprep.subr.mxu0 0.0
    %1177 = vmatpush1.msra.mxu0 0.0
    %1178 = vmatprep.subr.mxu0 0.0
    %1179 = vmatpush1.msra.mxu0 0.0
    %1180 = vmatprep.subr.mxu0 0.0
    %1181 = vmatpush1.msra.mxu0 0.0
    %1182 = vmatprep.subr.mxu0 0.0
    %1183 = vmatpush1.msra.mxu0 0.0
    %1184 = vmatprep.subr.mxu0 0.0
    %1185 = vmatpush1.msra.mxu0 0.0
    %1186 = vmatprep.subr.mxu0 0.0
    %1187 = vmatpush1.msra.mxu0 0.0
    %1188 = vmatprep.subr.mxu0 0.0
    %1189 = vmatpush1.msra.mxu0 0.0
    %1190 = vmatprep.subr.mxu0 0.0
    %1191 = vmatpush1.msra.mxu0 0.0
    %1192 = vmatprep.subr.mxu0 0.0
    %1193 = vmatpush1.msra.mxu0 0.0
    %1194 = vmatprep.mubr.f32.mxu0 0.0
    %1195 = vmatmul.mubr.f32.gmra.mrb[0].mxu0 %v1128
    %v1196 = vpop.f32.mrb[0].mxu0
    %v1197 = vadd.f32 0.0, %v1196
    %v1198 = vpop.f32.mrb[0].mxu0
    %1199 = vdwg.mxu0
    %v1200 = vmul.f32 %v1197, %v441
    %1201 = vmatprep.subr.mxu0 0.0
    %1202 = vmatpush1.msra.mxu0 %v1123
    %1203 = vmatprep.subr.mxu0 0.0
    %1204 = vmatpush1.msra.mxu0 %v1124
    %1205 = vmatprep.subr.mxu0 0.0
    %1206 = vmatpush1.msra.mxu0 %v1125
    %1207 = vmatprep.subr.mxu0 0.0
    %1208 = vmatpush1.msra.mxu0 %v1126
    %1209 = vmatprep.subr.mxu0 0.0
    %1210 = vmatpush1.msra.mxu0 0.0
    %1211 = vmatprep.subr.mxu0 0.0
    %1212 = vmatpush1.msra.mxu0 0.0
    %1213 = vmatprep.subr.mxu0 0.0
    %1214 = vmatpush1.msra.mxu0 0.0
    %1215 = vmatprep.subr.mxu0 0.0
    %1216 = vmatpush1.msra.mxu0 0.0
    %1217 = vmatprep.subr.mxu0 0.0
    %1218 = vmatpush1.msra.mxu0 0.0
    %1219 = vmatprep.subr.mxu0 0.0
    %1220 = vmatpush1.msra.mxu0 0.0
    %1221 = vmatprep.subr.mxu0 0.0
    %1222 = vmatpush1.msra.mxu0 0.0
    %1223 = vmatprep.subr.mxu0 0.0
    %1224 = vmatpush1.msra.mxu0 0.0
    %1225 = vmatprep.subr.mxu0 0.0
    %1226 = vmatpush1.msra.mxu0 0.0
    %1227 = vmatprep.subr.mxu0 0.0
    %1228 = vmatpush1.msra.mxu0 0.0
    %1229 = vmatprep.subr.mxu0 0.0
    %1230 = vmatpush1.msra.mxu0 0.0
    %1231 = vmatprep.subr.mxu0 0.0
    %1232 = vmatpush1.msra.mxu0 0.0
    %1233 = vmatprep.subr.mxu0 0.0
    %1234 = vmatpush1.msra.mxu0 0.0
    %1235 = vmatprep.subr.mxu0 0.0
    %1236 = vmatpush1.msra.mxu0 0.0
    %1237 = vmatprep.subr.mxu0 0.0
    %1238 = vmatpush1.msra.mxu0 0.0
    %1239 = vmatprep.subr.mxu0 0.0
    %1240 = vmatpush1.msra.mxu0 0.0
    %1241 = vmatprep.subr.mxu0 0.0
    %1242 = vmatpush1.msra.mxu0 0.0
    %1243 = vmatprep.subr.mxu0 0.0
    %1244 = vmatpush1.msra.mxu0 0.0
    %1245 = vmatprep.subr.mxu0 0.0
    %1246 = vmatpush1.msra.mxu0 0.0
    %1247 = vmatprep.subr.mxu0 0.0
    %1248 = vmatpush1.msra.mxu0 0.0
    %1249 = vmatprep.subr.mxu0 0.0
    %1250 = vmatpush1.msra.mxu0 0.0
    %1251 = vmatprep.subr.mxu0 0.0
    %1252 = vmatpush1.msra.mxu0 0.0
    %1253 = vmatprep.subr.mxu0 0.0
    %1254 = vmatpush1.msra.mxu0 0.0
    %1255 = vmatprep.subr.mxu0 0.0
    %1256 = vmatpush1.msra.mxu0 0.0
    %1257 = vmatprep.subr.mxu0 0.0
    %1258 = vmatpush1.msra.mxu0 0.0
    %1259 = vmatprep.subr.mxu0 0.0
    %1260 = vmatpush1.msra.mxu0 0.0
    %1261 = vmatprep.subr.mxu0 0.0
    %1262 = vmatpush1.msra.mxu0 0.0
    %1263 = vmatprep.subr.mxu0 0.0
    %1264 = vmatpush1.msra.mxu0 0.0
    %1265 = vmatprep.mubr.f32.mxu0 0.0
    %1266 = vmatmul.mubr.f32.gmra.mrb[0].mxu0 %v116
    %v1267 = vpop.f32.mrb[0].mxu0
    %v1268 = vadd.f32 %v1200, %v1267
    %v1269 = vpop.f32.mrb[0].mxu0
    %1270 = vdwg.mxu0
    %v1272 = vsel %vm909, %v1021, 0
    %1274 = vmatprep.subr.mxu0 0.0
    %1275 = vmatpush1.msra.mxu0 %v1036
    %1276 = vmatprep.subr.mxu0 0.0
    %1277 = vmatpush1.msra.mxu0 0.0
    %1278 = vmatprep.subr.mxu0 0.0
    %1279 = vmatpush1.msra.mxu0 0.0
    %1280 = vmatprep.subr.mxu0 0.0
    %1281 = vmatpush1.msra.mxu0 0.0
    %1282 = vmatprep.subr.mxu0 0.0
    %1283 = vmatpush1.msra.mxu0 0.0
    %1284 = vmatprep.subr.mxu0 0.0
    %1285 = vmatpush1.msra.mxu0 0.0
    %1286 = vmatprep.subr.mxu0 0.0
    %1287 = vmatpush1.msra.mxu0 0.0
    %1288 = vmatprep.subr.mxu0 0.0
    %1289 = vmatpush1.msra.mxu0 0.0
    %1290 = vmatprep.subr.mxu0 0.0
    %1291 = vmatpush1.msra.mxu0 0.0
    %1292 = vmatprep.subr.mxu0 0.0
    %1293 = vmatpush1.msra.mxu0 0.0
    %1294 = vmatprep.subr.mxu0 0.0
    %1295 = vmatpush1.msra.mxu0 0.0
    %1296 = vmatprep.subr.mxu0 0.0
    %1297 = vmatpush1.msra.mxu0 0.0
    %1298 = vmatprep.subr.mxu0 0.0
    %1299 = vmatpush1.msra.mxu0 0.0
    %1300 = vmatprep.subr.mxu0 0.0
    %1301 = vmatpush1.msra.mxu0 0.0
    %1302 = vmatprep.subr.mxu0 0.0
    %1303 = vmatpush1.msra.mxu0 0.0
    %1304 = vmatprep.subr.mxu0 0.0
    %1305 = vmatpush1.msra.mxu0 0.0
    %1306 = vmatprep.subr.mxu0 0.0
    %1307 = vmatpush1.msra.mxu0 0.0
    %1308 = vmatprep.subr.mxu0 0.0
    %1309 = vmatpush1.msra.mxu0 0.0
    %1310 = vmatprep.subr.mxu0 0.0
    %1311 = vmatpush1.msra.mxu0 0.0
    %1312 = vmatprep.subr.mxu0 0.0
    %1313 = vmatpush1.msra.mxu0 0.0
    %1314 = vmatprep.subr.mxu0 0.0
    %1315 = vmatpush1.msra.mxu0 0.0
    %1316 = vmatprep.subr.mxu0 0.0
    %1317 = vmatpush1.msra.mxu0 0.0
    %1318 = vmatprep.subr.mxu0 0.0
    %1319 = vmatpush1.msra.mxu0 0.0
    %1320 = vmatprep.subr.mxu0 0.0
    %1321 = vmatpush1.msra.mxu0 0.0
    %1322 = vmatprep.subr.mxu0 0.0
    %1323 = vmatpush1.msra.mxu0 0.0
    %1324 = vmatprep.subr.mxu0 0.0
    %1325 = vmatpush1.msra.mxu0 0.0
    %1326 = vmatprep.subr.mxu0 0.0
    %1327 = vmatpush1.msra.mxu0 0.0
    %1328 = vmatprep.subr.mxu0 0.0
    %1329 = vmatpush1.msra.mxu0 0.0
    %1330 = vmatprep.subr.mxu0 0.0
    %1331 = vmatpush1.msra.mxu0 0.0
    %1332 = vmatprep.subr.mxu0 0.0
    %1333 = vmatpush1.msra.mxu0 0.0
    %1334 = vmatprep.subr.mxu0 0.0
    %1335 = vmatpush1.msra.mxu0 0.0
    %1336 = vmatprep.subr.mxu0 0.0
    %1337 = vmatpush1.msra.mxu0 0.0
    %1338 = vmatprep.mubr.f32.mxu0 0.0
    %1339 = vmatmul.mubr.f32.gmra.mrb[0].mxu0 %v1272
    %v1340 = vpop.f32.mrb[0].mxu0
    %v1341 = vadd.f32 0.0, %v1340
    %v1342 = vpop.f32.mrb[0].mxu0
    %1343 = vdwg.mxu0
    %v1344 = vmul.f32 %v1268, %v1341
    %v1345 = vld [vmem:[%s13] sm:$0xff]
    %v1346 = vld [vmem:[%s13 + $0x8] sm:$0xff]
    %v1347 = vld [vmem:[%s13 + $0x10] sm:$0xff]
    %v1348 = vld [vmem:[%s13 + $0x18] sm:$0xff]
    %v1349 = vld [vmem:[%s14] sm:$0x1]
    %v1351 = vlaneseq
    %v1352 = vshrl.u32 %v1351, 7
    %v1353 = vsub.s32 0, %v1352
    %v1354 = vrot.slane %v1349, %v1353
    %v1357 = vsel %vm114, %v1344, 0
    %1359 = vmatprep.subr.mxu0 0.0
    %1360 = vmatpush1.msra.mxu0 %v1345
    %1361 = vmatprep.subr.mxu0 0.0
    %1362 = vmatpush1.msra.mxu0 %v1346
    %1363 = vmatprep.subr.mxu0 0.0
    %1364 = vmatpush1.msra.mxu0 %v1347
    %1365 = vmatprep.subr.mxu0 0.0
    %1366 = vmatpush1.msra.mxu0 %v1348
    %1367 = vmatprep.subr.mxu0 0.0
    %1368 = vmatpush1.msra.mxu0 0.0
    %1369 = vmatprep.subr.mxu0 0.0
    %1370 = vmatpush1.msra.mxu0 0.0
    %1371 = vmatprep.subr.mxu0 0.0
    %1372 = vmatpush1.msra.mxu0 0.0
    %1373 = vmatprep.subr.mxu0 0.0
    %1374 = vmatpush1.msra.mxu0 0.0
    %1375 = vmatprep.subr.mxu0 0.0
    %1376 = vmatpush1.msra.mxu0 0.0
    %1377 = vmatprep.subr.mxu0 0.0
    %1378 = vmatpush1.msra.mxu0 0.0
    %1379 = vmatprep.subr.mxu0 0.0
    %1380 = vmatpush1.msra.mxu0 0.0
    %1381 = vmatprep.subr.mxu0 0.0
    %1382 = vmatpush1.msra.mxu0 0.0
    %1383 = vmatprep.subr.mxu0 0.0
    %1384 = vmatpush1.msra.mxu0 0.0
    %1385 = vmatprep.subr.mxu0 0.0
    %1386 = vmatpush1.msra.mxu0 0.0
    %1387 = vmatprep.subr.mxu0 0.0
    %1388 = vmatpush1.msra.mxu0 0.0
    %1389 = vmatprep.subr.mxu0 0.0
    %1390 = vmatpush1.msra.mxu0 0.0
    %1391 = vmatprep.subr.mxu0 0.0
    %1392 = vmatpush1.msra.mxu0 0.0
    %1393 = vmatprep.subr.mxu0 0.0
    %1394 = vmatpush1.msra.mxu0 0.0
    %1395 = vmatprep.subr.mxu0 0.0
    %1396 = vmatpush1.msra.mxu0 0.0
    %1397 = vmatprep.subr.mxu0 0.0
    %1398 = vmatpush1.msra.mxu0 0.0
    %1399 = vmatprep.subr.mxu0 0.0
    %1400 = vmatpush1.msra.mxu0 0.0
    %1401 = vmatprep.subr.mxu0 0.0
    %1402 = vmatpush1.msra.mxu0 0.0
    %1403 = vmatprep.subr.mxu0 0.0
    %1404 = vmatpush1.msra.mxu0 0.0
    %1405 = vmatprep.subr.mxu0 0.0
    %1406 = vmatpush1.msra.mxu0 0.0
    %1407 = vmatprep.subr.mxu0 0.0
    %1408 = vmatpush1.msra.mxu0 0.0
    %1409 = vmatprep.subr.mxu0 0.0
    %1410 = vmatpush1.msra.mxu0 0.0
    %1411 = vmatprep.subr.mxu0 0.0
    %1412 = vmatpush1.msra.mxu0 0.0
    %1413 = vmatprep.subr.mxu0 0.0
    %1414 = vmatpush1.msra.mxu0 0.0
    %1415 = vmatprep.subr.mxu0 0.0
    %1416 = vmatpush1.msra.mxu0 0.0
    %1417 = vmatprep.subr.mxu0 0.0
    %1418 = vmatpush1.msra.mxu0 0.0
    %1419 = vmatprep.subr.mxu0 0.0
    %1420 = vmatpush1.msra.mxu0 0.0
    %1421 = vmatprep.subr.mxu0 0.0
    %1422 = vmatpush1.msra.mxu0 0.0
    %1423 = vmatprep.mubr.f32.mxu0 0.0
    %1424 = vmatmul.mubr.f32.gmra.mrb[0].mxu0 %v1357
    %v1425 = vpop.f32.mrb[0].mxu0
    %v1426 = vadd.f32 %v1354, %v1425
    %v1427 = vpop.f32.mrb[0].mxu0
    %1428 = vdwg.mxu0
    %vm1429 = vcmask 123904
    %1430 = vst.msk [vmem:[#allocation10] sm:$0x3] %vm1429, %v1426
    // Predicated region
    $region78: #{tpu_custom_call.1} parent=1 // pred_check
      _
    $region79: #{tpu_custom_call.1} parent=1 // pred_check_branch
      %1432 = sbr.rel (0) target = $region81
    $region80: #{tpu_custom_call.1} parent=1 // pred_region
      %s1434 = ssub.s32 32, 32
      %1435 = vsyncadd [#allocation4], %s1434
      %s1437 = sshll.u32 [#allocation10], 4
      %s1438 = int_to_ptr.vmem [resolvable:$true] %s1437
      %1440 = dma.vmem_to_hbm [thread:$0]  %s1438, 32, %s15, [#allocation4]
    $region81: #{tpu_custom_call.1} parent=1 // pred_fallthru
      _
    // Predicated region
    $region82: #{tpu_custom_call.1} parent=1 // pred_check
      _
    $region83: #{tpu_custom_call.1} parent=1 // pred_check_branch
      %1442 = sbr.rel (0) target = $region85
    $region84: #{tpu_custom_call.1} parent=1 // pred_region
      %1443 = dma.done [#allocation4], 32
    $region85: #{tpu_custom_call.1} parent=1 // pred_fallthru
      _
    %1444 = vsyncpa [#allocation3], 1
    %1445 = vsyncpa [#allocation6], 1
    %1446 = vsyncpa [#allocation9], 1
    %1447 = vsyncpa [#allocation4], 1

</llo_original>
